<compile_context>
chip_gen: v6e
topology: v6e:2x2x1
jax: 0.10.0
libtpu: 0.0.40
codegen_flags: <defaults>
</compile_context>

<pallas_src>
import functools

import numpy as np
import jax
import jax.numpy as jnp
from jax.experimental import pallas as pl
from jax.experimental.pallas import tpu as pltpu


# ------------------------------ small helpers ------------------------------

def _round_up(x, m):
    return (x + m - 1) // m * m


def _const_spec(shape, grid_rank):
    """Full-array BlockSpec whose index_map ignores the grid position."""
    zeros = (0,) * len(shape)
    if grid_rank == 1:
        def imap(i):
            return zeros
    else:
        def imap(b, i):
            return zeros
    return pl.BlockSpec(shape, imap)


def _layer_norm(x, ln, d_true, eps):
    """PyTorch LayerNorm over the last dim.

    Pad lanes (index >= d_true) of `x` must be zero; `ln` is (2, D_pad) packed
    [gamma; beta] with zeros in pad lanes, so the output's pad lanes stay 0.
    Mean / variance are computed over the TRUE dim d_true.
    """
    s = jnp.sum(x, axis=-1, keepdims=True)
    ss = jnp.sum(x * x, axis=-1, keepdims=True)
    mean = s / d_true
    var = ss / d_true - mean * mean
    inv = jax.lax.rsqrt(var + eps)
    return (x - mean) * inv * ln[0:1, :] + ln[1:2, :]


# ----------------- one PreNorm attention (+FF) block, in-kernel -----------------
#
# Canonical per-block weight-ref order (must match init_attn_block):
#   ln_q, [ln_c if not is_self], wq, wk, wv, wo, bo,
#   [ln_f, (w1v, b1v, w1g, b1g | w1, b1), w2, b2]   if ff_mode != "none"

def _attn_ff_block(x, ctx, wit, bm, eps):
    heads, dh = bm["heads"], bm["dh"]

    ln_q = next(wit)[...]
    xn = _layer_norm(x, ln_q, bm["d_true_q"], eps)
    if bm["is_self"]:
        cn = xn
    else:
        ln_c = next(wit)[...]
        cn = _layer_norm(ctx, ln_c, bm["d_true_c"], eps)

    wq_ref = next(wit)
    wk_ref = next(wit)
    wv_ref = next(wit)
    wo_ref = next(wit)
    bo = next(wit)[...]

    xb = xn.astype(jnp.bfloat16)
    cb = cn.astype(jnp.bfloat16)
    scale = dh ** -0.5

    acc = None
    for h in range(heads):                       # heads is small & static
        qh = jnp.dot(xb, wq_ref[h], preferred_element_type=jnp.float32)   # (TQ, dh)
        kh = jnp.dot(cb, wk_ref[h], preferred_element_type=jnp.float32)   # (M,  dh)
        vh = jnp.dot(cb, wv_ref[h], preferred_element_type=jnp.float32)   # (M,  dh)
        sim = jax.lax.dot_general(
            qh.astype(jnp.bfloat16), kh.astype(jnp.bfloat16),
            (((1,), (1,)), ((), ())), preferred_element_type=jnp.float32) * scale
        sim = sim - jnp.max(sim, axis=-1, keepdims=True)
        p = jnp.exp(sim)
        p = p * pl.reciprocal(jnp.sum(p, axis=-1, keepdims=True), approx=True)
        oh = jnp.dot(p.astype(jnp.bfloat16), vh.astype(jnp.bfloat16),
                     preferred_element_type=jnp.float32)                  # (TQ, dh)
        contrib = jnp.dot(oh.astype(jnp.bfloat16), wo_ref[h],
                          preferred_element_type=jnp.float32)             # (TQ, Dq)
        acc = contrib if acc is None else acc + contrib

    x = x + acc + bo                              # residual + out-proj bias

    ff_mode = bm["ff_mode"]
    if ff_mode != "none":
        ln_f = next(wit)[...]
        xn2 = _layer_norm(x, ln_f, bm["d_true_q"], eps).astype(jnp.bfloat16)
        if ff_mode == "geglu":
            w1v = next(wit); b1v = next(wit)
            w1g = next(wit); b1g = next(wit)
            val = jnp.dot(xn2, w1v[...], preferred_element_type=jnp.float32) + b1v[...]
            gate = jnp.dot(xn2, w1g[...], preferred_element_type=jnp.float32) + b1g[...]
            a = val * jax.nn.gelu(gate, approximate=True)
        else:
            w1 = next(wit); b1 = next(wit)
            h1 = jnp.dot(xn2, w1[...], preferred_element_type=jnp.float32) + b1[...]
            if ff_mode == "gelu":
                a = jax.nn.gelu(h1, approximate=True)
            elif ff_mode == "relu":
                a = jnp.maximum(h1, 0.0)
            else:
                # TODO(synk): softplus(beta=100) activation not needed for this config.
                raise ValueError(f"unsupported ff activation: {ff_mode}")
        w2 = next(wit); b2 = next(wit)
        y2 = jnp.dot(a.astype(jnp.bfloat16), w2[...],
                     preferred_element_type=jnp.float32) + b2[...]
        x = x + y2                                # residual

    return x


# --------------------- fused codebook Perceiver kernel ---------------------

def _perceiver_kernel(*refs, blocks, eps):
    lat_ref, cb_ref = refs[0], refs[1]
    o_ref = refs[-1]
    wit = iter(refs[2:-1])

    x = lat_ref[...]                               # (K, latent_dim) f32
    ctx = cb_ref[...]                              # (M, codebook_dim) f32
    for bm in blocks:
        x = _attn_ff_block(x, x if bm["is_self"] else ctx, wit, bm, eps)
    o_ref[...] = x


def codebook_attention_pallas(latents, codebook, block_arrays, block_meta, eps=1e-5):
    """Whole Perceiver stack (cross + self blocks) in ONE pallas_call at batch=1."""
    K, ld = latents.shape
    arrays = [latents, codebook]
    in_specs = [_const_spec(latents.shape, 1), _const_spec(codebook.shape, 1)]
    for arrs in block_arrays:
        for a in arrs:
            arrays.append(a)
            in_specs.append(_const_spec(a.shape, 1))

    # TODO(synk): grid is (1,) — the fused self-attention needs all latents in one
    # tile, so on v7x one TensorCore idles during this (tiny) stack.
    return pl.pallas_call(
        functools.partial(_perceiver_kernel, blocks=tuple(block_meta), eps=eps),
        grid=(1,),
        in_specs=in_specs,
        out_specs=pl.BlockSpec((K, ld), lambda i: (0, 0)),
        out_shape=jax.ShapeDtypeStruct((K, ld), jnp.float32),
        compiler_params=pltpu.CompilerParams(
            dimension_semantics=("arbitrary",),
            vmem_limit_bytes=32 * 1024 * 1024),
    )(*arrays)


# ------------- fused coordinate attention + color MLP kernel -------------

def _coord_color_kernel(*refs, blocks, n_mlp, eps):
    x_ref, lat_ref = refs[0], refs[1]
    o_ref = refs[-1]
    wit = iter(refs[2:-1])

    x = x_ref[0]                                   # (TQ, D_pad) f32, pads zero
    ctx = lat_ref[...]                             # (K, latent_dim) f32

    for bm in blocks:                              # coordinate cross-attn blocks
        x = _attn_ff_block(x, ctx, wit, bm, eps)

    h = x                                          # color MLP, fused in-kernel
    for i in range(n_mlp):
        w = next(wit)
        b = next(wit)
        h = jnp.dot(h.astype(jnp.bfloat16), w[...],
                    preferred_element_type=jnp.float32) + b[...]
        h = jnp.maximum(h, 0.0) if i < n_mlp - 1 else jax.nn.sigmoid(h)

    o_ref[0] = h                                   # lane-dense 128-wide store


def coord_color_pallas(x, latents, block_arrays, block_meta, mlp_layers, d_out,
                       *, tq_max=1024, eps=1e-5):
    """Coordinate cross-attention stack + color MLP, row-tiled over queries."""
    B, N, Dp = x.shape
    out_pad = mlp_layers[-1]["w"].shape[1]         # final dim padded to 128

    if N <= tq_max:
        TQ = _round_up(N, 8)
        N_pad = TQ
    else:
        TQ = tq_max
        N_pad = _round_up(N, TQ)
    xp = x if N_pad == N else jnp.pad(x, ((0, 0), (0, N_pad - N), (0, 0)))
    n_tiles = N_pad // TQ

    arrays = [xp, latents]
    in_specs = [pl.BlockSpec((1, TQ, Dp), lambda b, i: (b, i, 0)),
                _const_spec(latents.shape, 2)]
    for arrs in block_arrays:
        for a in arrs:
            arrays.append(a)
            in_specs.append(_const_spec(a.shape, 2))
    for lyr in mlp_layers:
        for a in (lyr["w"], lyr["b"]):
            arrays.append(a)
            in_specs.append(_const_spec(a.shape, 2))

    out = pl.pallas_call(
        functools.partial(_coord_color_kernel, blocks=tuple(block_meta),
                          n_mlp=len(mlp_layers), eps=eps),
        grid=(B, n_tiles),
        in_specs=in_specs,
        out_specs=pl.BlockSpec((1, TQ, out_pad), lambda b, i: (b, i, 0)),
        out_shape=jax.ShapeDtypeStruct((B, N_pad, out_pad), jnp.float32),
        compiler_params=pltpu.CompilerParams(
            dimension_semantics=("parallel", "parallel"),
            vmem_limit_bytes=32 * 1024 * 1024),
    )(*arrays)
    return out[:, :N, :d_out]


# ----------------------------- module forward -----------------------------

def nerf_embed(x, multires):
    # TODO(synk): get_embedder is not defined in the reference file; standard
    # NeRF positional embedding (include_input, log-sampled freqs) assumed.
    freqs = 2.0 ** np.arange(multires, dtype=np.float32)
    outs = [x]
    for f in freqs:
        outs.append(jnp.sin(x * f))
        outs.append(jnp.cos(x * f))
    return jnp.concatenate(outs, axis=-1)


def rendering_attention_forward(params, codebook, points, normals, view_dirs,
                                feature_vectors, cfg, meta):
    if cfg["multires_view"] > 0:
        view_dirs = nerf_embed(view_dirs, cfg["multires_view"])
    if cfg["mode"] == "idr":
        rendering_input = jnp.concatenate(
            [points, view_dirs, normals, feature_vectors], axis=-1)
    elif cfg["mode"] == "nerf":
        rendering_input = jnp.concatenate([view_dirs, feature_vectors], axis=-1)
    else:
        raise ValueError("mode must be `idr` or `nerf`")

    b, n_rays, n_pts, c = rendering_input.shape
    d_pad = params["color_mlp"][0]["w"].shape[0]   # residual dim padded to 128

    # Batch-invariant: run the Perceiver stack once, share across the batch.
    latents = codebook_attention_pallas(
        params["latents"], codebook,
        params["codebook_blocks"], meta["codebook_blocks"])

    x = rendering_input.reshape(b, n_rays * n_pts, c)
    x = jnp.pad(x, ((0, 0), (0, 0), (0, d_pad - c)))   # lane-pad to 128
    y = coord_color_pallas(x, latents,
                           params["coordinate_blocks"], meta["coordinate_blocks"],
                           params["color_mlp"], d_out=cfg["d_out"])
    return y.reshape(b, n_rays, n_pts, cfg["d_out"])


# ------------------------- deterministic parameters -------------------------

class Init:
    def __init__(self, key):
        self.key = key

    def _next(self):
        self.key, k = jax.random.split(self.key)
        return k

    def normal(self, shape, scale=1.0):
        return scale * jax.random.normal(self._next(), shape, jnp.float32)


def _ln_params(d_true, d_pad):
    gamma = jnp.zeros((d_pad,), jnp.float32).at[:d_true].set(1.0)
    beta = jnp.zeros((d_pad,), jnp.float32)
    return jnp.stack([gamma, beta])                 # (2, d_pad)


def init_attn_block(init, *, q_true, q_pad, c_true, c_pad, heads, dh,
                    is_self, ff_mode, ff_hidden=None):
    """Returns (arrays, meta). Array order matches _attn_ff_block:
       ln_q, [ln_c], wq, wk, wv, wo, bo, [ln_f, (w1v,b1v,w1g,b1g | w1,b1), w2, b2]."""
    arrays = [_ln_params(q_true, q_pad)]
    if not is_self:
        arrays.append(_ln_params(c_true, c_pad))

    def head_proj(d_true, d_pad):                   # per-head (heads, D, dh)
        w = init.normal((heads, d_true, dh), d_true ** -0.5)
        if d_pad != d_true:
            w = jnp.pad(w, ((0, 0), (0, d_pad - d_true), (0, 0)))
        return w.astype(jnp.bfloat16)

    arrays.append(head_proj(q_true, q_pad))         # wq
    arrays.append(head_proj(c_true, c_pad))         # wk
    arrays.append(head_proj(c_true, c_pad))         # wv

    inner = heads * dh
    wo = init.normal((heads, dh, q_true), inner ** -0.5)
    bo = init.normal((1, q_true), inner ** -0.5)
    if q_pad != q_true:                             # zero pad cols keep pads zero
        wo = jnp.pad(wo, ((0, 0), (0, 0), (0, q_pad - q_true)))
        bo = jnp.pad(bo, ((0, 0), (0, q_pad - q_true)))
    arrays.append(wo.astype(jnp.bfloat16))
    arrays.append(bo)

    if ff_mode != "none":
        h_t = ff_hidden
        h_p = _round_up(h_t, 128)                   # lane-align the FF hidden
        arrays.append(_ln_params(q_true, q_pad))    # ln_f

        def lin(din_t, din_p, dout_t, dout_p):
            w = init.normal((din_t, dout_t), din_t ** -0.5)
            w = jnp.pad(w, ((0, din_p - din_t), (0, dout_p - dout_t)))
            b = init.normal((1, dout_t), din_t ** -0.5)
            b = jnp.pad(b, ((0, 0), (0, dout_p - dout_t)))
            return w.astype(jnp.bfloat16), b

        if ff_mode == "geglu":
            w1v, b1v = lin(q_true, q_pad, h_t, h_p)
            w1g, b1g = lin(q_true, q_pad, h_t, h_p)
            arrays += [w1v, b1v, w1g, b1g]
        else:
            w1, b1 = lin(q_true, q_pad, h_t, h_p)
            arrays += [w1, b1]
        w2, b2 = lin(h_t, h_p, q_true, q_pad)
        arrays += [w2, b2]

    meta = dict(heads=heads, dh=dh, is_self=is_self, ff_mode=ff_mode,
                d_true_q=q_true, d_true_c=c_true)
    return arrays, meta


def init_params(key, cfg, codebook_dim):
    init = Init(key)
    ld = cfg["latent_dim"]
    qd = cfg["input_dim"]
    qd_pad = _round_up(qd, 128)

    # --- CodebookAttention (Perceiver): cross block + `depth` self blocks ---
    cb_blocks = [init_attn_block(
        init, q_true=ld, q_pad=ld, c_true=codebook_dim, c_pad=codebook_dim,
        heads=cfg["cross_heads"], dh=cfg["cross_dim_head"],
        is_self=False, ff_mode="geglu", ff_hidden=ld * 4)]
    for _ in range(cfg["depth"]):
        cb_blocks.append(init_attn_block(
            init, q_true=ld, q_pad=ld, c_true=ld, c_pad=ld,
            heads=cfg["latent_heads"], dh=cfg["latent_dim_head"],
            is_self=True, ff_mode="geglu", ff_hidden=ld * 4))

    latents = init.normal((cfg["num_latents"], ld))

    # --- CoordinateAttention blocks (queries lane-padded to 128) ---
    act = cfg["activation"].lower()
    hidden = qd * 2 if act == "geglu" else qd
    ff_hidden = hidden // 2 if act == "geglu" else hidden
    co_blocks = []
    for i in range(cfg["num_cross_depth"]):
        has_ff = (i == cfg["num_cross_depth"] - 1) and cfg["decoder_ff"]
        co_blocks.append(init_attn_block(
            init, q_true=qd, q_pad=qd_pad, c_true=ld, c_pad=ld,
            heads=cfg["cross_heads"], dh=cfg["cross_dim_head"],
            is_self=False, ff_mode=act if has_ff else "none",
            ff_hidden=ff_hidden if has_ff else None))

    # --- color MLP: relu hidden layers + final layer padded to 128 lanes ---
    layers = []
    c_in_t, c_in_p = qd, qd_pad
    for _ in range(cfg["num_layers"]):
        w = init.normal((c_in_t, cfg["hidden_dim"]), c_in_t ** -0.5)
        w = jnp.pad(w, ((0, c_in_p - c_in_t), (0, 0)))
        b = init.normal((1, cfg["hidden_dim"]), c_in_t ** -0.5)
        layers.append({"w": w.astype(jnp.bfloat16), "b": b})
        c_in_t = c_in_p = cfg["hidden_dim"]
    out_pad = _round_up(cfg["d_out"], 128)
    w = init.normal((c_in_t, cfg["d_out"]), c_in_t ** -0.5)
    w = jnp.pad(w, ((0, c_in_p - c_in_t), (0, out_pad - cfg["d_out"])))
    b = jnp.pad(init.normal((1, cfg["d_out"]), c_in_t ** -0.5),
                ((0, 0), (0, out_pad - cfg["d_out"])))
    layers.append({"w": w.astype(jnp.bfloat16), "b": b})

    params = {
        "latents": latents,
        "codebook_blocks": [blk[0] for blk in cb_blocks],
        "coordinate_blocks": [blk[0] for blk in co_blocks],
        "color_mlp": layers,
    }
    meta = {
        "codebook_blocks": tuple(blk[1] for blk in cb_blocks),
        "coordinate_blocks": tuple(blk[1] for blk in co_blocks),
    }
    return params, meta


# ----------------------------------- main -----------------------------------

if __name__ == "__main__":
    cfg = dict(
        feature_vector_size=8, mode="idr", d_in=9, d_out=3, multires_view=4,
        num_layers=3, hidden_dim=32, depth=1, num_latents=16, latent_dim=64,
        latent_heads=2, latent_dim_head=16, num_cross_depth=1,
        activation="gelu", cross_heads=1, cross_dim_head=16, decoder_ff=True,
    )
    input_ch = 3 + 2 * 3 * cfg["multires_view"]                                 # 27
    cfg["input_dim"] = cfg["d_in"] + cfg["feature_vector_size"] + input_ch - 3  # 41

    key = jax.random.PRNGKey(0)
    k_in, k_par = jax.random.split(key)
    kp, kn, kv, kf, kcb = jax.random.split(k_in, 5)

    b, n_rays, n_pts = 2, 4, 4
    points = jax.random.normal(kp, (b, n_rays, n_pts, 3), jnp.float32)
    normals = jax.random.normal(kn, (b, n_rays, n_pts, 3), jnp.float32)
    view_dirs = jax.random.normal(kv, (b, n_rays, n_pts, 3), jnp.float32)
    feature_vectors = jax.random.normal(
        kf, (b, n_rays, n_pts, cfg["feature_vector_size"]), jnp.float32)
    codebook = jax.random.normal(kcb, (24, 32), jnp.float32)   # (n_embed, codebook_dim)

    params, meta = init_params(k_par, cfg, codebook_dim=codebook.shape[1])

    forward = jax.jit(functools.partial(rendering_attention_forward,
                                        cfg=cfg, meta=meta))
    out = forward(params, codebook, points, normals, view_dirs, feature_vectors)
    out = jax.block_until_ready(out)

    assert out.shape == (b, n_rays, n_pts, cfg["d_out"])
    assert bool(jnp.all(jnp.isfinite(out)))
    assert bool(jnp.all((out >= 0.0) & (out <= 1.0)))          # sigmoid output
    print("KERNEL_OK")
</pallas_src>

<mosaic_0001>
module attributes {stable_mosaic.version = 11 : i64} {
  func.func @_perceiver_kernel(%arg0: i32, %arg1: memref<16x64xf32, #tpu.memory_space<vmem>>, %arg2: memref<24x32xf32, #tpu.memory_space<vmem>>, %arg3: memref<2x64xf32, #tpu.memory_space<vmem>>, %arg4: memref<2x32xf32, #tpu.memory_space<vmem>>, %arg5: memref<1x64x16xbf16, #tpu.memory_space<vmem>>, %arg6: memref<1x32x16xbf16, #tpu.memory_space<vmem>>, %arg7: memref<1x32x16xbf16, #tpu.memory_space<vmem>>, %arg8: memref<1x16x64xbf16, #tpu.memory_space<vmem>>, %arg9: memref<1x64xf32, #tpu.memory_space<vmem>>, %arg10: memref<2x64xf32, #tpu.memory_space<vmem>>, %arg11: memref<64x256xbf16, #tpu.memory_space<vmem>>, %arg12: memref<1x256xf32, #tpu.memory_space<vmem>>, %arg13: memref<64x256xbf16, #tpu.memory_space<vmem>>, %arg14: memref<1x256xf32, #tpu.memory_space<vmem>>, %arg15: memref<256x64xbf16, #tpu.memory_space<vmem>>, %arg16: memref<1x64xf32, #tpu.memory_space<vmem>>, %arg17: memref<2x64xf32, #tpu.memory_space<vmem>>, %arg18: memref<2x64x16xbf16, #tpu.memory_space<vmem>>, %arg19: memref<2x64x16xbf16, #tpu.memory_space<vmem>>, %arg20: memref<2x64x16xbf16, #tpu.memory_space<vmem>>, %arg21: memref<2x16x64xbf16, #tpu.memory_space<vmem>>, %arg22: memref<1x64xf32, #tpu.memory_space<vmem>>, %arg23: memref<2x64xf32, #tpu.memory_space<vmem>>, %arg24: memref<64x256xbf16, #tpu.memory_space<vmem>>, %arg25: memref<1x256xf32, #tpu.memory_space<vmem>>, %arg26: memref<64x256xbf16, #tpu.memory_space<vmem>>, %arg27: memref<1x256xf32, #tpu.memory_space<vmem>>, %arg28: memref<256x64xbf16, #tpu.memory_space<vmem>>, %arg29: memref<1x64xf32, #tpu.memory_space<vmem>>, %arg30: memref<16x64xf32, #tpu.memory_space<vmem>>) attributes {dimension_semantics = [#tpu.dimension_semantics<arbitrary>], iteration_bounds = array<i64: 1>, scalar_prefetch = 0 : i64, scratch_operands = 0 : i64, tpu.core_type = #tpu.core_type<tc>, window_params = [{pipeline_mode = #tpu.pipeline_mode<synchronous>, transform_indices = @transform_0, window_bounds = array<i64: 16, 64>}, {pipeline_mode = #tpu.pipeline_mode<synchronous>, transform_indices = @transform_1, window_bounds = array<i64: 24, 32>}, {pipeline_mode = #tpu.pipeline_mode<synchronous>, transform_indices = @transform_2, window_bounds = array<i64: 2, 64>}, {pipeline_mode = #tpu.pipeline_mode<synchronous>, transform_indices = @transform_3, window_bounds = array<i64: 2, 32>}, {pipeline_mode = #tpu.pipeline_mode<synchronous>, transform_indices = @transform_4, window_bounds = array<i64: 1, 64, 16>}, {pipeline_mode = #tpu.pipeline_mode<synchronous>, transform_indices = @transform_5, window_bounds = array<i64: 1, 32, 16>}, {pipeline_mode = #tpu.pipeline_mode<synchronous>, transform_indices = @transform_6, window_bounds = array<i64: 1, 32, 16>}, {pipeline_mode = #tpu.pipeline_mode<synchronous>, transform_indices = @transform_7, window_bounds = array<i64: 1, 16, 64>}, {pipeline_mode = #tpu.pipeline_mode<synchronous>, transform_indices = @transform_8, window_bounds = array<i64: 1, 64>}, {pipeline_mode = #tpu.pipeline_mode<synchronous>, transform_indices = @transform_9, window_bounds = array<i64: 2, 64>}, {pipeline_mode = #tpu.pipeline_mode<synchronous>, transform_indices = @transform_10, window_bounds = array<i64: 64, 256>}, {pipeline_mode = #tpu.pipeline_mode<synchronous>, transform_indices = @transform_11, window_bounds = array<i64: 1, 256>}, {pipeline_mode = #tpu.pipeline_mode<synchronous>, transform_indices = @transform_12, window_bounds = array<i64: 64, 256>}, {pipeline_mode = #tpu.pipeline_mode<synchronous>, transform_indices = @transform_13, window_bounds = array<i64: 1, 256>}, {pipeline_mode = #tpu.pipeline_mode<synchronous>, transform_indices = @transform_14, window_bounds = array<i64: 256, 64>}, {pipeline_mode = #tpu.pipeline_mode<synchronous>, transform_indices = @transform_15, window_bounds = array<i64: 1, 64>}, {pipeline_mode = #tpu.pipeline_mode<synchronous>, transform_indices = @transform_16, window_bounds = array<i64: 2, 64>}, {pipeline_mode = #tpu.pipeline_mode<synchronous>, transform_indices = @transform_17, window_bounds = array<i64: 2, 64, 16>}, {pipeline_mode = #tpu.pipeline_mode<synchronous>, transform_indices = @transform_18, window_bounds = array<i64: 2, 64, 16>}, {pipeline_mode = #tpu.pipeline_mode<synchronous>, transform_indices = @transform_19, window_bounds = array<i64: 2, 64, 16>}, {pipeline_mode = #tpu.pipeline_mode<synchronous>, transform_indices = @transform_20, window_bounds = array<i64: 2, 16, 64>}, {pipeline_mode = #tpu.pipeline_mode<synchronous>, transform_indices = @transform_21, window_bounds = array<i64: 1, 64>}, {pipeline_mode = #tpu.pipeline_mode<synchronous>, transform_indices = @transform_22, window_bounds = array<i64: 2, 64>}, {pipeline_mode = #tpu.pipeline_mode<synchronous>, transform_indices = @transform_23, window_bounds = array<i64: 64, 256>}, {pipeline_mode = #tpu.pipeline_mode<synchronous>, transform_indices = @transform_24, window_bounds = array<i64: 1, 256>}, {pipeline_mode = #tpu.pipeline_mode<synchronous>, transform_indices = @transform_25, window_bounds = array<i64: 64, 256>}, {pipeline_mode = #tpu.pipeline_mode<synchronous>, transform_indices = @transform_26, window_bounds = array<i64: 1, 256>}, {pipeline_mode = #tpu.pipeline_mode<synchronous>, transform_indices = @transform_27, window_bounds = array<i64: 256, 64>}, {pipeline_mode = #tpu.pipeline_mode<synchronous>, transform_indices = @transform_28, window_bounds = array<i64: 1, 64>}, {pipeline_mode = #tpu.pipeline_mode<synchronous>, transform_indices = @transform_29, window_bounds = array<i64: 16, 64>}]} {
    %c0 = arith.constant 0 : index
    %c0_0 = arith.constant 0 : index
    %0 = vector.load %arg1[%c0, %c0_0] : memref<16x64xf32, #tpu.memory_space<vmem>>, vector<16x64xf32>
    %c0_1 = arith.constant 0 : index
    %c0_2 = arith.constant 0 : index
    %1 = vector.load %arg2[%c0_1, %c0_2] : memref<24x32xf32, #tpu.memory_space<vmem>>, vector<24x32xf32>
    %c0_3 = arith.constant 0 : index
    %c0_4 = arith.constant 0 : index
    %2 = vector.load %arg3[%c0_3, %c0_4] : memref<2x64xf32, #tpu.memory_space<vmem>>, vector<2x64xf32>
    %cst = arith.constant dense<0.000000e+00> : vector<16xf32>
    %3 = vector.multi_reduction <add>, %0, %cst [1] : vector<16x64xf32> to vector<16xf32>
    %4 = vector.shape_cast %3 : vector<16xf32> to vector<16x1xf32>
    %5 = arith.mulf %0, %0 : vector<16x64xf32>
    %cst_5 = arith.constant dense<0.000000e+00> : vector<16xf32>
    %6 = vector.multi_reduction <add>, %5, %cst_5 [1] : vector<16x64xf32> to vector<16xf32>
    %7 = vector.shape_cast %6 : vector<16xf32> to vector<16x1xf32>
    %cst_6 = arith.constant 6.400000e+01 : f32
    %8 = vector.broadcast %cst_6 : f32 to vector<16x1xf32>
    %9 = arith.divf %4, %8 : vector<16x1xf32>
    %cst_7 = arith.constant 6.400000e+01 : f32
    %10 = vector.broadcast %cst_7 : f32 to vector<16x1xf32>
    %11 = arith.divf %7, %10 : vector<16x1xf32>
    %12 = arith.mulf %9, %9 : vector<16x1xf32>
    %13 = arith.subf %11, %12 : vector<16x1xf32>
    %cst_8 = arith.constant 9.99999974E-6 : f32
    %14 = vector.broadcast %cst_8 : f32 to vector<16x1xf32>
    %15 = arith.addf %13, %14 : vector<16x1xf32>
    %16 = math.rsqrt %15 : vector<16x1xf32>
    %17 = vector.broadcast %9 : vector<16x1xf32> to vector<16x64xf32>
    %18 = arith.subf %0, %17 : vector<16x64xf32>
    %19 = vector.broadcast %16 : vector<16x1xf32> to vector<16x64xf32>
    %20 = arith.mulf %18, %19 : vector<16x64xf32>
    %21 = vector.extract_strided_slice %2 {offsets = [0, 0], sizes = [1, 64], strides = [1, 1]} : vector<2x64xf32> to vector<1x64xf32>
    %22 = vector.broadcast %21 : vector<1x64xf32> to vector<16x64xf32>
    %23 = arith.mulf %20, %22 : vector<16x64xf32>
    %24 = vector.extract_strided_slice %2 {offsets = [1, 0], sizes = [1, 64], strides = [1, 1]} : vector<2x64xf32> to vector<1x64xf32>
    %25 = vector.broadcast %24 : vector<1x64xf32> to vector<16x64xf32>
    %26 = arith.addf %23, %25 : vector<16x64xf32>
    %c0_9 = arith.constant 0 : index
    %c0_10 = arith.constant 0 : index
    %27 = vector.load %arg4[%c0_9, %c0_10] : memref<2x32xf32, #tpu.memory_space<vmem>>, vector<2x32xf32>
    %cst_11 = arith.constant dense<0.000000e+00> : vector<24xf32>
    %28 = vector.multi_reduction <add>, %1, %cst_11 [1] : vector<24x32xf32> to vector<24xf32>
    %29 = vector.shape_cast %28 : vector<24xf32> to vector<24x1xf32>
    %30 = arith.mulf %1, %1 : vector<24x32xf32>
    %cst_12 = arith.constant dense<0.000000e+00> : vector<24xf32>
    %31 = vector.multi_reduction <add>, %30, %cst_12 [1] : vector<24x32xf32> to vector<24xf32>
    %32 = vector.shape_cast %31 : vector<24xf32> to vector<24x1xf32>
    %cst_13 = arith.constant 3.200000e+01 : f32
    %33 = vector.broadcast %cst_13 : f32 to vector<24x1xf32>
    %34 = arith.divf %29, %33 : vector<24x1xf32>
    %cst_14 = arith.constant 3.200000e+01 : f32
    %35 = vector.broadcast %cst_14 : f32 to vector<24x1xf32>
    %36 = arith.divf %32, %35 : vector<24x1xf32>
    %37 = arith.mulf %34, %34 : vector<24x1xf32>
    %38 = arith.subf %36, %37 : vector<24x1xf32>
    %cst_15 = arith.constant 9.99999974E-6 : f32
    %39 = vector.broadcast %cst_15 : f32 to vector<24x1xf32>
    %40 = arith.addf %38, %39 : vector<24x1xf32>
    %41 = math.rsqrt %40 : vector<24x1xf32>
    %42 = vector.broadcast %34 : vector<24x1xf32> to vector<24x32xf32>
    %43 = arith.subf %1, %42 : vector<24x32xf32>
    %44 = vector.broadcast %41 : vector<24x1xf32> to vector<24x32xf32>
    %45 = arith.mulf %43, %44 : vector<24x32xf32>
    %46 = vector.extract_strided_slice %27 {offsets = [0, 0], sizes = [1, 32], strides = [1, 1]} : vector<2x32xf32> to vector<1x32xf32>
    %47 = vector.broadcast %46 : vector<1x32xf32> to vector<24x32xf32>
    %48 = arith.mulf %45, %47 : vector<24x32xf32>
    %49 = vector.extract_strided_slice %27 {offsets = [1, 0], sizes = [1, 32], strides = [1, 1]} : vector<2x32xf32> to vector<1x32xf32>
    %50 = vector.broadcast %49 : vector<1x32xf32> to vector<24x32xf32>
    %51 = arith.addf %48, %50 : vector<24x32xf32>
    %c0_16 = arith.constant 0 : index
    %c0_17 = arith.constant 0 : index
    %52 = vector.load %arg9[%c0_16, %c0_17] : memref<1x64xf32, #tpu.memory_space<vmem>>, vector<1x64xf32>
    %53 = arith.truncf %26 : vector<16x64xf32> to vector<16x64xbf16>
    %54 = arith.truncf %51 : vector<24x32xf32> to vector<24x32xbf16>
    %c0_18 = arith.constant 0 : index
    %c0_19 = arith.constant 0 : index
    %c0_20 = arith.constant 0 : index
    %55 = vector.load %arg5[%c0_18, %c0_19, %c0_20] : memref<1x64x16xbf16, #tpu.memory_space<vmem>>, vector<1x64x16xbf16>
    %56 = vector.shape_cast %55 : vector<1x64x16xbf16> to vector<64x16xbf16>
    %cst_21 = arith.constant dense<0.000000e+00> : vector<16x16xf32>
    %57 = tpu.matmul %53, %56, %cst_21 {dimension_numbers = #tpu.dot_dimension_numbers<[1], [0], [0], [1], [0, 0, 1, 1], [], []>} : vector<16x64xbf16>, vector<64x16xbf16>, vector<16x16xf32> -> vector<16x16xf32>
    %c0_22 = arith.constant 0 : index
    %c0_23 = arith.constant 0 : index
    %c0_24 = arith.constant 0 : index
    %58 = vector.load %arg6[%c0_22, %c0_23, %c0_24] : memref<1x32x16xbf16, #tpu.memory_space<vmem>>, vector<1x32x16xbf16>
    %59 = vector.shape_cast %58 : vector<1x32x16xbf16> to vector<32x16xbf16>
    %cst_25 = arith.constant dense<0.000000e+00> : vector<24x16xf32>
    %60 = tpu.matmul %54, %59, %cst_25 {dimension_numbers = #tpu.dot_dimension_numbers<[1], [0], [0], [1], [0, 0, 1, 1], [], []>} : vector<24x32xbf16>, vector<32x16xbf16>, vector<24x16xf32> -> vector<24x16xf32>
    %c0_26 = arith.constant 0 : index
    %c0_27 = arith.constant 0 : index
    %c0_28 = arith.constant 0 : index
    %61 = vector.load %arg7[%c0_26, %c0_27, %c0_28] : memref<1x32x16xbf16, #tpu.memory_space<vmem>>, vector<1x32x16xbf16>
    %62 = vector.shape_cast %61 : vector<1x32x16xbf16> to vector<32x16xbf16>
    %cst_29 = arith.constant dense<0.000000e+00> : vector<24x16xf32>
    %63 = tpu.matmul %54, %62, %cst_29 {dimension_numbers = #tpu.dot_dimension_numbers<[1], [0], [0], [1], [0, 0, 1, 1], [], []>} : vector<24x32xbf16>, vector<32x16xbf16>, vector<24x16xf32> -> vector<24x16xf32>
    %64 = arith.truncf %57 : vector<16x16xf32> to vector<16x16xbf16>
    %65 = arith.truncf %60 : vector<24x16xf32> to vector<24x16xbf16>
    %cst_30 = arith.constant dense<0.000000e+00> : vector<16x24xf32>
    %66 = tpu.matmul %64, %65, %cst_30 {dimension_numbers = #tpu.dot_dimension_numbers<[1], [1], [0], [0], [0, 0, 1, 0], [], []>} : vector<16x16xbf16>, vector<24x16xbf16>, vector<16x24xf32> -> vector<16x24xf32>
    %cst_31 = arith.constant 2.500000e-01 : f32
    %67 = vector.broadcast %cst_31 : f32 to vector<16x24xf32>
    %68 = arith.mulf %66, %67 : vector<16x24xf32>
    %cst_32 = arith.constant dense<0xFF800000> : vector<16xf32>
    %69 = vector.multi_reduction <maximumf>, %68, %cst_32 [1] : vector<16x24xf32> to vector<16xf32>
    %70 = vector.shape_cast %69 : vector<16xf32> to vector<16x1xf32>
    %71 = vector.broadcast %70 : vector<16x1xf32> to vector<16x24xf32>
    %72 = arith.subf %68, %71 : vector<16x24xf32>
    %73 = math.exp %72 : vector<16x24xf32>
    %cst_33 = arith.constant dense<0.000000e+00> : vector<16xf32>
    %74 = vector.multi_reduction <add>, %73, %cst_33 [1] : vector<16x24xf32> to vector<16xf32>
    %75 = vector.shape_cast %74 : vector<16xf32> to vector<16x1xf32>
    %76 = tpu.reciprocal %75 {approx = true} : vector<16x1xf32> -> vector<16x1xf32>
    %77 = vector.broadcast %76 : vector<16x1xf32> to vector<16x24xf32>
    %78 = arith.mulf %73, %77 : vector<16x24xf32>
    %79 = arith.truncf %78 : vector<16x24xf32> to vector<16x24xbf16>
    %80 = arith.truncf %63 : vector<24x16xf32> to vector<24x16xbf16>
    %cst_34 = arith.constant dense<0.000000e+00> : vector<16x16xf32>
    %81 = tpu.matmul %79, %80, %cst_34 {dimension_numbers = #tpu.dot_dimension_numbers<[1], [0], [0], [1], [0, 0, 1, 1], [], []>} : vector<16x24xbf16>, vector<24x16xbf16>, vector<16x16xf32> -> vector<16x16xf32>
    %82 = arith.truncf %81 : vector<16x16xf32> to vector<16x16xbf16>
    %c0_35 = arith.constant 0 : index
    %c0_36 = arith.constant 0 : index
    %c0_37 = arith.constant 0 : index
    %83 = vector.load %arg8[%c0_35, %c0_36, %c0_37] : memref<1x16x64xbf16, #tpu.memory_space<vmem>>, vector<1x16x64xbf16>
    %84 = vector.shape_cast %83 : vector<1x16x64xbf16> to vector<16x64xbf16>
    %cst_38 = arith.constant dense<0.000000e+00> : vector<16x64xf32>
    %85 = tpu.matmul %82, %84, %cst_38 {dimension_numbers = #tpu.dot_dimension_numbers<[1], [0], [0], [1], [0, 0, 1, 1], [], []>} : vector<16x16xbf16>, vector<16x64xbf16>, vector<16x64xf32> -> vector<16x64xf32>
    %86 = arith.addf %0, %85 : vector<16x64xf32>
    %87 = vector.broadcast %52 : vector<1x64xf32> to vector<16x64xf32>
    %88 = arith.addf %86, %87 : vector<16x64xf32>
    %c0_39 = arith.constant 0 : index
    %c0_40 = arith.constant 0 : index
    %89 = vector.load %arg10[%c0_39, %c0_40] : memref<2x64xf32, #tpu.memory_space<vmem>>, vector<2x64xf32>
    %cst_41 = arith.constant dense<0.000000e+00> : vector<16xf32>
    %90 = vector.multi_reduction <add>, %88, %cst_41 [1] : vector<16x64xf32> to vector<16xf32>
    %91 = vector.shape_cast %90 : vector<16xf32> to vector<16x1xf32>
    %92 = arith.mulf %88, %88 : vector<16x64xf32>
    %cst_42 = arith.constant dense<0.000000e+00> : vector<16xf32>
    %93 = vector.multi_reduction <add>, %92, %cst_42 [1] : vector<16x64xf32> to vector<16xf32>
    %94 = vector.shape_cast %93 : vector<16xf32> to vector<16x1xf32>
    %cst_43 = arith.constant 6.400000e+01 : f32
    %95 = vector.broadcast %cst_43 : f32 to vector<16x1xf32>
    %96 = arith.divf %91, %95 : vector<16x1xf32>
    %cst_44 = arith.constant 6.400000e+01 : f32
    %97 = vector.broadcast %cst_44 : f32 to vector<16x1xf32>
    %98 = arith.divf %94, %97 : vector<16x1xf32>
    %99 = arith.mulf %96, %96 : vector<16x1xf32>
    %100 = arith.subf %98, %99 : vector<16x1xf32>
    %cst_45 = arith.constant 9.99999974E-6 : f32
    %101 = vector.broadcast %cst_45 : f32 to vector<16x1xf32>
    %102 = arith.addf %100, %101 : vector<16x1xf32>
    %103 = math.rsqrt %102 : vector<16x1xf32>
    %104 = vector.broadcast %96 : vector<16x1xf32> to vector<16x64xf32>
    %105 = arith.subf %88, %104 : vector<16x64xf32>
    %106 = vector.broadcast %103 : vector<16x1xf32> to vector<16x64xf32>
    %107 = arith.mulf %105, %106 : vector<16x64xf32>
    %108 = vector.extract_strided_slice %89 {offsets = [0, 0], sizes = [1, 64], strides = [1, 1]} : vector<2x64xf32> to vector<1x64xf32>
    %109 = vector.broadcast %108 : vector<1x64xf32> to vector<16x64xf32>
    %110 = arith.mulf %107, %109 : vector<16x64xf32>
    %111 = vector.extract_strided_slice %89 {offsets = [1, 0], sizes = [1, 64], strides = [1, 1]} : vector<2x64xf32> to vector<1x64xf32>
    %112 = vector.broadcast %111 : vector<1x64xf32> to vector<16x64xf32>
    %113 = arith.addf %110, %112 : vector<16x64xf32>
    %114 = arith.truncf %113 : vector<16x64xf32> to vector<16x64xbf16>
    %c0_46 = arith.constant 0 : index
    %c0_47 = arith.constant 0 : index
    %115 = vector.load %arg11[%c0_46, %c0_47] : memref<64x256xbf16, #tpu.memory_space<vmem>>, vector<64x256xbf16>
    %cst_48 = arith.constant dense<0.000000e+00> : vector<16x256xf32>
    %116 = tpu.matmul %114, %115, %cst_48 {dimension_numbers = #tpu.dot_dimension_numbers<[1], [0], [0], [1], [0, 0, 1, 1], [], []>} : vector<16x64xbf16>, vector<64x256xbf16>, vector<16x256xf32> -> vector<16x256xf32>
    %c0_49 = arith.constant 0 : index
    %c0_50 = arith.constant 0 : index
    %117 = vector.load %arg12[%c0_49, %c0_50] : memref<1x256xf32, #tpu.memory_space<vmem>>, vector<1x256xf32>
    %118 = vector.broadcast %117 : vector<1x256xf32> to vector<16x256xf32>
    %119 = arith.addf %116, %118 : vector<16x256xf32>
    %c0_51 = arith.constant 0 : index
    %c0_52 = arith.constant 0 : index
    %120 = vector.load %arg13[%c0_51, %c0_52] : memref<64x256xbf16, #tpu.memory_space<vmem>>, vector<64x256xbf16>
    %cst_53 = arith.constant dense<0.000000e+00> : vector<16x256xf32>
    %121 = tpu.matmul %114, %120, %cst_53 {dimension_numbers = #tpu.dot_dimension_numbers<[1], [0], [0], [1], [0, 0, 1, 1], [], []>} : vector<16x64xbf16>, vector<64x256xbf16>, vector<16x256xf32> -> vector<16x256xf32>
    %c0_54 = arith.constant 0 : index
    %c0_55 = arith.constant 0 : index
    %122 = vector.load %arg14[%c0_54, %c0_55] : memref<1x256xf32, #tpu.memory_space<vmem>>, vector<1x256xf32>
    %123 = vector.broadcast %122 : vector<1x256xf32> to vector<16x256xf32>
    %124 = arith.addf %121, %123 : vector<16x256xf32>
    %125 = arith.mulf %124, %124 : vector<16x256xf32>
    %126 = arith.mulf %124, %125 : vector<16x256xf32>
    %cst_56 = arith.constant 4.471500e-02 : f32
    %127 = vector.broadcast %cst_56 : f32 to vector<16x256xf32>
    %128 = arith.mulf %127, %126 : vector<16x256xf32>
    %129 = arith.addf %124, %128 : vector<16x256xf32>
    %cst_57 = arith.constant 0.797884583 : f32
    %130 = vector.broadcast %cst_57 : f32 to vector<16x256xf32>
    %131 = arith.mulf %130, %129 : vector<16x256xf32>
    %132 = math.tanh %131 : vector<16x256xf32>
    %cst_58 = arith.constant 1.000000e+00 : f32
    %133 = vector.broadcast %cst_58 : f32 to vector<16x256xf32>
    %134 = arith.addf %133, %132 : vector<16x256xf32>
    %cst_59 = arith.constant 5.000000e-01 : f32
    %135 = vector.broadcast %cst_59 : f32 to vector<16x256xf32>
    %136 = arith.mulf %135, %134 : vector<16x256xf32>
    %137 = arith.mulf %124, %136 : vector<16x256xf32>
    %138 = arith.mulf %119, %137 : vector<16x256xf32>
    %139 = arith.truncf %138 : vector<16x256xf32> to vector<16x256xbf16>
    %c0_60 = arith.constant 0 : index
    %c0_61 = arith.constant 0 : index
    %140 = vector.load %arg15[%c0_60, %c0_61] : memref<256x64xbf16, #tpu.memory_space<vmem>>, vector<256x64xbf16>
    %cst_62 = arith.constant dense<0.000000e+00> : vector<16x64xf32>
    %141 = tpu.matmul %139, %140, %cst_62 {dimension_numbers = #tpu.dot_dimension_numbers<[1], [0], [0], [1], [0, 0, 1, 1], [], []>} : vector<16x256xbf16>, vector<256x64xbf16>, vector<16x64xf32> -> vector<16x64xf32>
    %c0_63 = arith.constant 0 : index
    %c0_64 = arith.constant 0 : index
    %142 = vector.load %arg16[%c0_63, %c0_64] : memref<1x64xf32, #tpu.memory_space<vmem>>, vector<1x64xf32>
    %143 = vector.broadcast %142 : vector<1x64xf32> to vector<16x64xf32>
    %144 = arith.addf %141, %143 : vector<16x64xf32>
    %145 = arith.addf %88, %144 : vector<16x64xf32>
    %c0_65 = arith.constant 0 : index
    %c0_66 = arith.constant 0 : index
    %146 = vector.load %arg17[%c0_65, %c0_66] : memref<2x64xf32, #tpu.memory_space<vmem>>, vector<2x64xf32>
    %cst_67 = arith.constant dense<0.000000e+00> : vector<16xf32>
    %147 = vector.multi_reduction <add>, %145, %cst_67 [1] : vector<16x64xf32> to vector<16xf32>
    %148 = vector.shape_cast %147 : vector<16xf32> to vector<16x1xf32>
    %149 = arith.mulf %145, %145 : vector<16x64xf32>
    %cst_68 = arith.constant dense<0.000000e+00> : vector<16xf32>
    %150 = vector.multi_reduction <add>, %149, %cst_68 [1] : vector<16x64xf32> to vector<16xf32>
    %151 = vector.shape_cast %150 : vector<16xf32> to vector<16x1xf32>
    %cst_69 = arith.constant 6.400000e+01 : f32
    %152 = vector.broadcast %cst_69 : f32 to vector<16x1xf32>
    %153 = arith.divf %148, %152 : vector<16x1xf32>
    %cst_70 = arith.constant 6.400000e+01 : f32
    %154 = vector.broadcast %cst_70 : f32 to vector<16x1xf32>
    %155 = arith.divf %151, %154 : vector<16x1xf32>
    %156 = arith.mulf %153, %153 : vector<16x1xf32>
    %157 = arith.subf %155, %156 : vector<16x1xf32>
    %cst_71 = arith.constant 9.99999974E-6 : f32
    %158 = vector.broadcast %cst_71 : f32 to vector<16x1xf32>
    %159 = arith.addf %157, %158 : vector<16x1xf32>
    %160 = math.rsqrt %159 : vector<16x1xf32>
    %161 = vector.broadcast %153 : vector<16x1xf32> to vector<16x64xf32>
    %162 = arith.subf %145, %161 : vector<16x64xf32>
    %163 = vector.broadcast %160 : vector<16x1xf32> to vector<16x64xf32>
    %164 = arith.mulf %162, %163 : vector<16x64xf32>
    %165 = vector.extract_strided_slice %146 {offsets = [0, 0], sizes = [1, 64], strides = [1, 1]} : vector<2x64xf32> to vector<1x64xf32>
    %166 = vector.broadcast %165 : vector<1x64xf32> to vector<16x64xf32>
    %167 = arith.mulf %164, %166 : vector<16x64xf32>
    %168 = vector.extract_strided_slice %146 {offsets = [1, 0], sizes = [1, 64], strides = [1, 1]} : vector<2x64xf32> to vector<1x64xf32>
    %169 = vector.broadcast %168 : vector<1x64xf32> to vector<16x64xf32>
    %170 = arith.addf %167, %169 : vector<16x64xf32>
    %c0_72 = arith.constant 0 : index
    %c0_73 = arith.constant 0 : index
    %171 = vector.load %arg22[%c0_72, %c0_73] : memref<1x64xf32, #tpu.memory_space<vmem>>, vector<1x64xf32>
    %172 = arith.truncf %170 : vector<16x64xf32> to vector<16x64xbf16>
    %173 = arith.truncf %170 : vector<16x64xf32> to vector<16x64xbf16>
    %c0_74 = arith.constant 0 : index
    %c0_75 = arith.constant 0 : index
    %c0_76 = arith.constant 0 : index
    %174 = vector.load %arg18[%c0_74, %c0_75, %c0_76] : memref<2x64x16xbf16, #tpu.memory_space<vmem>>, vector<1x64x16xbf16>
    %175 = vector.shape_cast %174 : vector<1x64x16xbf16> to vector<64x16xbf16>
    %cst_77 = arith.constant dense<0.000000e+00> : vector<16x16xf32>
    %176 = tpu.matmul %172, %175, %cst_77 {dimension_numbers = #tpu.dot_dimension_numbers<[1], [0], [0], [1], [0, 0, 1, 1], [], []>} : vector<16x64xbf16>, vector<64x16xbf16>, vector<16x16xf32> -> vector<16x16xf32>
    %c0_78 = arith.constant 0 : index
    %c0_79 = arith.constant 0 : index
    %c0_80 = arith.constant 0 : index
    %177 = vector.load %arg19[%c0_78, %c0_79, %c0_80] : memref<2x64x16xbf16, #tpu.memory_space<vmem>>, vector<1x64x16xbf16>
    %178 = vector.shape_cast %177 : vector<1x64x16xbf16> to vector<64x16xbf16>
    %cst_81 = arith.constant dense<0.000000e+00> : vector<16x16xf32>
    %179 = tpu.matmul %173, %178, %cst_81 {dimension_numbers = #tpu.dot_dimension_numbers<[1], [0], [0], [1], [0, 0, 1, 1], [], []>} : vector<16x64xbf16>, vector<64x16xbf16>, vector<16x16xf32> -> vector<16x16xf32>
    %c0_82 = arith.constant 0 : index
    %c0_83 = arith.constant 0 : index
    %c0_84 = arith.constant 0 : index
    %180 = vector.load %arg20[%c0_82, %c0_83, %c0_84] : memref<2x64x16xbf16, #tpu.memory_space<vmem>>, vector<1x64x16xbf16>
    %181 = vector.shape_cast %180 : vector<1x64x16xbf16> to vector<64x16xbf16>
    %cst_85 = arith.constant dense<0.000000e+00> : vector<16x16xf32>
    %182 = tpu.matmul %173, %181, %cst_85 {dimension_numbers = #tpu.dot_dimension_numbers<[1], [0], [0], [1], [0, 0, 1, 1], [], []>} : vector<16x64xbf16>, vector<64x16xbf16>, vector<16x16xf32> -> vector<16x16xf32>
    %183 = arith.truncf %176 : vector<16x16xf32> to vector<16x16xbf16>
    %184 = arith.truncf %179 : vector<16x16xf32> to vector<16x16xbf16>
    %cst_86 = arith.constant dense<0.000000e+00> : vector<16x16xf32>
    %185 = tpu.matmul %183, %184, %cst_86 {dimension_numbers = #tpu.dot_dimension_numbers<[1], [1], [0], [0], [0, 0, 1, 0], [], []>} : vector<16x16xbf16>, vector<16x16xbf16>, vector<16x16xf32> -> vector<16x16xf32>
    %cst_87 = arith.constant 2.500000e-01 : f32
    %186 = vector.broadcast %cst_87 : f32 to vector<16x16xf32>
    %187 = arith.mulf %185, %186 : vector<16x16xf32>
    %cst_88 = arith.constant dense<0xFF800000> : vector<16xf32>
    %188 = vector.multi_reduction <maximumf>, %187, %cst_88 [1] : vector<16x16xf32> to vector<16xf32>
    %189 = vector.shape_cast %188 : vector<16xf32> to vector<16x1xf32>
    %190 = vector.broadcast %189 : vector<16x1xf32> to vector<16x16xf32>
    %191 = arith.subf %187, %190 : vector<16x16xf32>
    %192 = math.exp %191 : vector<16x16xf32>
    %cst_89 = arith.constant dense<0.000000e+00> : vector<16xf32>
    %193 = vector.multi_reduction <add>, %192, %cst_89 [1] : vector<16x16xf32> to vector<16xf32>
    %194 = vector.shape_cast %193 : vector<16xf32> to vector<16x1xf32>
    %195 = tpu.reciprocal %194 {approx = true} : vector<16x1xf32> -> vector<16x1xf32>
    %196 = vector.broadcast %195 : vector<16x1xf32> to vector<16x16xf32>
    %197 = arith.mulf %192, %196 : vector<16x16xf32>
    %198 = arith.truncf %197 : vector<16x16xf32> to vector<16x16xbf16>
    %199 = arith.truncf %182 : vector<16x16xf32> to vector<16x16xbf16>
    %cst_90 = arith.constant dense<0.000000e+00> : vector<16x16xf32>
    %200 = tpu.matmul %198, %199, %cst_90 {dimension_numbers = #tpu.dot_dimension_numbers<[1], [0], [0], [1], [0, 0, 1, 1], [], []>} : vector<16x16xbf16>, vector<16x16xbf16>, vector<16x16xf32> -> vector<16x16xf32>
    %201 = arith.truncf %200 : vector<16x16xf32> to vector<16x16xbf16>
    %c0_91 = arith.constant 0 : index
    %c0_92 = arith.constant 0 : index
    %c0_93 = arith.constant 0 : index
    %202 = vector.load %arg21[%c0_91, %c0_92, %c0_93] : memref<2x16x64xbf16, #tpu.memory_space<vmem>>, vector<1x16x64xbf16>
    %203 = vector.shape_cast %202 : vector<1x16x64xbf16> to vector<16x64xbf16>
    %cst_94 = arith.constant dense<0.000000e+00> : vector<16x64xf32>
    %204 = tpu.matmul %201, %203, %cst_94 {dimension_numbers = #tpu.dot_dimension_numbers<[1], [0], [0], [1], [0, 0, 1, 1], [], []>} : vector<16x16xbf16>, vector<16x64xbf16>, vector<16x64xf32> -> vector<16x64xf32>
    %c1 = arith.constant 1 : index
    %c0_95 = arith.constant 0 : index
    %c0_96 = arith.constant 0 : index
    %205 = vector.load %arg18[%c1, %c0_95, %c0_96] : memref<2x64x16xbf16, #tpu.memory_space<vmem>>, vector<1x64x16xbf16>
    %206 = vector.shape_cast %205 : vector<1x64x16xbf16> to vector<64x16xbf16>
    %cst_97 = arith.constant dense<0.000000e+00> : vector<16x16xf32>
    %207 = tpu.matmul %172, %206, %cst_97 {dimension_numbers = #tpu.dot_dimension_numbers<[1], [0], [0], [1], [0, 0, 1, 1], [], []>} : vector<16x64xbf16>, vector<64x16xbf16>, vector<16x16xf32> -> vector<16x16xf32>
    %c1_98 = arith.constant 1 : index
    %c0_99 = arith.constant 0 : index
    %c0_100 = arith.constant 0 : index
    %208 = vector.load %arg19[%c1_98, %c0_99, %c0_100] : memref<2x64x16xbf16, #tpu.memory_space<vmem>>, vector<1x64x16xbf16>
    %209 = vector.shape_cast %208 : vector<1x64x16xbf16> to vector<64x16xbf16>
    %cst_101 = arith.constant dense<0.000000e+00> : vector<16x16xf32>
    %210 = tpu.matmul %173, %209, %cst_101 {dimension_numbers = #tpu.dot_dimension_numbers<[1], [0], [0], [1], [0, 0, 1, 1], [], []>} : vector<16x64xbf16>, vector<64x16xbf16>, vector<16x16xf32> -> vector<16x16xf32>
    %c1_102 = arith.constant 1 : index
    %c0_103 = arith.constant 0 : index
    %c0_104 = arith.constant 0 : index
    %211 = vector.load %arg20[%c1_102, %c0_103, %c0_104] : memref<2x64x16xbf16, #tpu.memory_space<vmem>>, vector<1x64x16xbf16>
    %212 = vector.shape_cast %211 : vector<1x64x16xbf16> to vector<64x16xbf16>
    %cst_105 = arith.constant dense<0.000000e+00> : vector<16x16xf32>
    %213 = tpu.matmul %173, %212, %cst_105 {dimension_numbers = #tpu.dot_dimension_numbers<[1], [0], [0], [1], [0, 0, 1, 1], [], []>} : vector<16x64xbf16>, vector<64x16xbf16>, vector<16x16xf32> -> vector<16x16xf32>
    %214 = arith.truncf %207 : vector<16x16xf32> to vector<16x16xbf16>
    %215 = arith.truncf %210 : vector<16x16xf32> to vector<16x16xbf16>
    %cst_106 = arith.constant dense<0.000000e+00> : vector<16x16xf32>
    %216 = tpu.matmul %214, %215, %cst_106 {dimension_numbers = #tpu.dot_dimension_numbers<[1], [1], [0], [0], [0, 0, 1, 0], [], []>} : vector<16x16xbf16>, vector<16x16xbf16>, vector<16x16xf32> -> vector<16x16xf32>
    %cst_107 = arith.constant 2.500000e-01 : f32
    %217 = vector.broadcast %cst_107 : f32 to vector<16x16xf32>
    %218 = arith.mulf %216, %217 : vector<16x16xf32>
    %cst_108 = arith.constant dense<0xFF800000> : vector<16xf32>
    %219 = vector.multi_reduction <maximumf>, %218, %cst_108 [1] : vector<16x16xf32> to vector<16xf32>
    %220 = vector.shape_cast %219 : vector<16xf32> to vector<16x1xf32>
    %221 = vector.broadcast %220 : vector<16x1xf32> to vector<16x16xf32>
    %222 = arith.subf %218, %221 : vector<16x16xf32>
    %223 = math.exp %222 : vector<16x16xf32>
    %cst_109 = arith.constant dense<0.000000e+00> : vector<16xf32>
    %224 = vector.multi_reduction <add>, %223, %cst_109 [1] : vector<16x16xf32> to vector<16xf32>
    %225 = vector.shape_cast %224 : vector<16xf32> to vector<16x1xf32>
    %226 = tpu.reciprocal %225 {approx = true} : vector<16x1xf32> -> vector<16x1xf32>
    %227 = vector.broadcast %226 : vector<16x1xf32> to vector<16x16xf32>
    %228 = arith.mulf %223, %227 : vector<16x16xf32>
    %229 = arith.truncf %228 : vector<16x16xf32> to vector<16x16xbf16>
    %230 = arith.truncf %213 : vector<16x16xf32> to vector<16x16xbf16>
    %cst_110 = arith.constant dense<0.000000e+00> : vector<16x16xf32>
    %231 = tpu.matmul %229, %230, %cst_110 {dimension_numbers = #tpu.dot_dimension_numbers<[1], [0], [0], [1], [0, 0, 1, 1], [], []>} : vector<16x16xbf16>, vector<16x16xbf16>, vector<16x16xf32> -> vector<16x16xf32>
    %232 = arith.truncf %231 : vector<16x16xf32> to vector<16x16xbf16>
    %c1_111 = arith.constant 1 : index
    %c0_112 = arith.constant 0 : index
    %c0_113 = arith.constant 0 : index
    %233 = vector.load %arg21[%c1_111, %c0_112, %c0_113] : memref<2x16x64xbf16, #tpu.memory_space<vmem>>, vector<1x16x64xbf16>
    %234 = vector.shape_cast %233 : vector<1x16x64xbf16> to vector<16x64xbf16>
    %cst_114 = arith.constant dense<0.000000e+00> : vector<16x64xf32>
    %235 = tpu.matmul %232, %234, %cst_114 {dimension_numbers = #tpu.dot_dimension_numbers<[1], [0], [0], [1], [0, 0, 1, 1], [], []>} : vector<16x16xbf16>, vector<16x64xbf16>, vector<16x64xf32> -> vector<16x64xf32>
    %236 = arith.addf %204, %235 : vector<16x64xf32>
    %237 = arith.addf %145, %236 : vector<16x64xf32>
    %238 = vector.broadcast %171 : vector<1x64xf32> to vector<16x64xf32>
    %239 = arith.addf %237, %238 : vector<16x64xf32>
    %c0_115 = arith.constant 0 : index
    %c0_116 = arith.constant 0 : index
    %240 = vector.load %arg23[%c0_115, %c0_116] : memref<2x64xf32, #tpu.memory_space<vmem>>, vector<2x64xf32>
    %cst_117 = arith.constant dense<0.000000e+00> : vector<16xf32>
    %241 = vector.multi_reduction <add>, %239, %cst_117 [1] : vector<16x64xf32> to vector<16xf32>
    %242 = vector.shape_cast %241 : vector<16xf32> to vector<16x1xf32>
    %243 = arith.mulf %239, %239 : vector<16x64xf32>
    %cst_118 = arith.constant dense<0.000000e+00> : vector<16xf32>
    %244 = vector.multi_reduction <add>, %243, %cst_118 [1] : vector<16x64xf32> to vector<16xf32>
    %245 = vector.shape_cast %244 : vector<16xf32> to vector<16x1xf32>
    %cst_119 = arith.constant 6.400000e+01 : f32
    %246 = vector.broadcast %cst_119 : f32 to vector<16x1xf32>
    %247 = arith.divf %242, %246 : vector<16x1xf32>
    %cst_120 = arith.constant 6.400000e+01 : f32
    %248 = vector.broadcast %cst_120 : f32 to vector<16x1xf32>
    %249 = arith.divf %245, %248 : vector<16x1xf32>
    %250 = arith.mulf %247, %247 : vector<16x1xf32>
    %251 = arith.subf %249, %250 : vector<16x1xf32>
    %cst_121 = arith.constant 9.99999974E-6 : f32
    %252 = vector.broadcast %cst_121 : f32 to vector<16x1xf32>
    %253 = arith.addf %251, %252 : vector<16x1xf32>
    %254 = math.rsqrt %253 : vector<16x1xf32>
    %255 = vector.broadcast %247 : vector<16x1xf32> to vector<16x64xf32>
    %256 = arith.subf %239, %255 : vector<16x64xf32>
    %257 = vector.broadcast %254 : vector<16x1xf32> to vector<16x64xf32>
    %258 = arith.mulf %256, %257 : vector<16x64xf32>
    %259 = vector.extract_strided_slice %240 {offsets = [0, 0], sizes = [1, 64], strides = [1, 1]} : vector<2x64xf32> to vector<1x64xf32>
    %260 = vector.broadcast %259 : vector<1x64xf32> to vector<16x64xf32>
    %261 = arith.mulf %258, %260 : vector<16x64xf32>
    %262 = vector.extract_strided_slice %240 {offsets = [1, 0], sizes = [1, 64], strides = [1, 1]} : vector<2x64xf32> to vector<1x64xf32>
    %263 = vector.broadcast %262 : vector<1x64xf32> to vector<16x64xf32>
    %264 = arith.addf %261, %263 : vector<16x64xf32>
    %265 = arith.truncf %264 : vector<16x64xf32> to vector<16x64xbf16>
    %c0_122 = arith.constant 0 : index
    %c0_123 = arith.constant 0 : index
    %266 = vector.load %arg24[%c0_122, %c0_123] : memref<64x256xbf16, #tpu.memory_space<vmem>>, vector<64x256xbf16>
    %cst_124 = arith.constant dense<0.000000e+00> : vector<16x256xf32>
    %267 = tpu.matmul %265, %266, %cst_124 {dimension_numbers = #tpu.dot_dimension_numbers<[1], [0], [0], [1], [0, 0, 1, 1], [], []>} : vector<16x64xbf16>, vector<64x256xbf16>, vector<16x256xf32> -> vector<16x256xf32>
    %c0_125 = arith.constant 0 : index
    %c0_126 = arith.constant 0 : index
    %268 = vector.load %arg25[%c0_125, %c0_126] : memref<1x256xf32, #tpu.memory_space<vmem>>, vector<1x256xf32>
    %269 = vector.broadcast %268 : vector<1x256xf32> to vector<16x256xf32>
    %270 = arith.addf %267, %269 : vector<16x256xf32>
    %c0_127 = arith.constant 0 : index
    %c0_128 = arith.constant 0 : index
    %271 = vector.load %arg26[%c0_127, %c0_128] : memref<64x256xbf16, #tpu.memory_space<vmem>>, vector<64x256xbf16>
    %cst_129 = arith.constant dense<0.000000e+00> : vector<16x256xf32>
    %272 = tpu.matmul %265, %271, %cst_129 {dimension_numbers = #tpu.dot_dimension_numbers<[1], [0], [0], [1], [0, 0, 1, 1], [], []>} : vector<16x64xbf16>, vector<64x256xbf16>, vector<16x256xf32> -> vector<16x256xf32>
    %c0_130 = arith.constant 0 : index
    %c0_131 = arith.constant 0 : index
    %273 = vector.load %arg27[%c0_130, %c0_131] : memref<1x256xf32, #tpu.memory_space<vmem>>, vector<1x256xf32>
    %274 = vector.broadcast %273 : vector<1x256xf32> to vector<16x256xf32>
    %275 = arith.addf %272, %274 : vector<16x256xf32>
    %276 = arith.mulf %275, %275 : vector<16x256xf32>
    %277 = arith.mulf %275, %276 : vector<16x256xf32>
    %cst_132 = arith.constant 4.471500e-02 : f32
    %278 = vector.broadcast %cst_132 : f32 to vector<16x256xf32>
    %279 = arith.mulf %278, %277 : vector<16x256xf32>
    %280 = arith.addf %275, %279 : vector<16x256xf32>
    %cst_133 = arith.constant 0.797884583 : f32
    %281 = vector.broadcast %cst_133 : f32 to vector<16x256xf32>
    %282 = arith.mulf %281, %280 : vector<16x256xf32>
    %283 = math.tanh %282 : vector<16x256xf32>
    %cst_134 = arith.constant 1.000000e+00 : f32
    %284 = vector.broadcast %cst_134 : f32 to vector<16x256xf32>
    %285 = arith.addf %284, %283 : vector<16x256xf32>
    %cst_135 = arith.constant 5.000000e-01 : f32
    %286 = vector.broadcast %cst_135 : f32 to vector<16x256xf32>
    %287 = arith.mulf %286, %285 : vector<16x256xf32>
    %288 = arith.mulf %275, %287 : vector<16x256xf32>
    %289 = arith.mulf %270, %288 : vector<16x256xf32>
    %290 = arith.truncf %289 : vector<16x256xf32> to vector<16x256xbf16>
    %c0_136 = arith.constant 0 : index
    %c0_137 = arith.constant 0 : index
    %291 = vector.load %arg28[%c0_136, %c0_137] : memref<256x64xbf16, #tpu.memory_space<vmem>>, vector<256x64xbf16>
    %cst_138 = arith.constant dense<0.000000e+00> : vector<16x64xf32>
    %292 = tpu.matmul %290, %291, %cst_138 {dimension_numbers = #tpu.dot_dimension_numbers<[1], [0], [0], [1], [0, 0, 1, 1], [], []>} : vector<16x256xbf16>, vector<256x64xbf16>, vector<16x64xf32> -> vector<16x64xf32>
    %c0_139 = arith.constant 0 : index
    %c0_140 = arith.constant 0 : index
    %293 = vector.load %arg29[%c0_139, %c0_140] : memref<1x64xf32, #tpu.memory_space<vmem>>, vector<1x64xf32>
    %294 = vector.broadcast %293 : vector<1x64xf32> to vector<16x64xf32>
    %295 = arith.addf %292, %294 : vector<16x64xf32>
    %296 = arith.addf %239, %295 : vector<16x64xf32>
    %c0_141 = arith.constant 0 : index
    %c0_142 = arith.constant 0 : index
    %297 = vector.load %arg30[%c0_141, %c0_142] : memref<16x64xf32, #tpu.memory_space<vmem>>, vector<16x64xf32>
    tpu.vector_store %arg30[%c0_141, %c0_142], %296 {strides = array<i32>} : memref<16x64xf32, #tpu.memory_space<vmem>>, vector<16x64xf32>,
    return
  }
  func.func @transform_0(%arg0: i32) -> (i32, i32) {
    %c0_i32 = arith.constant 0 : i32
    %c0_i32_0 = arith.constant 0 : i32
    %c0_i32_1 = arith.constant 0 : i32
    return %c0_i32, %c0_i32_0 : i32, i32
  }
  func.func @transform_1(%arg0: i32) -> (i32, i32) {
    %c0_i32 = arith.constant 0 : i32
    %c0_i32_0 = arith.constant 0 : i32
    %c0_i32_1 = arith.constant 0 : i32
    return %c0_i32, %c0_i32_0 : i32, i32
  }
  func.func @transform_2(%arg0: i32) -> (i32, i32) {
    %c0_i32 = arith.constant 0 : i32
    %c0_i32_0 = arith.constant 0 : i32
    %c0_i32_1 = arith.constant 0 : i32
    return %c0_i32, %c0_i32_0 : i32, i32
  }
  func.func @transform_3(%arg0: i32) -> (i32, i32) {
    %c0_i32 = arith.constant 0 : i32
    %c0_i32_0 = arith.constant 0 : i32
    %c0_i32_1 = arith.constant 0 : i32
    return %c0_i32, %c0_i32_0 : i32, i32
  }
  func.func @transform_4(%arg0: i32) -> (i32, i32, i32) {
    %c0_i32 = arith.constant 0 : i32
    %c0_i32_0 = arith.constant 0 : i32
    %c0_i32_1 = arith.constant 0 : i32
    %c0_i32_2 = arith.constant 0 : i32
    return %c0_i32, %c0_i32_0, %c0_i32_1 : i32, i32, i32
  }
  func.func @transform_5(%arg0: i32) -> (i32, i32, i32) {
    %c0_i32 = arith.constant 0 : i32
    %c0_i32_0 = arith.constant 0 : i32
    %c0_i32_1 = arith.constant 0 : i32
    %c0_i32_2 = arith.constant 0 : i32
    return %c0_i32, %c0_i32_0, %c0_i32_1 : i32, i32, i32
  }
  func.func @transform_6(%arg0: i32) -> (i32, i32, i32) {
    %c0_i32 = arith.constant 0 : i32
    %c0_i32_0 = arith.constant 0 : i32
    %c0_i32_1 = arith.constant 0 : i32
    %c0_i32_2 = arith.constant 0 : i32
    return %c0_i32, %c0_i32_0, %c0_i32_1 : i32, i32, i32
  }
  func.func @transform_7(%arg0: i32) -> (i32, i32, i32) {
    %c0_i32 = arith.constant 0 : i32
    %c0_i32_0 = arith.constant 0 : i32
    %c0_i32_1 = arith.constant 0 : i32
    %c0_i32_2 = arith.constant 0 : i32
    return %c0_i32, %c0_i32_0, %c0_i32_1 : i32, i32, i32
  }
  func.func @transform_8(%arg0: i32) -> (i32, i32) {
    %c0_i32 = arith.constant 0 : i32
    %c0_i32_0 = arith.constant 0 : i32
    %c0_i32_1 = arith.constant 0 : i32
    return %c0_i32, %c0_i32_0 : i32, i32
  }
  func.func @transform_9(%arg0: i32) -> (i32, i32) {
    %c0_i32 = arith.constant 0 : i32
    %c0_i32_0 = arith.constant 0 : i32
    %c0_i32_1 = arith.constant 0 : i32
    return %c0_i32, %c0_i32_0 : i32, i32
  }
  func.func @transform_10(%arg0: i32) -> (i32, i32) {
    %c0_i32 = arith.constant 0 : i32
    %c0_i32_0 = arith.constant 0 : i32
    %c0_i32_1 = arith.constant 0 : i32
    return %c0_i32, %c0_i32_0 : i32, i32
  }
  func.func @transform_11(%arg0: i32) -> (i32, i32) {
    %c0_i32 = arith.constant 0 : i32
    %c0_i32_0 = arith.constant 0 : i32
    %c0_i32_1 = arith.constant 0 : i32
    return %c0_i32, %c0_i32_0 : i32, i32
  }
  func.func @transform_12(%arg0: i32) -> (i32, i32) {
    %c0_i32 = arith.constant 0 : i32
    %c0_i32_0 = arith.constant 0 : i32
    %c0_i32_1 = arith.constant 0 : i32
    return %c0_i32, %c0_i32_0 : i32, i32
  }
  func.func @transform_13(%arg0: i32) -> (i32, i32) {
    %c0_i32 = arith.constant 0 : i32
    %c0_i32_0 = arith.constant 0 : i32
    %c0_i32_1 = arith.constant 0 : i32
    return %c0_i32, %c0_i32_0 : i32, i32
  }
  func.func @transform_14(%arg0: i32) -> (i32, i32) {
    %c0_i32 = arith.constant 0 : i32
    %c0_i32_0 = arith.constant 0 : i32
    %c0_i32_1 = arith.constant 0 : i32
    return %c0_i32, %c0_i32_0 : i32, i32
  }
  func.func @transform_15(%arg0: i32) -> (i32, i32) {
    %c0_i32 = arith.constant 0 : i32
    %c0_i32_0 = arith.constant 0 : i32
    %c0_i32_1 = arith.constant 0 : i32
    return %c0_i32, %c0_i32_0 : i32, i32
  }
  func.func @transform_16(%arg0: i32) -> (i32, i32) {
    %c0_i32 = arith.constant 0 : i32
    %c0_i32_0 = arith.constant 0 : i32
    %c0_i32_1 = arith.constant 0 : i32
    return %c0_i32, %c0_i32_0 : i32, i32
  }
  func.func @transform_17(%arg0: i32) -> (i32, i32, i32) {
    %c0_i32 = arith.constant 0 : i32
    %c0_i32_0 = arith.constant 0 : i32
    %c0_i32_1 = arith.constant 0 : i32
    %c0_i32_2 = arith.constant 0 : i32
    return %c0_i32, %c0_i32_0, %c0_i32_1 : i32, i32, i32
  }
  func.func @transform_18(%arg0: i32) -> (i32, i32, i32) {
    %c0_i32 = arith.constant 0 : i32
    %c0_i32_0 = arith.constant 0 : i32
    %c0_i32_1 = arith.constant 0 : i32
    %c0_i32_2 = arith.constant 0 : i32
    return %c0_i32, %c0_i32_0, %c0_i32_1 : i32, i32, i32
  }
  func.func @transform_19(%arg0: i32) -> (i32, i32, i32) {
    %c0_i32 = arith.constant 0 : i32
    %c0_i32_0 = arith.constant 0 : i32
    %c0_i32_1 = arith.constant 0 : i32
    %c0_i32_2 = arith.constant 0 : i32
    return %c0_i32, %c0_i32_0, %c0_i32_1 : i32, i32, i32
  }
  func.func @transform_20(%arg0: i32) -> (i32, i32, i32) {
    %c0_i32 = arith.constant 0 : i32
    %c0_i32_0 = arith.constant 0 : i32
    %c0_i32_1 = arith.constant 0 : i32
    %c0_i32_2 = arith.constant 0 : i32
    return %c0_i32, %c0_i32_0, %c0_i32_1 : i32, i32, i32
  }
  func.func @transform_21(%arg0: i32) -> (i32, i32) {
    %c0_i32 = arith.constant 0 : i32
    %c0_i32_0 = arith.constant 0 : i32
    %c0_i32_1 = arith.constant 0 : i32
    return %c0_i32, %c0_i32_0 : i32, i32
  }
  func.func @transform_22(%arg0: i32) -> (i32, i32) {
    %c0_i32 = arith.constant 0 : i32
    %c0_i32_0 = arith.constant 0 : i32
    %c0_i32_1 = arith.constant 0 : i32
    return %c0_i32, %c0_i32_0 : i32, i32
  }
  func.func @transform_23(%arg0: i32) -> (i32, i32) {
    %c0_i32 = arith.constant 0 : i32
    %c0_i32_0 = arith.constant 0 : i32
    %c0_i32_1 = arith.constant 0 : i32
    return %c0_i32, %c0_i32_0 : i32, i32
  }
  func.func @transform_24(%arg0: i32) -> (i32, i32) {
    %c0_i32 = arith.constant 0 : i32
    %c0_i32_0 = arith.constant 0 : i32
    %c0_i32_1 = arith.constant 0 : i32
    return %c0_i32, %c0_i32_0 : i32, i32
  }
  func.func @transform_25(%arg0: i32) -> (i32, i32) {
    %c0_i32 = arith.constant 0 : i32
    %c0_i32_0 = arith.constant 0 : i32
    %c0_i32_1 = arith.constant 0 : i32
    return %c0_i32, %c0_i32_0 : i32, i32
  }
  func.func @transform_26(%arg0: i32) -> (i32, i32) {
    %c0_i32 = arith.constant 0 : i32
    %c0_i32_0 = arith.constant 0 : i32
    %c0_i32_1 = arith.constant 0 : i32
    return %c0_i32, %c0_i32_0 : i32, i32
  }
  func.func @transform_27(%arg0: i32) -> (i32, i32) {
    %c0_i32 = arith.constant 0 : i32
    %c0_i32_0 = arith.constant 0 : i32
    %c0_i32_1 = arith.constant 0 : i32
    return %c0_i32, %c0_i32_0 : i32, i32
  }
  func.func @transform_28(%arg0: i32) -> (i32, i32) {
    %c0_i32 = arith.constant 0 : i32
    %c0_i32_0 = arith.constant 0 : i32
    %c0_i32_1 = arith.constant 0 : i32
    return %c0_i32, %c0_i32_0 : i32, i32
  }
  func.func @transform_29(%arg0: i32) -> (i32, i32) {
    %c0_i32 = arith.constant 0 : i32
    %c0_i32_0 = arith.constant 0 : i32
    %c0_i32_1 = arith.constant 0 : i32
    return %c0_i32, %c0_i32_0 : i32, i32
  }
}

module attributes {stable_mosaic.version = 11 : i64} {
  func.func @_coord_color_kernel(%arg0: i32, %arg1: i32, %arg2: memref<1x16x128xf32, #tpu.memory_space<vmem>>, %arg3: memref<16x64xf32, #tpu.memory_space<vmem>>, %arg4: memref<2x128xf32, #tpu.memory_space<vmem>>, %arg5: memref<2x64xf32, #tpu.memory_space<vmem>>, %arg6: memref<1x128x16xbf16, #tpu.memory_space<vmem>>, %arg7: memref<1x64x16xbf16, #tpu.memory_space<vmem>>, %arg8: memref<1x64x16xbf16, #tpu.memory_space<vmem>>, %arg9: memref<1x16x128xbf16, #tpu.memory_space<vmem>>, %arg10: memref<1x128xf32, #tpu.memory_space<vmem>>, %arg11: memref<2x128xf32, #tpu.memory_space<vmem>>, %arg12: memref<128x128xbf16, #tpu.memory_space<vmem>>, %arg13: memref<1x128xf32, #tpu.memory_space<vmem>>, %arg14: memref<128x128xbf16, #tpu.memory_space<vmem>>, %arg15: memref<1x128xf32, #tpu.memory_space<vmem>>, %arg16: memref<128x32xbf16, #tpu.memory_space<vmem>>, %arg17: memref<1x32xf32, #tpu.memory_space<vmem>>, %arg18: memref<32x32xbf16, #tpu.memory_space<vmem>>, %arg19: memref<1x32xf32, #tpu.memory_space<vmem>>, %arg20: memref<32x32xbf16, #tpu.memory_space<vmem>>, %arg21: memref<1x32xf32, #tpu.memory_space<vmem>>, %arg22: memref<32x128xbf16, #tpu.memory_space<vmem>>, %arg23: memref<1x128xf32, #tpu.memory_space<vmem>>, %arg24: memref<1x16x128xf32, #tpu.memory_space<vmem>>) attributes {dimension_semantics = [#tpu.dimension_semantics<parallel>, #tpu.dimension_semantics<parallel>], iteration_bounds = array<i64: 2, 1>, scalar_prefetch = 0 : i64, scratch_operands = 0 : i64, tpu.core_type = #tpu.core_type<tc>, window_params = [{transform_indices = @transform_0, window_bounds = array<i64: 1, 16, 128>}, {pipeline_mode = #tpu.pipeline_mode<synchronous>, transform_indices = @transform_1, window_bounds = array<i64: 16, 64>}, {pipeline_mode = #tpu.pipeline_mode<synchronous>, transform_indices = @transform_2, window_bounds = array<i64: 2, 128>}, {pipeline_mode = #tpu.pipeline_mode<synchronous>, transform_indices = @transform_3, window_bounds = array<i64: 2, 64>}, {pipeline_mode = #tpu.pipeline_mode<synchronous>, transform_indices = @transform_4, window_bounds = array<i64: 1, 128, 16>}, {pipeline_mode = #tpu.pipeline_mode<synchronous>, transform_indices = @transform_5, window_bounds = array<i64: 1, 64, 16>}, {pipeline_mode = #tpu.pipeline_mode<synchronous>, transform_indices = @transform_6, window_bounds = array<i64: 1, 64, 16>}, {pipeline_mode = #tpu.pipeline_mode<synchronous>, transform_indices = @transform_7, window_bounds = array<i64: 1, 16, 128>}, {pipeline_mode = #tpu.pipeline_mode<synchronous>, transform_indices = @transform_8, window_bounds = array<i64: 1, 128>}, {pipeline_mode = #tpu.pipeline_mode<synchronous>, transform_indices = @transform_9, window_bounds = array<i64: 2, 128>}, {pipeline_mode = #tpu.pipeline_mode<synchronous>, transform_indices = @transform_10, window_bounds = array<i64: 128, 128>}, {pipeline_mode = #tpu.pipeline_mode<synchronous>, transform_indices = @transform_11, window_bounds = array<i64: 1, 128>}, {pipeline_mode = #tpu.pipeline_mode<synchronous>, transform_indices = @transform_12, window_bounds = array<i64: 128, 128>}, {pipeline_mode = #tpu.pipeline_mode<synchronous>, transform_indices = @transform_13, window_bounds = array<i64: 1, 128>}, {pipeline_mode = #tpu.pipeline_mode<synchronous>, transform_indices = @transform_14, window_bounds = array<i64: 128, 32>}, {pipeline_mode = #tpu.pipeline_mode<synchronous>, transform_indices = @transform_15, window_bounds = array<i64: 1, 32>}, {pipeline_mode = #tpu.pipeline_mode<synchronous>, transform_indices = @transform_16, window_bounds = array<i64: 32, 32>}, {pipeline_mode = #tpu.pipeline_mode<synchronous>, transform_indices = @transform_17, window_bounds = array<i64: 1, 32>}, {pipeline_mode = #tpu.pipeline_mode<synchronous>, transform_indices = @transform_18, window_bounds = array<i64: 32, 32>}, {pipeline_mode = #tpu.pipeline_mode<synchronous>, transform_indices = @transform_19, window_bounds = array<i64: 1, 32>}, {pipeline_mode = #tpu.pipeline_mode<synchronous>, transform_indices = @transform_20, window_bounds = array<i64: 32, 128>}, {pipeline_mode = #tpu.pipeline_mode<synchronous>, transform_indices = @transform_21, window_bounds = array<i64: 1, 128>}, {transform_indices = @transform_22, window_bounds = array<i64: 1, 16, 128>}]} {
    %c0 = arith.constant 0 : index
    %c0_0 = arith.constant 0 : index
    %c0_1 = arith.constant 0 : index
    %0 = vector.load %arg2[%c0, %c0_0, %c0_1] : memref<1x16x128xf32, #tpu.memory_space<vmem>>, vector<1x16x128xf32>
    %1 = vector.shape_cast %0 : vector<1x16x128xf32> to vector<16x128xf32>
    %c0_2 = arith.constant 0 : index
    %c0_3 = arith.constant 0 : index
    %2 = vector.load %arg3[%c0_2, %c0_3] : memref<16x64xf32, #tpu.memory_space<vmem>>, vector<16x64xf32>
    %c0_4 = arith.constant 0 : index
    %c0_5 = arith.constant 0 : index
    %3 = vector.load %arg4[%c0_4, %c0_5] : memref<2x128xf32, #tpu.memory_space<vmem>>, vector<2x128xf32>
    %cst = arith.constant dense<0.000000e+00> : vector<16xf32>
    %4 = vector.multi_reduction <add>, %1, %cst [1] : vector<16x128xf32> to vector<16xf32>
    %5 = vector.shape_cast %4 : vector<16xf32> to vector<16x1xf32>
    %6 = arith.mulf %1, %1 : vector<16x128xf32>
    %cst_6 = arith.constant dense<0.000000e+00> : vector<16xf32>
    %7 = vector.multi_reduction <add>, %6, %cst_6 [1] : vector<16x128xf32> to vector<16xf32>
    %8 = vector.shape_cast %7 : vector<16xf32> to vector<16x1xf32>
    %cst_7 = arith.constant 4.100000e+01 : f32
    %9 = vector.broadcast %cst_7 : f32 to vector<16x1xf32>
    %10 = arith.divf %5, %9 : vector<16x1xf32>
    %cst_8 = arith.constant 4.100000e+01 : f32
    %11 = vector.broadcast %cst_8 : f32 to vector<16x1xf32>
    %12 = arith.divf %8, %11 : vector<16x1xf32>
    %13 = arith.mulf %10, %10 : vector<16x1xf32>
    %14 = arith.subf %12, %13 : vector<16x1xf32>
    %cst_9 = arith.constant 9.99999974E-6 : f32
    %15 = vector.broadcast %cst_9 : f32 to vector<16x1xf32>
    %16 = arith.addf %14, %15 : vector<16x1xf32>
    %17 = math.rsqrt %16 : vector<16x1xf32>
    %18 = vector.broadcast %10 : vector<16x1xf32> to vector<16x128xf32>
    %19 = arith.subf %1, %18 : vector<16x128xf32>
    %20 = vector.broadcast %17 : vector<16x1xf32> to vector<16x128xf32>
    %21 = arith.mulf %19, %20 : vector<16x128xf32>
    %22 = vector.extract_strided_slice %3 {offsets = [0, 0], sizes = [1, 128], strides = [1, 1]} : vector<2x128xf32> to vector<1x128xf32>
    %23 = vector.broadcast %22 : vector<1x128xf32> to vector<16x128xf32>
    %24 = arith.mulf %21, %23 : vector<16x128xf32>
    %25 = vector.extract_strided_slice %3 {offsets = [1, 0], sizes = [1, 128], strides = [1, 1]} : vector<2x128xf32> to vector<1x128xf32>
    %26 = vector.broadcast %25 : vector<1x128xf32> to vector<16x128xf32>
    %27 = arith.addf %24, %26 : vector<16x128xf32>
    %c0_10 = arith.constant 0 : index
    %c0_11 = arith.constant 0 : index
    %28 = vector.load %arg5[%c0_10, %c0_11] : memref<2x64xf32, #tpu.memory_space<vmem>>, vector<2x64xf32>
    %cst_12 = arith.constant dense<0.000000e+00> : vector<16xf32>
    %29 = vector.multi_reduction <add>, %2, %cst_12 [1] : vector<16x64xf32> to vector<16xf32>
    %30 = vector.shape_cast %29 : vector<16xf32> to vector<16x1xf32>
    %31 = arith.mulf %2, %2 : vector<16x64xf32>
    %cst_13 = arith.constant dense<0.000000e+00> : vector<16xf32>
    %32 = vector.multi_reduction <add>, %31, %cst_13 [1] : vector<16x64xf32> to vector<16xf32>
    %33 = vector.shape_cast %32 : vector<16xf32> to vector<16x1xf32>
    %cst_14 = arith.constant 6.400000e+01 : f32
    %34 = vector.broadcast %cst_14 : f32 to vector<16x1xf32>
    %35 = arith.divf %30, %34 : vector<16x1xf32>
    %cst_15 = arith.constant 6.400000e+01 : f32
    %36 = vector.broadcast %cst_15 : f32 to vector<16x1xf32>
    %37 = arith.divf %33, %36 : vector<16x1xf32>
    %38 = arith.mulf %35, %35 : vector<16x1xf32>
    %39 = arith.subf %37, %38 : vector<16x1xf32>
    %cst_16 = arith.constant 9.99999974E-6 : f32
    %40 = vector.broadcast %cst_16 : f32 to vector<16x1xf32>
    %41 = arith.addf %39, %40 : vector<16x1xf32>
    %42 = math.rsqrt %41 : vector<16x1xf32>
    %43 = vector.broadcast %35 : vector<16x1xf32> to vector<16x64xf32>
    %44 = arith.subf %2, %43 : vector<16x64xf32>
    %45 = vector.broadcast %42 : vector<16x1xf32> to vector<16x64xf32>
    %46 = arith.mulf %44, %45 : vector<16x64xf32>
    %47 = vector.extract_strided_slice %28 {offsets = [0, 0], sizes = [1, 64], strides = [1, 1]} : vector<2x64xf32> to vector<1x64xf32>
    %48 = vector.broadcast %47 : vector<1x64xf32> to vector<16x64xf32>
    %49 = arith.mulf %46, %48 : vector<16x64xf32>
    %50 = vector.extract_strided_slice %28 {offsets = [1, 0], sizes = [1, 64], strides = [1, 1]} : vector<2x64xf32> to vector<1x64xf32>
    %51 = vector.broadcast %50 : vector<1x64xf32> to vector<16x64xf32>
    %52 = arith.addf %49, %51 : vector<16x64xf32>
    %c0_17 = arith.constant 0 : index
    %c0_18 = arith.constant 0 : index
    %53 = vector.load %arg10[%c0_17, %c0_18] : memref<1x128xf32, #tpu.memory_space<vmem>>, vector<1x128xf32>
    %54 = arith.truncf %27 : vector<16x128xf32> to vector<16x128xbf16>
    %55 = arith.truncf %52 : vector<16x64xf32> to vector<16x64xbf16>
    %c0_19 = arith.constant 0 : index
    %c0_20 = arith.constant 0 : index
    %c0_21 = arith.constant 0 : index
    %56 = vector.load %arg6[%c0_19, %c0_20, %c0_21] : memref<1x128x16xbf16, #tpu.memory_space<vmem>>, vector<1x128x16xbf16>
    %57 = vector.shape_cast %56 : vector<1x128x16xbf16> to vector<128x16xbf16>
    %cst_22 = arith.constant dense<0.000000e+00> : vector<16x16xf32>
    %58 = tpu.matmul %54, %57, %cst_22 {dimension_numbers = #tpu.dot_dimension_numbers<[1], [0], [0], [1], [0, 0, 1, 1], [], []>} : vector<16x128xbf16>, vector<128x16xbf16>, vector<16x16xf32> -> vector<16x16xf32>
    %c0_23 = arith.constant 0 : index
    %c0_24 = arith.constant 0 : index
    %c0_25 = arith.constant 0 : index
    %59 = vector.load %arg7[%c0_23, %c0_24, %c0_25] : memref<1x64x16xbf16, #tpu.memory_space<vmem>>, vector<1x64x16xbf16>
    %60 = vector.shape_cast %59 : vector<1x64x16xbf16> to vector<64x16xbf16>
    %cst_26 = arith.constant dense<0.000000e+00> : vector<16x16xf32>
    %61 = tpu.matmul %55, %60, %cst_26 {dimension_numbers = #tpu.dot_dimension_numbers<[1], [0], [0], [1], [0, 0, 1, 1], [], []>} : vector<16x64xbf16>, vector<64x16xbf16>, vector<16x16xf32> -> vector<16x16xf32>
    %c0_27 = arith.constant 0 : index
    %c0_28 = arith.constant 0 : index
    %c0_29 = arith.constant 0 : index
    %62 = vector.load %arg8[%c0_27, %c0_28, %c0_29] : memref<1x64x16xbf16, #tpu.memory_space<vmem>>, vector<1x64x16xbf16>
    %63 = vector.shape_cast %62 : vector<1x64x16xbf16> to vector<64x16xbf16>
    %cst_30 = arith.constant dense<0.000000e+00> : vector<16x16xf32>
    %64 = tpu.matmul %55, %63, %cst_30 {dimension_numbers = #tpu.dot_dimension_numbers<[1], [0], [0], [1], [0, 0, 1, 1], [], []>} : vector<16x64xbf16>, vector<64x16xbf16>, vector<16x16xf32> -> vector<16x16xf32>
    %65 = arith.truncf %58 : vector<16x16xf32> to vector<16x16xbf16>
    %66 = arith.truncf %61 : vector<16x16xf32> to vector<16x16xbf16>
    %cst_31 = arith.constant dense<0.000000e+00> : vector<16x16xf32>
    %67 = tpu.matmul %65, %66, %cst_31 {dimension_numbers = #tpu.dot_dimension_numbers<[1], [1], [0], [0], [0, 0, 1, 0], [], []>} : vector<16x16xbf16>, vector<16x16xbf16>, vector<16x16xf32> -> vector<16x16xf32>
    %cst_32 = arith.constant 2.500000e-01 : f32
    %68 = vector.broadcast %cst_32 : f32 to vector<16x16xf32>
    %69 = arith.mulf %67, %68 : vector<16x16xf32>
    %cst_33 = arith.constant dense<0xFF800000> : vector<16xf32>
    %70 = vector.multi_reduction <maximumf>, %69, %cst_33 [1] : vector<16x16xf32> to vector<16xf32>
    %71 = vector.shape_cast %70 : vector<16xf32> to vector<16x1xf32>
    %72 = vector.broadcast %71 : vector<16x1xf32> to vector<16x16xf32>
    %73 = arith.subf %69, %72 : vector<16x16xf32>
    %74 = math.exp %73 : vector<16x16xf32>
    %cst_34 = arith.constant dense<0.000000e+00> : vector<16xf32>
    %75 = vector.multi_reduction <add>, %74, %cst_34 [1] : vector<16x16xf32> to vector<16xf32>
    %76 = vector.shape_cast %75 : vector<16xf32> to vector<16x1xf32>
    %77 = tpu.reciprocal %76 {approx = true} : vector<16x1xf32> -> vector<16x1xf32>
    %78 = vector.broadcast %77 : vector<16x1xf32> to vector<16x16xf32>
    %79 = arith.mulf %74, %78 : vector<16x16xf32>
    %80 = arith.truncf %79 : vector<16x16xf32> to vector<16x16xbf16>
    %81 = arith.truncf %64 : vector<16x16xf32> to vector<16x16xbf16>
    %cst_35 = arith.constant dense<0.000000e+00> : vector<16x16xf32>
    %82 = tpu.matmul %80, %81, %cst_35 {dimension_numbers = #tpu.dot_dimension_numbers<[1], [0], [0], [1], [0, 0, 1, 1], [], []>} : vector<16x16xbf16>, vector<16x16xbf16>, vector<16x16xf32> -> vector<16x16xf32>
    %83 = arith.truncf %82 : vector<16x16xf32> to vector<16x16xbf16>
    %c0_36 = arith.constant 0 : index
    %c0_37 = arith.constant 0 : index
    %c0_38 = arith.constant 0 : index
    %84 = vector.load %arg9[%c0_36, %c0_37, %c0_38] : memref<1x16x128xbf16, #tpu.memory_space<vmem>>, vector<1x16x128xbf16>
    %85 = vector.shape_cast %84 : vector<1x16x128xbf16> to vector<16x128xbf16>
    %cst_39 = arith.constant dense<0.000000e+00> : vector<16x128xf32>
    %86 = tpu.matmul %83, %85, %cst_39 {dimension_numbers = #tpu.dot_dimension_numbers<[1], [0], [0], [1], [0, 0, 1, 1], [], []>} : vector<16x16xbf16>, vector<16x128xbf16>, vector<16x128xf32> -> vector<16x128xf32>
    %87 = arith.addf %1, %86 : vector<16x128xf32>
    %88 = vector.broadcast %53 : vector<1x128xf32> to vector<16x128xf32>
    %89 = arith.addf %87, %88 : vector<16x128xf32>
    %c0_40 = arith.constant 0 : index
    %c0_41 = arith.constant 0 : index
    %90 = vector.load %arg11[%c0_40, %c0_41] : memref<2x128xf32, #tpu.memory_space<vmem>>, vector<2x128xf32>
    %cst_42 = arith.constant dense<0.000000e+00> : vector<16xf32>
    %91 = vector.multi_reduction <add>, %89, %cst_42 [1] : vector<16x128xf32> to vector<16xf32>
    %92 = vector.shape_cast %91 : vector<16xf32> to vector<16x1xf32>
    %93 = arith.mulf %89, %89 : vector<16x128xf32>
    %cst_43 = arith.constant dense<0.000000e+00> : vector<16xf32>
    %94 = vector.multi_reduction <add>, %93, %cst_43 [1] : vector<16x128xf32> to vector<16xf32>
    %95 = vector.shape_cast %94 : vector<16xf32> to vector<16x1xf32>
    %cst_44 = arith.constant 4.100000e+01 : f32
    %96 = vector.broadcast %cst_44 : f32 to vector<16x1xf32>
    %97 = arith.divf %92, %96 : vector<16x1xf32>
    %cst_45 = arith.constant 4.100000e+01 : f32
    %98 = vector.broadcast %cst_45 : f32 to vector<16x1xf32>
    %99 = arith.divf %95, %98 : vector<16x1xf32>
    %100 = arith.mulf %97, %97 : vector<16x1xf32>
    %101 = arith.subf %99, %100 : vector<16x1xf32>
    %cst_46 = arith.constant 9.99999974E-6 : f32
    %102 = vector.broadcast %cst_46 : f32 to vector<16x1xf32>
    %103 = arith.addf %101, %102 : vector<16x1xf32>
    %104 = math.rsqrt %103 : vector<16x1xf32>
    %105 = vector.broadcast %97 : vector<16x1xf32> to vector<16x128xf32>
    %106 = arith.subf %89, %105 : vector<16x128xf32>
    %107 = vector.broadcast %104 : vector<16x1xf32> to vector<16x128xf32>
    %108 = arith.mulf %106, %107 : vector<16x128xf32>
    %109 = vector.extract_strided_slice %90 {offsets = [0, 0], sizes = [1, 128], strides = [1, 1]} : vector<2x128xf32> to vector<1x128xf32>
    %110 = vector.broadcast %109 : vector<1x128xf32> to vector<16x128xf32>
    %111 = arith.mulf %108, %110 : vector<16x128xf32>
    %112 = vector.extract_strided_slice %90 {offsets = [1, 0], sizes = [1, 128], strides = [1, 1]} : vector<2x128xf32> to vector<1x128xf32>
    %113 = vector.broadcast %112 : vector<1x128xf32> to vector<16x128xf32>
    %114 = arith.addf %111, %113 : vector<16x128xf32>
    %115 = arith.truncf %114 : vector<16x128xf32> to vector<16x128xbf16>
    %c0_47 = arith.constant 0 : index
    %c0_48 = arith.constant 0 : index
    %116 = vector.load %arg12[%c0_47, %c0_48] : memref<128x128xbf16, #tpu.memory_space<vmem>>, vector<128x128xbf16>
    %cst_49 = arith.constant dense<0.000000e+00> : vector<16x128xf32>
    %117 = tpu.matmul %115, %116, %cst_49 {dimension_numbers = #tpu.dot_dimension_numbers<[1], [0], [0], [1], [0, 0, 1, 1], [], []>} : vector<16x128xbf16>, vector<128x128xbf16>, vector<16x128xf32> -> vector<16x128xf32>
    %c0_50 = arith.constant 0 : index
    %c0_51 = arith.constant 0 : index
    %118 = vector.load %arg13[%c0_50, %c0_51] : memref<1x128xf32, #tpu.memory_space<vmem>>, vector<1x128xf32>
    %119 = vector.broadcast %118 : vector<1x128xf32> to vector<16x128xf32>
    %120 = arith.addf %117, %119 : vector<16x128xf32>
    %121 = arith.mulf %120, %120 : vector<16x128xf32>
    %122 = arith.mulf %120, %121 : vector<16x128xf32>
    %cst_52 = arith.constant 4.471500e-02 : f32
    %123 = vector.broadcast %cst_52 : f32 to vector<16x128xf32>
    %124 = arith.mulf %123, %122 : vector<16x128xf32>
    %125 = arith.addf %120, %124 : vector<16x128xf32>
    %cst_53 = arith.constant 0.797884583 : f32
    %126 = vector.broadcast %cst_53 : f32 to vector<16x128xf32>
    %127 = arith.mulf %126, %125 : vector<16x128xf32>
    %128 = math.tanh %127 : vector<16x128xf32>
    %cst_54 = arith.constant 1.000000e+00 : f32
    %129 = vector.broadcast %cst_54 : f32 to vector<16x128xf32>
    %130 = arith.addf %129, %128 : vector<16x128xf32>
    %cst_55 = arith.constant 5.000000e-01 : f32
    %131 = vector.broadcast %cst_55 : f32 to vector<16x128xf32>
    %132 = arith.mulf %131, %130 : vector<16x128xf32>
    %133 = arith.mulf %120, %132 : vector<16x128xf32>
    %134 = arith.truncf %133 : vector<16x128xf32> to vector<16x128xbf16>
    %c0_56 = arith.constant 0 : index
    %c0_57 = arith.constant 0 : index
    %135 = vector.load %arg14[%c0_56, %c0_57] : memref<128x128xbf16, #tpu.memory_space<vmem>>, vector<128x128xbf16>
    %cst_58 = arith.constant dense<0.000000e+00> : vector<16x128xf32>
    %136 = tpu.matmul %134, %135, %cst_58 {dimension_numbers = #tpu.dot_dimension_numbers<[1], [0], [0], [1], [0, 0, 1, 1], [], []>} : vector<16x128xbf16>, vector<128x128xbf16>, vector<16x128xf32> -> vector<16x128xf32>
    %c0_59 = arith.constant 0 : index
    %c0_60 = arith.constant 0 : index
    %137 = vector.load %arg15[%c0_59, %c0_60] : memref<1x128xf32, #tpu.memory_space<vmem>>, vector<1x128xf32>
    %138 = vector.broadcast %137 : vector<1x128xf32> to vector<16x128xf32>
    %139 = arith.addf %136, %138 : vector<16x128xf32>
    %140 = arith.addf %89, %139 : vector<16x128xf32>
    %141 = arith.truncf %140 : vector<16x128xf32> to vector<16x128xbf16>
    %c0_61 = arith.constant 0 : index
    %c0_62 = arith.constant 0 : index
    %142 = vector.load %arg16[%c0_61, %c0_62] : memref<128x32xbf16, #tpu.memory_space<vmem>>, vector<128x32xbf16>
    %cst_63 = arith.constant dense<0.000000e+00> : vector<16x32xf32>
    %143 = tpu.matmul %141, %142, %cst_63 {dimension_numbers = #tpu.dot_dimension_numbers<[1], [0], [0], [1], [0, 0, 1, 1], [], []>} : vector<16x128xbf16>, vector<128x32xbf16>, vector<16x32xf32> -> vector<16x32xf32>
    %c0_64 = arith.constant 0 : index
    %c0_65 = arith.constant 0 : index
    %144 = vector.load %arg17[%c0_64, %c0_65] : memref<1x32xf32, #tpu.memory_space<vmem>>, vector<1x32xf32>
    %145 = vector.broadcast %144 : vector<1x32xf32> to vector<16x32xf32>
    %146 = arith.addf %143, %145 : vector<16x32xf32>
    %cst_66 = arith.constant 0.000000e+00 : f32
    %147 = vector.broadcast %cst_66 : f32 to vector<16x32xf32>
    %148 = arith.maximumf %146, %147 : vector<16x32xf32>
    %149 = arith.truncf %148 : vector<16x32xf32> to vector<16x32xbf16>
    %c0_67 = arith.constant 0 : index
    %c0_68 = arith.constant 0 : index
    %150 = vector.load %arg18[%c0_67, %c0_68] : memref<32x32xbf16, #tpu.memory_space<vmem>>, vector<32x32xbf16>
    %cst_69 = arith.constant dense<0.000000e+00> : vector<16x32xf32>
    %151 = tpu.matmul %149, %150, %cst_69 {dimension_numbers = #tpu.dot_dimension_numbers<[1], [0], [0], [1], [0, 0, 1, 1], [], []>} : vector<16x32xbf16>, vector<32x32xbf16>, vector<16x32xf32> -> vector<16x32xf32>
    %c0_70 = arith.constant 0 : index
    %c0_71 = arith.constant 0 : index
    %152 = vector.load %arg19[%c0_70, %c0_71] : memref<1x32xf32, #tpu.memory_space<vmem>>, vector<1x32xf32>
    %153 = vector.broadcast %152 : vector<1x32xf32> to vector<16x32xf32>
    %154 = arith.addf %151, %153 : vector<16x32xf32>
    %cst_72 = arith.constant 0.000000e+00 : f32
    %155 = vector.broadcast %cst_72 : f32 to vector<16x32xf32>
    %156 = arith.maximumf %154, %155 : vector<16x32xf32>
    %157 = arith.truncf %156 : vector<16x32xf32> to vector<16x32xbf16>
    %c0_73 = arith.constant 0 : index
    %c0_74 = arith.constant 0 : index
    %158 = vector.load %arg20[%c0_73, %c0_74] : memref<32x32xbf16, #tpu.memory_space<vmem>>, vector<32x32xbf16>
    %cst_75 = arith.constant dense<0.000000e+00> : vector<16x32xf32>
    %159 = tpu.matmul %157, %158, %cst_75 {dimension_numbers = #tpu.dot_dimension_numbers<[1], [0], [0], [1], [0, 0, 1, 1], [], []>} : vector<16x32xbf16>, vector<32x32xbf16>, vector<16x32xf32> -> vector<16x32xf32>
    %c0_76 = arith.constant 0 : index
    %c0_77 = arith.constant 0 : index
    %160 = vector.load %arg21[%c0_76, %c0_77] : memref<1x32xf32, #tpu.memory_space<vmem>>, vector<1x32xf32>
    %161 = vector.broadcast %160 : vector<1x32xf32> to vector<16x32xf32>
    %162 = arith.addf %159, %161 : vector<16x32xf32>
    %cst_78 = arith.constant 0.000000e+00 : f32
    %163 = vector.broadcast %cst_78 : f32 to vector<16x32xf32>
    %164 = arith.maximumf %162, %163 : vector<16x32xf32>
    %165 = arith.truncf %164 : vector<16x32xf32> to vector<16x32xbf16>
    %c0_79 = arith.constant 0 : index
    %c0_80 = arith.constant 0 : index
    %166 = vector.load %arg22[%c0_79, %c0_80] : memref<32x128xbf16, #tpu.memory_space<vmem>>, vector<32x128xbf16>
    %cst_81 = arith.constant dense<0.000000e+00> : vector<16x128xf32>
    %167 = tpu.matmul %165, %166, %cst_81 {dimension_numbers = #tpu.dot_dimension_numbers<[1], [0], [0], [1], [0, 0, 1, 1], [], []>} : vector<16x32xbf16>, vector<32x128xbf16>, vector<16x128xf32> -> vector<16x128xf32>
    %c0_82 = arith.constant 0 : index
    %c0_83 = arith.constant 0 : index
    %168 = vector.load %arg23[%c0_82, %c0_83] : memref<1x128xf32, #tpu.memory_space<vmem>>, vector<1x128xf32>
    %169 = vector.broadcast %168 : vector<1x128xf32> to vector<16x128xf32>
    %170 = arith.addf %167, %169 : vector<16x128xf32>
    %171 = arith.negf %170 : vector<16x128xf32>
    %172 = math.exp %171 : vector<16x128xf32>
    %cst_84 = arith.constant 1.000000e+00 : f32
    %173 = vector.broadcast %cst_84 : f32 to vector<16x128xf32>
    %174 = arith.addf %173, %172 : vector<16x128xf32>
    %175 = arith.divf %173, %174 : vector<16x128xf32>
    %c0_85 = arith.constant 0 : index
    %c0_86 = arith.constant 0 : index
    %c0_87 = arith.constant 0 : index
    %176 = vector.load %arg24[%c0_85, %c0_86, %c0_87] : memref<1x16x128xf32, #tpu.memory_space<vmem>>, vector<1x16x128xf32>
    %177 = vector.shape_cast %176 : vector<1x16x128xf32> to vector<16x128xf32>
    %178 = vector.shape_cast %175 : vector<16x128xf32> to vector<1x16x128xf32>
    tpu.vector_store %arg24[%c0_85, %c0_86, %c0_87], %178 {strides = array<i32>} : memref<1x16x128xf32, #tpu.memory_space<vmem>>, vector<1x16x128xf32>,
    return
  }
  func.func @transform_0(%arg0: i32, %arg1: i32) -> (i32, i32, i32) {
    %c0_i32 = arith.constant 0 : i32
    %c0_i32_0 = arith.constant 0 : i32
    return %arg0, %arg1, %c0_i32 : i32, i32, i32
  }
  func.func @transform_1(%arg0: i32, %arg1: i32) -> (i32, i32) {
    %c0_i32 = arith.constant 0 : i32
    %c0_i32_0 = arith.constant 0 : i32
    %c0_i32_1 = arith.constant 0 : i32
    return %c0_i32, %c0_i32_0 : i32, i32
  }
  func.func @transform_2(%arg0: i32, %arg1: i32) -> (i32, i32) {
    %c0_i32 = arith.constant 0 : i32
    %c0_i32_0 = arith.constant 0 : i32
    %c0_i32_1 = arith.constant 0 : i32
    return %c0_i32, %c0_i32_0 : i32, i32
  }
  func.func @transform_3(%arg0: i32, %arg1: i32) -> (i32, i32) {
    %c0_i32 = arith.constant 0 : i32
    %c0_i32_0 = arith.constant 0 : i32
    %c0_i32_1 = arith.constant 0 : i32
    return %c0_i32, %c0_i32_0 : i32, i32
  }
  func.func @transform_4(%arg0: i32, %arg1: i32) -> (i32, i32, i32) {
    %c0_i32 = arith.constant 0 : i32
    %c0_i32_0 = arith.constant 0 : i32
    %c0_i32_1 = arith.constant 0 : i32
    %c0_i32_2 = arith.constant 0 : i32
    return %c0_i32, %c0_i32_0, %c0_i32_1 : i32, i32, i32
  }
  func.func @transform_5(%arg0: i32, %arg1: i32) -> (i32, i32, i32) {
    %c0_i32 = arith.constant 0 : i32
    %c0_i32_0 = arith.constant 0 : i32
    %c0_i32_1 = arith.constant 0 : i32
    %c0_i32_2 = arith.constant 0 : i32
    return %c0_i32, %c0_i32_0, %c0_i32_1 : i32, i32, i32
  }
  func.func @transform_6(%arg0: i32, %arg1: i32) -> (i32, i32, i32) {
    %c0_i32 = arith.constant 0 : i32
    %c0_i32_0 = arith.constant 0 : i32
    %c0_i32_1 = arith.constant 0 : i32
    %c0_i32_2 = arith.constant 0 : i32
    return %c0_i32, %c0_i32_0, %c0_i32_1 : i32, i32, i32
  }
  func.func @transform_7(%arg0: i32, %arg1: i32) -> (i32, i32, i32) {
    %c0_i32 = arith.constant 0 : i32
    %c0_i32_0 = arith.constant 0 : i32
    %c0_i32_1 = arith.constant 0 : i32
    %c0_i32_2 = arith.constant 0 : i32
    return %c0_i32, %c0_i32_0, %c0_i32_1 : i32, i32, i32
  }
  func.func @transform_8(%arg0: i32, %arg1: i32) -> (i32, i32) {
    %c0_i32 = arith.constant 0 : i32
    %c0_i32_0 = arith.constant 0 : i32
    %c0_i32_1 = arith.constant 0 : i32
    return %c0_i32, %c0_i32_0 : i32, i32
  }
  func.func @transform_9(%arg0: i32, %arg1: i32) -> (i32, i32) {
    %c0_i32 = arith.constant 0 : i32
    %c0_i32_0 = arith.constant 0 : i32
    %c0_i32_1 = arith.constant 0 : i32
    return %c0_i32, %c0_i32_0 : i32, i32
  }
  func.func @transform_10(%arg0: i32, %arg1: i32) -> (i32, i32) {
    %c0_i32 = arith.constant 0 : i32
    %c0_i32_0 = arith.constant 0 : i32
    %c0_i32_1 = arith.constant 0 : i32
    return %c0_i32, %c0_i32_0 : i32, i32
  }
  func.func @transform_11(%arg0: i32, %arg1: i32) -> (i32, i32) {
    %c0_i32 = arith.constant 0 : i32
    %c0_i32_0 = arith.constant 0 : i32
    %c0_i32_1 = arith.constant 0 : i32
    return %c0_i32, %c0_i32_0 : i32, i32
  }
  func.func @transform_12(%arg0: i32, %arg1: i32) -> (i32, i32) {
    %c0_i32 = arith.constant 0 : i32
    %c0_i32_0 = arith.constant 0 : i32
    %c0_i32_1 = arith.constant 0 : i32
    return %c0_i32, %c0_i32_0 : i32, i32
  }
  func.func @transform_13(%arg0: i32, %arg1: i32) -> (i32, i32) {
    %c0_i32 = arith.constant 0 : i32
    %c0_i32_0 = arith.constant 0 : i32
    %c0_i32_1 = arith.constant 0 : i32
    return %c0_i32, %c0_i32_0 : i32, i32
  }
  func.func @transform_14(%arg0: i32, %arg1: i32) -> (i32, i32) {
    %c0_i32 = arith.constant 0 : i32
    %c0_i32_0 = arith.constant 0 : i32
    %c0_i32_1 = arith.constant 0 : i32
    return %c0_i32, %c0_i32_0 : i32, i32
  }
  func.func @transform_15(%arg0: i32, %arg1: i32) -> (i32, i32) {
    %c0_i32 = arith.constant 0 : i32
    %c0_i32_0 = arith.constant 0 : i32
    %c0_i32_1 = arith.constant 0 : i32
    return %c0_i32, %c0_i32_0 : i32, i32
  }
  func.func @transform_16(%arg0: i32, %arg1: i32) -> (i32, i32) {
    %c0_i32 = arith.constant 0 : i32
    %c0_i32_0 = arith.constant 0 : i32
    %c0_i32_1 = arith.constant 0 : i32
    return %c0_i32, %c0_i32_0 : i32, i32
  }
  func.func @transform_17(%arg0: i32, %arg1: i32) -> (i32, i32) {
    %c0_i32 = arith.constant 0 : i32
    %c0_i32_0 = arith.constant 0 : i32
    %c0_i32_1 = arith.constant 0 : i32
    return %c0_i32, %c0_i32_0 : i32, i32
  }
  func.func @transform_18(%arg0: i32, %arg1: i32) -> (i32, i32) {
    %c0_i32 = arith.constant 0 : i32
    %c0_i32_0 = arith.constant 0 : i32
    %c0_i32_1 = arith.constant 0 : i32
    return %c0_i32, %c0_i32_0 : i32, i32
  }
  func.func @transform_19(%arg0: i32, %arg1: i32) -> (i32, i32) {
    %c0_i32 = arith.constant 0 : i32
    %c0_i32_0 = arith.constant 0 : i32
    %c0_i32_1 = arith.constant 0 : i32
    return %c0_i32, %c0_i32_0 : i32, i32
  }
  func.func @transform_20(%arg0: i32, %arg1: i32) -> (i32, i32) {
    %c0_i32 = arith.constant 0 : i32
    %c0_i32_0 = arith.constant 0 : i32
    %c0_i32_1 = arith.constant 0 : i32
    return %c0_i32, %c0_i32_0 : i32, i32
  }
  func.func @transform_21(%arg0: i32, %arg1: i32) -> (i32, i32) {
    %c0_i32 = arith.constant 0 : i32
    %c0_i32_0 = arith.constant 0 : i32
    %c0_i32_1 = arith.constant 0 : i32
    return %c0_i32, %c0_i32_0 : i32, i32
  }
  func.func @transform_22(%arg0: i32, %arg1: i32) -> (i32, i32, i32) {
    %c0_i32 = arith.constant 0 : i32
    %c0_i32_0 = arith.constant 0 : i32
    return %arg0, %arg1, %c0_i32 : i32, i32, i32
  }
}

</mosaic_0001>

<llo_original>
// kernel: rendering_attention_forward.3
$region0: #{rendering_attention_forward.3}
  #allocation0 [shape = 'u32[]', space=smem, size = 0x4, offset = 0x4, fixed_abs, tag = 'smem constant byte address 0x4 - core index']
  #allocation1 [shape = 'u32[144,128]{1,0:T(1,128)}', space=vmem, size = 0x12000, scoped, tag = 'internal scratch']
  %s0 = inlined_call_operand.vmem [shape: f32[2,16,128], index: 0, kind: input, shape index: {}]
  %s1 = inlined_call_operand.vmem [shape: f32[16,64], index: 1, kind: input, shape index: {}]
  %s2 = inlined_call_operand.vmem [shape: f32[2,128], index: 2, kind: input, shape index: {}]
  %s3 = inlined_call_operand.vmem [shape: f32[2,64], index: 3, kind: input, shape index: {}]
  %s4 = inlined_call_operand.vmem [shape: bf16[1,128,16], index: 4, kind: input, shape index: {}]
  %s5 = inlined_call_operand.vmem [shape: bf16[1,64,16], index: 5, kind: input, shape index: {}]
  %s6 = inlined_call_operand.vmem [shape: bf16[1,64,16], index: 6, kind: input, shape index: {}]
  %s7 = inlined_call_operand.vmem [shape: bf16[1,16,128], index: 7, kind: input, shape index: {}]
  %s8 = inlined_call_operand.vmem [shape: f32[1,128], index: 8, kind: input, shape index: {}]
  %s9 = inlined_call_operand.vmem [shape: f32[2,128], index: 9, kind: input, shape index: {}]
  %s10 = inlined_call_operand.vmem [shape: bf16[128,128], index: 10, kind: input, shape index: {}]
  %s11 = inlined_call_operand.vmem [shape: f32[1,128], index: 11, kind: input, shape index: {}]
  %s12 = inlined_call_operand.vmem [shape: bf16[128,128], index: 12, kind: input, shape index: {}]
  %s13 = inlined_call_operand.vmem [shape: f32[1,128], index: 13, kind: input, shape index: {}]
  %s14 = inlined_call_operand.vmem [shape: bf16[128,32], index: 14, kind: input, shape index: {}]
  %s15 = inlined_call_operand.vmem [shape: f32[1,32], index: 15, kind: input, shape index: {}]
  %s16 = inlined_call_operand.vmem [shape: bf16[32,32], index: 16, kind: input, shape index: {}]
  %s17 = inlined_call_operand.vmem [shape: f32[1,32], index: 17, kind: input, shape index: {}]
  %s18 = inlined_call_operand.vmem [shape: bf16[32,32], index: 18, kind: input, shape index: {}]
  %s19 = inlined_call_operand.vmem [shape: f32[1,32], index: 19, kind: input, shape index: {}]
  %s20 = inlined_call_operand.vmem [shape: bf16[32,128], index: 20, kind: input, shape index: {}]
  %s21 = inlined_call_operand.hbm [shape: f32[1,128], index: 21, kind: input, shape index: {}]
  %s22 = inlined_call_operand.vmem [shape: f32[2,16,128], index: 22, kind: output, shape index: {}]
  %s23 = sld [smem:[#allocation0]]
  $region125: #{rendering_attention_forward.3} parent=0
    _
  %s25 = ssub.s32 1, %s23
  %s26 = scalar_select 0, %s25, %s23
  $region1: #{rendering_attention_forward.3} parent=0
    #allocation2 [shape = 'u8[512]{0}', space=vmem, size = 0x400, scoped, tag = 'input window, operand 21, single buffered']
    #allocation3 [shape = 's32[2]{0}', space=sflag, size = 0x8, scoped, tag = 'scoped memory for rendering_attention_forward.3']
    %27 = vsyncpa [#allocation3], 0
    loop: start=0, step=1, limit=4
    $region2: #{rendering_attention_forward.3} parent=1 // loop_pre_header
      _
    $region3: #{rendering_attention_forward.3} parent=1 // loop_header
      %s29 = sphi 0, %s33
      %p30 = scmp.ge.s32.totalorder %s29, 4
      %s36 = sphi 0, %s48
      %s37 = sphi 0, %s44
      %s38 = sphi 0, %s36
      %s39 = sphi 0, %s37
      %s40 = sphi 0, %s38
      %s41 = sphi 0, %s39
      %s53 = sphi 0, %s55
      %s56 = sphi 0, %s53
      %s57 = sphi 0, %s56
      %s73 = sphi 0, %s57
      %s77 = sphi 0, %s77
      %s79 = sphi 0, %s77
      %s80 = sphi 0, %s79
      %s94 = sphi 0, %s80
      %s98 = sphi 0, %s98
      %s100 = sphi 0, %s98
      %s101 = sphi 0, %s100
      %s115 = sphi 0, %s101
      %s119 = sphi 0, %s119
      %s121 = sphi 0, %s119
      %s122 = sphi 0, %s121
      %s136 = sphi 0, %s122
      %s140 = sphi 0, %s140
      %s142 = sphi 0, %s140
      %s143 = sphi 0, %s142
      %s157 = sphi 0, %s143
      %s161 = sphi 0, %s161
      %s163 = sphi 0, %s161
      %s164 = sphi 0, %s163
      %s178 = sphi 0, %s164
      %s182 = sphi 0, %s182
      %s184 = sphi 0, %s182
      %s185 = sphi 0, %s184
      %s199 = sphi 0, %s185
      %s203 = sphi 0, %s203
      %s205 = sphi 0, %s203
      %s206 = sphi 0, %s205
      %s220 = sphi 0, %s206
      %s224 = sphi 0, %s224
      %s226 = sphi 0, %s224
      %s227 = sphi 0, %s226
      %s241 = sphi 0, %s227
      %s245 = sphi 0, %s245
      %s247 = sphi 0, %s245
      %s248 = sphi 0, %s247
      %s262 = sphi 0, %s248
      %s266 = sphi 0, %s266
      %s268 = sphi 0, %s266
      %s269 = sphi 0, %s268
      %s283 = sphi 0, %s269
      %s287 = sphi 0, %s287
      %s289 = sphi 0, %s287
      %s290 = sphi 0, %s289
      %s304 = sphi 0, %s290
      %s308 = sphi 0, %s308
      %s310 = sphi 0, %s308
      %s311 = sphi 0, %s310
      %s325 = sphi 0, %s311
      %s329 = sphi 0, %s329
      %s331 = sphi 0, %s329
      %s332 = sphi 0, %s331
      %s346 = sphi 0, %s332
      %s350 = sphi 0, %s350
      %s352 = sphi 0, %s350
      %s353 = sphi 0, %s352
      %s367 = sphi 0, %s353
      %s371 = sphi 0, %s371
      %s373 = sphi 0, %s371
      %s374 = sphi 0, %s373
      %s388 = sphi 0, %s374
      %s392 = sphi 0, %s392
      %s394 = sphi 0, %s392
      %s395 = sphi 0, %s394
      %s409 = sphi 0, %s395
      %s413 = sphi 0, %s413
      %s415 = sphi 0, %s413
      %s416 = sphi 0, %s415
      %s430 = sphi 0, %s416
      %s434 = sphi 0, %s434
      %s436 = sphi 0, %s434
      %s437 = sphi 0, %s436
      %s451 = sphi 0, %s437
      %s455 = sphi 0, %s455
      %s457 = sphi 0, %s455
      %s458 = sphi 0, %s457
      %s472 = sphi 0, %s458
      %s476 = sphi 0, %s476
      %s478 = sphi 0, %s476
      %s479 = sphi 0, %s478
      %s493 = sphi 0, %s479
      %s497 = sphi 0, %s497
      %s499 = sphi 0, %s497
      %s500 = sphi 0, %s499
      %s514 = sphi 0, %s500
      %s522 = sphi 0, %s524
      %s525 = sphi 0, %s522
      %s526 = sphi 0, %s525
      %s542 = sphi 0, %s526
    $region4: #{rendering_attention_forward.3} parent=1 // loop_header_branch
      %32 = sbr.rel (%p30) target = $region8
    $region5: #{rendering_attention_forward.3} parent=1 // loop_body
      %s34 = ssub.s32 %s29, 1
      %s35 = ssub.s32 %s29, 2
      %s42 = sadd.s32 1, %s37
      %p43 = scmp.ge.s32.totalorder %s42, 1
      %s44 = scalar_select %p43, 0, %s42
      %s45 = sadd.s32 1, %s36
      %s46 = scalar_select %p43, %s45, %s36
      %p47 = scmp.ge.s32.totalorder %s46, 2
      %s48 = scalar_select %p47, 0, %s46
      %s49 = ssub.s32 %s36, %s48
      %s50 = ssub.s32 %s37, %s44
      %s51 = sor.u32 %s49, %s50
      %p52 = scmp.eq.s32.totalorder %s51, 0
      %s54 = sadd.s32 %s53, 1
      %s55 = scalar_select %p52, %s53, %s54
      %p58 = pneg %p52
      %p59 = scmp.eq.s32.totalorder %s29, 1
      %p60 = por %p58, %p59
      %p61 = scmp.ne.s32.totalorder %s53, %s56
      %p62 = scmp.eq.s32.totalorder %s29, 0
      %p63 = por %p61, %p62
      %p64 = scmp.ne.s32.totalorder %s53, %s56
      %p65 = scmp.eq.s32.totalorder %s34, 1
      %p66 = por %p64, %p65
      %p67 = scmp.ne.s32.totalorder %s56, %s57
      %p68 = scmp.eq.s32.totalorder %s34, 0
      %p69 = por %p67, %p68
      %p70 = scmp.ne.s32.totalorder %s56, %s57
      %p71 = scmp.eq.s32.totalorder %s35, 1
      %p72 = por %p70, %p71
      %p74 = scmp.ne.s32.totalorder %s57, %s73
      %p75 = scmp.eq.s32.totalorder %s35, 0
      %p76 = por %p74, %p75
      %s78 = sadd.s32 %s77, 1
      %p81 = scmp.eq.s32.totalorder %s29, 1
      %p82 = scmp.ne.s32.totalorder %s77, %s79
      %p83 = scmp.eq.s32.totalorder %s29, 0
      %p84 = por %p82, %p83
      %p85 = scmp.ne.s32.totalorder %s77, %s79
      %p86 = scmp.eq.s32.totalorder %s34, 1
      %p87 = por %p85, %p86
      %p88 = scmp.ne.s32.totalorder %s79, %s80
      %p89 = scmp.eq.s32.totalorder %s34, 0
      %p90 = por %p88, %p89
      %p91 = scmp.ne.s32.totalorder %s79, %s80
      %p92 = scmp.eq.s32.totalorder %s35, 1
      %p93 = por %p91, %p92
      %p95 = scmp.ne.s32.totalorder %s80, %s94
      %p96 = scmp.eq.s32.totalorder %s35, 0
      %p97 = por %p95, %p96
      %s99 = sadd.s32 %s98, 1
      %p102 = scmp.eq.s32.totalorder %s29, 1
      %p103 = scmp.ne.s32.totalorder %s98, %s100
      %p104 = scmp.eq.s32.totalorder %s29, 0
      %p105 = por %p103, %p104
      %p106 = scmp.ne.s32.totalorder %s98, %s100
      %p107 = scmp.eq.s32.totalorder %s34, 1
      %p108 = por %p106, %p107
      %p109 = scmp.ne.s32.totalorder %s100, %s101
      %p110 = scmp.eq.s32.totalorder %s34, 0
      %p111 = por %p109, %p110
      %p112 = scmp.ne.s32.totalorder %s100, %s101
      %p113 = scmp.eq.s32.totalorder %s35, 1
      %p114 = por %p112, %p113
      %p116 = scmp.ne.s32.totalorder %s101, %s115
      %p117 = scmp.eq.s32.totalorder %s35, 0
      %p118 = por %p116, %p117
      %s120 = sadd.s32 %s119, 1
      %p123 = scmp.eq.s32.totalorder %s29, 1
      %p124 = scmp.ne.s32.totalorder %s119, %s121
      %p125 = scmp.eq.s32.totalorder %s29, 0
      %p126 = por %p124, %p125
      %p127 = scmp.ne.s32.totalorder %s119, %s121
      %p128 = scmp.eq.s32.totalorder %s34, 1
      %p129 = por %p127, %p128
      %p130 = scmp.ne.s32.totalorder %s121, %s122
      %p131 = scmp.eq.s32.totalorder %s34, 0
      %p132 = por %p130, %p131
      %p133 = scmp.ne.s32.totalorder %s121, %s122
      %p134 = scmp.eq.s32.totalorder %s35, 1
      %p135 = por %p133, %p134
      %p137 = scmp.ne.s32.totalorder %s122, %s136
      %p138 = scmp.eq.s32.totalorder %s35, 0
      %p139 = por %p137, %p138
      %s141 = sadd.s32 %s140, 1
      %p144 = scmp.eq.s32.totalorder %s29, 1
      %p145 = scmp.ne.s32.totalorder %s140, %s142
      %p146 = scmp.eq.s32.totalorder %s29, 0
      %p147 = por %p145, %p146
      %p148 = scmp.ne.s32.totalorder %s140, %s142
      %p149 = scmp.eq.s32.totalorder %s34, 1
      %p150 = por %p148, %p149
      %p151 = scmp.ne.s32.totalorder %s142, %s143
      %p152 = scmp.eq.s32.totalorder %s34, 0
      %p153 = por %p151, %p152
      %p154 = scmp.ne.s32.totalorder %s142, %s143
      %p155 = scmp.eq.s32.totalorder %s35, 1
      %p156 = por %p154, %p155
      %p158 = scmp.ne.s32.totalorder %s143, %s157
      %p159 = scmp.eq.s32.totalorder %s35, 0
      %p160 = por %p158, %p159
      %s162 = sadd.s32 %s161, 1
      %p165 = scmp.eq.s32.totalorder %s29, 1
      %p166 = scmp.ne.s32.totalorder %s161, %s163
      %p167 = scmp.eq.s32.totalorder %s29, 0
      %p168 = por %p166, %p167
      %p169 = scmp.ne.s32.totalorder %s161, %s163
      %p170 = scmp.eq.s32.totalorder %s34, 1
      %p171 = por %p169, %p170
      %p172 = scmp.ne.s32.totalorder %s163, %s164
      %p173 = scmp.eq.s32.totalorder %s34, 0
      %p174 = por %p172, %p173
      %p175 = scmp.ne.s32.totalorder %s163, %s164
      %p176 = scmp.eq.s32.totalorder %s35, 1
      %p177 = por %p175, %p176
      %p179 = scmp.ne.s32.totalorder %s164, %s178
      %p180 = scmp.eq.s32.totalorder %s35, 0
      %p181 = por %p179, %p180
      %s183 = sadd.s32 %s182, 1
      %p186 = scmp.eq.s32.totalorder %s29, 1
      %p187 = scmp.ne.s32.totalorder %s182, %s184
      %p188 = scmp.eq.s32.totalorder %s29, 0
      %p189 = por %p187, %p188
      %p190 = scmp.ne.s32.totalorder %s182, %s184
      %p191 = scmp.eq.s32.totalorder %s34, 1
      %p192 = por %p190, %p191
      %p193 = scmp.ne.s32.totalorder %s184, %s185
      %p194 = scmp.eq.s32.totalorder %s34, 0
      %p195 = por %p193, %p194
      %p196 = scmp.ne.s32.totalorder %s184, %s185
      %p197 = scmp.eq.s32.totalorder %s35, 1
      %p198 = por %p196, %p197
      %p200 = scmp.ne.s32.totalorder %s185, %s199
      %p201 = scmp.eq.s32.totalorder %s35, 0
      %p202 = por %p200, %p201
      %s204 = sadd.s32 %s203, 1
      %p207 = scmp.eq.s32.totalorder %s29, 1
      %p208 = scmp.ne.s32.totalorder %s203, %s205
      %p209 = scmp.eq.s32.totalorder %s29, 0
      %p210 = por %p208, %p209
      %p211 = scmp.ne.s32.totalorder %s203, %s205
      %p212 = scmp.eq.s32.totalorder %s34, 1
      %p213 = por %p211, %p212
      %p214 = scmp.ne.s32.totalorder %s205, %s206
      %p215 = scmp.eq.s32.totalorder %s34, 0
      %p216 = por %p214, %p215
      %p217 = scmp.ne.s32.totalorder %s205, %s206
      %p218 = scmp.eq.s32.totalorder %s35, 1
      %p219 = por %p217, %p218
      %p221 = scmp.ne.s32.totalorder %s206, %s220
      %p222 = scmp.eq.s32.totalorder %s35, 0
      %p223 = por %p221, %p222
      %s225 = sadd.s32 %s224, 1
      %p228 = scmp.eq.s32.totalorder %s29, 1
      %p229 = scmp.ne.s32.totalorder %s224, %s226
      %p230 = scmp.eq.s32.totalorder %s29, 0
      %p231 = por %p229, %p230
      %p232 = scmp.ne.s32.totalorder %s224, %s226
      %p233 = scmp.eq.s32.totalorder %s34, 1
      %p234 = por %p232, %p233
      %p235 = scmp.ne.s32.totalorder %s226, %s227
      %p236 = scmp.eq.s32.totalorder %s34, 0
      %p237 = por %p235, %p236
      %p238 = scmp.ne.s32.totalorder %s226, %s227
      %p239 = scmp.eq.s32.totalorder %s35, 1
      %p240 = por %p238, %p239
      %p242 = scmp.ne.s32.totalorder %s227, %s241
      %p243 = scmp.eq.s32.totalorder %s35, 0
      %p244 = por %p242, %p243
      %s246 = sadd.s32 %s245, 1
      %p249 = scmp.eq.s32.totalorder %s29, 1
      %p250 = scmp.ne.s32.totalorder %s245, %s247
      %p251 = scmp.eq.s32.totalorder %s29, 0
      %p252 = por %p250, %p251
      %p253 = scmp.ne.s32.totalorder %s245, %s247
      %p254 = scmp.eq.s32.totalorder %s34, 1
      %p255 = por %p253, %p254
      %p256 = scmp.ne.s32.totalorder %s247, %s248
      %p257 = scmp.eq.s32.totalorder %s34, 0
      %p258 = por %p256, %p257
      %p259 = scmp.ne.s32.totalorder %s247, %s248
      %p260 = scmp.eq.s32.totalorder %s35, 1
      %p261 = por %p259, %p260
      %p263 = scmp.ne.s32.totalorder %s248, %s262
      %p264 = scmp.eq.s32.totalorder %s35, 0
      %p265 = por %p263, %p264
      %s267 = sadd.s32 %s266, 1
      %p270 = scmp.eq.s32.totalorder %s29, 1
      %p271 = scmp.ne.s32.totalorder %s266, %s268
      %p272 = scmp.eq.s32.totalorder %s29, 0
      %p273 = por %p271, %p272
      %p274 = scmp.ne.s32.totalorder %s266, %s268
      %p275 = scmp.eq.s32.totalorder %s34, 1
      %p276 = por %p274, %p275
      %p277 = scmp.ne.s32.totalorder %s268, %s269
      %p278 = scmp.eq.s32.totalorder %s34, 0
      %p279 = por %p277, %p278
      %p280 = scmp.ne.s32.totalorder %s268, %s269
      %p281 = scmp.eq.s32.totalorder %s35, 1
      %p282 = por %p280, %p281
      %p284 = scmp.ne.s32.totalorder %s269, %s283
      %p285 = scmp.eq.s32.totalorder %s35, 0
      %p286 = por %p284, %p285
      %s288 = sadd.s32 %s287, 1
      %p291 = scmp.eq.s32.totalorder %s29, 1
      %p292 = scmp.ne.s32.totalorder %s287, %s289
      %p293 = scmp.eq.s32.totalorder %s29, 0
      %p294 = por %p292, %p293
      %p295 = scmp.ne.s32.totalorder %s287, %s289
      %p296 = scmp.eq.s32.totalorder %s34, 1
      %p297 = por %p295, %p296
      %p298 = scmp.ne.s32.totalorder %s289, %s290
      %p299 = scmp.eq.s32.totalorder %s34, 0
      %p300 = por %p298, %p299
      %p301 = scmp.ne.s32.totalorder %s289, %s290
      %p302 = scmp.eq.s32.totalorder %s35, 1
      %p303 = por %p301, %p302
      %p305 = scmp.ne.s32.totalorder %s290, %s304
      %p306 = scmp.eq.s32.totalorder %s35, 0
      %p307 = por %p305, %p306
      %s309 = sadd.s32 %s308, 1
      %p312 = scmp.eq.s32.totalorder %s29, 1
      %p313 = scmp.ne.s32.totalorder %s308, %s310
      %p314 = scmp.eq.s32.totalorder %s29, 0
      %p315 = por %p313, %p314
      %p316 = scmp.ne.s32.totalorder %s308, %s310
      %p317 = scmp.eq.s32.totalorder %s34, 1
      %p318 = por %p316, %p317
      %p319 = scmp.ne.s32.totalorder %s310, %s311
      %p320 = scmp.eq.s32.totalorder %s34, 0
      %p321 = por %p319, %p320
      %p322 = scmp.ne.s32.totalorder %s310, %s311
      %p323 = scmp.eq.s32.totalorder %s35, 1
      %p324 = por %p322, %p323
      %p326 = scmp.ne.s32.totalorder %s311, %s325
      %p327 = scmp.eq.s32.totalorder %s35, 0
      %p328 = por %p326, %p327
      %s330 = sadd.s32 %s329, 1
      %p333 = scmp.eq.s32.totalorder %s29, 1
      %p334 = scmp.ne.s32.totalorder %s329, %s331
      %p335 = scmp.eq.s32.totalorder %s29, 0
      %p336 = por %p334, %p335
      %p337 = scmp.ne.s32.totalorder %s329, %s331
      %p338 = scmp.eq.s32.totalorder %s34, 1
      %p339 = por %p337, %p338
      %p340 = scmp.ne.s32.totalorder %s331, %s332
      %p341 = scmp.eq.s32.totalorder %s34, 0
      %p342 = por %p340, %p341
      %p343 = scmp.ne.s32.totalorder %s331, %s332
      %p344 = scmp.eq.s32.totalorder %s35, 1
      %p345 = por %p343, %p344
      %p347 = scmp.ne.s32.totalorder %s332, %s346
      %p348 = scmp.eq.s32.totalorder %s35, 0
      %p349 = por %p347, %p348
      %s351 = sadd.s32 %s350, 1
      %p354 = scmp.eq.s32.totalorder %s29, 1
      %p355 = scmp.ne.s32.totalorder %s350, %s352
      %p356 = scmp.eq.s32.totalorder %s29, 0
      %p357 = por %p355, %p356
      %p358 = scmp.ne.s32.totalorder %s350, %s352
      %p359 = scmp.eq.s32.totalorder %s34, 1
      %p360 = por %p358, %p359
      %p361 = scmp.ne.s32.totalorder %s352, %s353
      %p362 = scmp.eq.s32.totalorder %s34, 0
      %p363 = por %p361, %p362
      %p364 = scmp.ne.s32.totalorder %s352, %s353
      %p365 = scmp.eq.s32.totalorder %s35, 1
      %p366 = por %p364, %p365
      %p368 = scmp.ne.s32.totalorder %s353, %s367
      %p369 = scmp.eq.s32.totalorder %s35, 0
      %p370 = por %p368, %p369
      %s372 = sadd.s32 %s371, 1
      %p375 = scmp.eq.s32.totalorder %s29, 1
      %p376 = scmp.ne.s32.totalorder %s371, %s373
      %p377 = scmp.eq.s32.totalorder %s29, 0
      %p378 = por %p376, %p377
      %p379 = scmp.ne.s32.totalorder %s371, %s373
      %p380 = scmp.eq.s32.totalorder %s34, 1
      %p381 = por %p379, %p380
      %p382 = scmp.ne.s32.totalorder %s373, %s374
      %p383 = scmp.eq.s32.totalorder %s34, 0
      %p384 = por %p382, %p383
      %p385 = scmp.ne.s32.totalorder %s373, %s374
      %p386 = scmp.eq.s32.totalorder %s35, 1
      %p387 = por %p385, %p386
      %p389 = scmp.ne.s32.totalorder %s374, %s388
      %p390 = scmp.eq.s32.totalorder %s35, 0
      %p391 = por %p389, %p390
      %s393 = sadd.s32 %s392, 1
      %p396 = scmp.eq.s32.totalorder %s29, 1
      %p397 = scmp.ne.s32.totalorder %s392, %s394
      %p398 = scmp.eq.s32.totalorder %s29, 0
      %p399 = por %p397, %p398
      %p400 = scmp.ne.s32.totalorder %s392, %s394
      %p401 = scmp.eq.s32.totalorder %s34, 1
      %p402 = por %p400, %p401
      %p403 = scmp.ne.s32.totalorder %s394, %s395
      %p404 = scmp.eq.s32.totalorder %s34, 0
      %p405 = por %p403, %p404
      %p406 = scmp.ne.s32.totalorder %s394, %s395
      %p407 = scmp.eq.s32.totalorder %s35, 1
      %p408 = por %p406, %p407
      %p410 = scmp.ne.s32.totalorder %s395, %s409
      %p411 = scmp.eq.s32.totalorder %s35, 0
      %p412 = por %p410, %p411
      %s414 = sadd.s32 %s413, 1
      %p417 = scmp.eq.s32.totalorder %s29, 1
      %p418 = scmp.ne.s32.totalorder %s413, %s415
      %p419 = scmp.eq.s32.totalorder %s29, 0
      %p420 = por %p418, %p419
      %p421 = scmp.ne.s32.totalorder %s413, %s415
      %p422 = scmp.eq.s32.totalorder %s34, 1
      %p423 = por %p421, %p422
      %p424 = scmp.ne.s32.totalorder %s415, %s416
      %p425 = scmp.eq.s32.totalorder %s34, 0
      %p426 = por %p424, %p425
      %p427 = scmp.ne.s32.totalorder %s415, %s416
      %p428 = scmp.eq.s32.totalorder %s35, 1
      %p429 = por %p427, %p428
      %p431 = scmp.ne.s32.totalorder %s416, %s430
      %p432 = scmp.eq.s32.totalorder %s35, 0
      %p433 = por %p431, %p432
      %s435 = sadd.s32 %s434, 1
      %p438 = scmp.eq.s32.totalorder %s29, 1
      %p439 = scmp.ne.s32.totalorder %s434, %s436
      %p440 = scmp.eq.s32.totalorder %s29, 0
      %p441 = por %p439, %p440
      %p442 = scmp.ne.s32.totalorder %s434, %s436
      %p443 = scmp.eq.s32.totalorder %s34, 1
      %p444 = por %p442, %p443
      %p445 = scmp.ne.s32.totalorder %s436, %s437
      %p446 = scmp.eq.s32.totalorder %s34, 0
      %p447 = por %p445, %p446
      %p448 = scmp.ne.s32.totalorder %s436, %s437
      %p449 = scmp.eq.s32.totalorder %s35, 1
      %p450 = por %p448, %p449
      %p452 = scmp.ne.s32.totalorder %s437, %s451
      %p453 = scmp.eq.s32.totalorder %s35, 0
      %p454 = por %p452, %p453
      %s456 = sadd.s32 %s455, 1
      %p459 = scmp.eq.s32.totalorder %s29, 1
      %p460 = scmp.ne.s32.totalorder %s455, %s457
      %p461 = scmp.eq.s32.totalorder %s29, 0
      %p462 = por %p460, %p461
      %p463 = scmp.ne.s32.totalorder %s455, %s457
      %p464 = scmp.eq.s32.totalorder %s34, 1
      %p465 = por %p463, %p464
      %p466 = scmp.ne.s32.totalorder %s457, %s458
      %p467 = scmp.eq.s32.totalorder %s34, 0
      %p468 = por %p466, %p467
      %p469 = scmp.ne.s32.totalorder %s457, %s458
      %p470 = scmp.eq.s32.totalorder %s35, 1
      %p471 = por %p469, %p470
      %p473 = scmp.ne.s32.totalorder %s458, %s472
      %p474 = scmp.eq.s32.totalorder %s35, 0
      %p475 = por %p473, %p474
      %s477 = sadd.s32 %s476, 1
      %p480 = scmp.eq.s32.totalorder %s29, 1
      %p481 = scmp.ne.s32.totalorder %s476, %s478
      %p482 = scmp.eq.s32.totalorder %s29, 0
      %p483 = por %p481, %p482
      %p484 = scmp.ne.s32.totalorder %s476, %s478
      %p485 = scmp.eq.s32.totalorder %s34, 1
      %p486 = por %p484, %p485
      %p487 = scmp.ne.s32.totalorder %s478, %s479
      %p488 = scmp.eq.s32.totalorder %s34, 0
      %p489 = por %p487, %p488
      %p490 = scmp.ne.s32.totalorder %s478, %s479
      %p491 = scmp.eq.s32.totalorder %s35, 1
      %p492 = por %p490, %p491
      %p494 = scmp.ne.s32.totalorder %s479, %s493
      %p495 = scmp.eq.s32.totalorder %s35, 0
      %p496 = por %p494, %p495
      %s498 = sadd.s32 %s497, 1
      %p501 = scmp.eq.s32.totalorder %s29, 1
      %p502 = scmp.ne.s32.totalorder %s497, %s499
      %p503 = scmp.eq.s32.totalorder %s29, 0
      %p504 = por %p502, %p503
      %p505 = scmp.ne.s32.totalorder %s497, %s499
      %p506 = scmp.eq.s32.totalorder %s34, 1
      %p507 = por %p505, %p506
      %p508 = scmp.ne.s32.totalorder %s499, %s500
      %p509 = scmp.eq.s32.totalorder %s34, 0
      %p510 = por %p508, %p509
      %p511 = scmp.ne.s32.totalorder %s499, %s500
      %p512 = scmp.eq.s32.totalorder %s35, 1
      %p513 = por %p511, %p512
      %p515 = scmp.ne.s32.totalorder %s500, %s514
      %p516 = scmp.eq.s32.totalorder %s35, 0
      %p517 = por %p515, %p516
      %s518 = ssub.s32 %s36, %s48
      %s519 = ssub.s32 %s37, %s44
      %s520 = sor.u32 %s518, %s519
      %p521 = scmp.eq.s32.totalorder %s520, 0
      %s523 = sadd.s32 %s522, 1
      %s524 = scalar_select %p521, %s522, %s523
      %p527 = pneg %p521
      %p528 = scmp.eq.s32.totalorder %s29, 1
      %p529 = por %p527, %p528
      %p530 = scmp.ne.s32.totalorder %s522, %s525
      %p531 = scmp.eq.s32.totalorder %s29, 0
      %p532 = por %p530, %p531
      %p533 = scmp.ne.s32.totalorder %s522, %s525
      %p534 = scmp.eq.s32.totalorder %s34, 1
      %p535 = por %p533, %p534
      %p536 = scmp.ne.s32.totalorder %s525, %s526
      %p537 = scmp.eq.s32.totalorder %s34, 0
      %p538 = por %p536, %p537
      %p539 = scmp.ne.s32.totalorder %s525, %s526
      %p540 = scmp.eq.s32.totalorder %s35, 1
      %p541 = por %p539, %p540
      %p543 = scmp.ne.s32.totalorder %s526, %s542
      %p544 = scmp.eq.s32.totalorder %s35, 0
      %p545 = por %p543, %p544
      %p546 = scmp.le.s32.totalorder 1, %s29
      %p547 = scmp.lt.s32.totalorder %s29, 3
      %p548 = pnand %p546, %p547
      %p549 = pneg %p548
      // Predicated region
      $region9: #{rendering_attention_forward.3} parent=5 // pred_check
        _
      $region10: #{rendering_attention_forward.3} parent=5 // pred_check_branch
        %551 = sbr.rel (%p548) target = $region12
      $region11: #{rendering_attention_forward.3} parent=5 // pred_region
        %s552 = ssub.s32 %s29, 1
        // Predicated region
        $region13: #{rendering_attention_forward.3} parent=11 // pred_check
          %p553 = pneg %p90
        $region14: #{rendering_attention_forward.3} parent=11 // pred_check_branch
          %555 = sbr.rel (%p553) target = $region16
        $region15: #{rendering_attention_forward.3} parent=11 // pred_region
          _
        $region16: #{rendering_attention_forward.3} parent=11 // pred_fallthru
          _
        // Predicated region
        $region17: #{rendering_attention_forward.3} parent=11 // pred_check
          %p556 = pneg %p111
        $region18: #{rendering_attention_forward.3} parent=11 // pred_check_branch
          %558 = sbr.rel (%p556) target = $region20
        $region19: #{rendering_attention_forward.3} parent=11 // pred_region
          _
        $region20: #{rendering_attention_forward.3} parent=11 // pred_fallthru
          _
        // Predicated region
        $region21: #{rendering_attention_forward.3} parent=11 // pred_check
          %p559 = pneg %p132
        $region22: #{rendering_attention_forward.3} parent=11 // pred_check_branch
          %561 = sbr.rel (%p559) target = $region24
        $region23: #{rendering_attention_forward.3} parent=11 // pred_region
          _
        $region24: #{rendering_attention_forward.3} parent=11 // pred_fallthru
          _
        // Predicated region
        $region25: #{rendering_attention_forward.3} parent=11 // pred_check
          %p562 = pneg %p153
        $region26: #{rendering_attention_forward.3} parent=11 // pred_check_branch
          %564 = sbr.rel (%p562) target = $region28
        $region27: #{rendering_attention_forward.3} parent=11 // pred_region
          _
        $region28: #{rendering_attention_forward.3} parent=11 // pred_fallthru
          _
        // Predicated region
        $region29: #{rendering_attention_forward.3} parent=11 // pred_check
          %p565 = pneg %p174
        $region30: #{rendering_attention_forward.3} parent=11 // pred_check_branch
          %567 = sbr.rel (%p565) target = $region32
        $region31: #{rendering_attention_forward.3} parent=11 // pred_region
          _
        $region32: #{rendering_attention_forward.3} parent=11 // pred_fallthru
          _
        // Predicated region
        $region33: #{rendering_attention_forward.3} parent=11 // pred_check
          %p568 = pneg %p195
        $region34: #{rendering_attention_forward.3} parent=11 // pred_check_branch
          %570 = sbr.rel (%p568) target = $region36
        $region35: #{rendering_attention_forward.3} parent=11 // pred_region
          _
        $region36: #{rendering_attention_forward.3} parent=11 // pred_fallthru
          _
        // Predicated region
        $region37: #{rendering_attention_forward.3} parent=11 // pred_check
          %p571 = pneg %p216
        $region38: #{rendering_attention_forward.3} parent=11 // pred_check_branch
          %573 = sbr.rel (%p571) target = $region40
        $region39: #{rendering_attention_forward.3} parent=11 // pred_region
          _
        $region40: #{rendering_attention_forward.3} parent=11 // pred_fallthru
          _
        // Predicated region
        $region41: #{rendering_attention_forward.3} parent=11 // pred_check
          %p574 = pneg %p237
        $region42: #{rendering_attention_forward.3} parent=11 // pred_check_branch
          %576 = sbr.rel (%p574) target = $region44
        $region43: #{rendering_attention_forward.3} parent=11 // pred_region
          _
        $region44: #{rendering_attention_forward.3} parent=11 // pred_fallthru
          _
        // Predicated region
        $region45: #{rendering_attention_forward.3} parent=11 // pred_check
          %p577 = pneg %p258
        $region46: #{rendering_attention_forward.3} parent=11 // pred_check_branch
          %579 = sbr.rel (%p577) target = $region48
        $region47: #{rendering_attention_forward.3} parent=11 // pred_region
          _
        $region48: #{rendering_attention_forward.3} parent=11 // pred_fallthru
          _
        // Predicated region
        $region49: #{rendering_attention_forward.3} parent=11 // pred_check
          %p580 = pneg %p279
        $region50: #{rendering_attention_forward.3} parent=11 // pred_check_branch
          %582 = sbr.rel (%p580) target = $region52
        $region51: #{rendering_attention_forward.3} parent=11 // pred_region
          _
        $region52: #{rendering_attention_forward.3} parent=11 // pred_fallthru
          _
        // Predicated region
        $region53: #{rendering_attention_forward.3} parent=11 // pred_check
          %p583 = pneg %p300
        $region54: #{rendering_attention_forward.3} parent=11 // pred_check_branch
          %585 = sbr.rel (%p583) target = $region56
        $region55: #{rendering_attention_forward.3} parent=11 // pred_region
          _
        $region56: #{rendering_attention_forward.3} parent=11 // pred_fallthru
          _
        // Predicated region
        $region57: #{rendering_attention_forward.3} parent=11 // pred_check
          %p586 = pneg %p321
        $region58: #{rendering_attention_forward.3} parent=11 // pred_check_branch
          %588 = sbr.rel (%p586) target = $region60
        $region59: #{rendering_attention_forward.3} parent=11 // pred_region
          _
        $region60: #{rendering_attention_forward.3} parent=11 // pred_fallthru
          _
        // Predicated region
        $region61: #{rendering_attention_forward.3} parent=11 // pred_check
          %p589 = pneg %p342
        $region62: #{rendering_attention_forward.3} parent=11 // pred_check_branch
          %591 = sbr.rel (%p589) target = $region64
        $region63: #{rendering_attention_forward.3} parent=11 // pred_region
          _
        $region64: #{rendering_attention_forward.3} parent=11 // pred_fallthru
          _
        // Predicated region
        $region65: #{rendering_attention_forward.3} parent=11 // pred_check
          %p592 = pneg %p363
        $region66: #{rendering_attention_forward.3} parent=11 // pred_check_branch
          %594 = sbr.rel (%p592) target = $region68
        $region67: #{rendering_attention_forward.3} parent=11 // pred_region
          _
        $region68: #{rendering_attention_forward.3} parent=11 // pred_fallthru
          _
        // Predicated region
        $region69: #{rendering_attention_forward.3} parent=11 // pred_check
          %p595 = pneg %p384
        $region70: #{rendering_attention_forward.3} parent=11 // pred_check_branch
          %597 = sbr.rel (%p595) target = $region72
        $region71: #{rendering_attention_forward.3} parent=11 // pred_region
          _
        $region72: #{rendering_attention_forward.3} parent=11 // pred_fallthru
          _
        // Predicated region
        $region73: #{rendering_attention_forward.3} parent=11 // pred_check
          %p598 = pneg %p405
        $region74: #{rendering_attention_forward.3} parent=11 // pred_check_branch
          %600 = sbr.rel (%p598) target = $region76
        $region75: #{rendering_attention_forward.3} parent=11 // pred_region
          _
        $region76: #{rendering_attention_forward.3} parent=11 // pred_fallthru
          _
        // Predicated region
        $region77: #{rendering_attention_forward.3} parent=11 // pred_check
          %p601 = pneg %p426
        $region78: #{rendering_attention_forward.3} parent=11 // pred_check_branch
          %603 = sbr.rel (%p601) target = $region80
        $region79: #{rendering_attention_forward.3} parent=11 // pred_region
          _
        $region80: #{rendering_attention_forward.3} parent=11 // pred_fallthru
          _
        // Predicated region
        $region81: #{rendering_attention_forward.3} parent=11 // pred_check
          %p604 = pneg %p447
        $region82: #{rendering_attention_forward.3} parent=11 // pred_check_branch
          %606 = sbr.rel (%p604) target = $region84
        $region83: #{rendering_attention_forward.3} parent=11 // pred_region
          _
        $region84: #{rendering_attention_forward.3} parent=11 // pred_fallthru
          _
        // Predicated region
        $region85: #{rendering_attention_forward.3} parent=11 // pred_check
          %p607 = pneg %p468
        $region86: #{rendering_attention_forward.3} parent=11 // pred_check_branch
          %609 = sbr.rel (%p607) target = $region88
        $region87: #{rendering_attention_forward.3} parent=11 // pred_region
          _
        $region88: #{rendering_attention_forward.3} parent=11 // pred_fallthru
          _
        // Predicated region
        $region89: #{rendering_attention_forward.3} parent=11 // pred_check
          %p610 = pneg %p489
        $region90: #{rendering_attention_forward.3} parent=11 // pred_check_branch
          %612 = sbr.rel (%p610) target = $region92
        $region91: #{rendering_attention_forward.3} parent=11 // pred_region
          _
        $region92: #{rendering_attention_forward.3} parent=11 // pred_fallthru
          _
        // Predicated region
        $region93: #{rendering_attention_forward.3} parent=11 // pred_check
          %p613 = pneg %p510
        $region94: #{rendering_attention_forward.3} parent=11 // pred_check_branch
          %615 = sbr.rel (%p613) target = $region96
        $region95: #{rendering_attention_forward.3} parent=11 // pred_region
          %s617 = ssub.s32 16, 16
          %618 = vsyncadd [#allocation3], %s617
          %s620 = sshll.u32 [#allocation2], 4
          %s621 = int_to_ptr.vmem [resolvable:$true] %s620
          %623 = dma.hbm_to_vmem [thread:$0]  %s21, 16, %s621, [#allocation3]
        $region96: #{rendering_attention_forward.3} parent=11 // pred_fallthru
          _
      $region12: #{rendering_attention_forward.3} parent=5 // pred_fallthru
        _
      %p624 = scmp.lt.s32.totalorder %s29, 2
      // Predicated region
      $region97: #{rendering_attention_forward.3} parent=5 // pred_check
        %p625 = pneg %p624
      $region98: #{rendering_attention_forward.3} parent=5 // pred_check_branch
        %627 = sbr.rel (%p625) target = $region100
      $region99: #{rendering_attention_forward.3} parent=5 // pred_region
        // Predicated region
        $region101: #{rendering_attention_forward.3} parent=99 // pred_check
          %p628 = pneg %p63
        $region102: #{rendering_attention_forward.3} parent=99 // pred_check_branch
          %630 = sbr.rel (%p628) target = $region104
        $region103: #{rendering_attention_forward.3} parent=99 // pred_region
          %s631 = smul.u32 2, %s37
          %p632 = scmp.lt.s32.totalorder %s36, 1
          %s633 = scalar_select %p632, %s36, 1
          %p634 = scmp.lt.s32.totalorder %s631, 1
          %s635 = scalar_select %p634, %s631, 1
          %s636 = smul.addr %s633, 2
          %s637 = sadd.s32 %s635, %s636
          %s638 = smul.addr %s637, 8
          %s639 = scalar_lea.vmem %s0, %s638
          %s640 = smul.u32 2, %s37
        $region104: #{rendering_attention_forward.3} parent=99 // pred_fallthru
          _
      $region100: #{rendering_attention_forward.3} parent=5 // pred_fallthru
        _
      %p641 = scmp.le.s32.totalorder 1, %s29
      %p642 = scmp.lt.s32.totalorder %s29, 3
      %p643 = pnand %p641, %p642
      %p644 = pneg %p643
      // Predicated region
      $region105: #{rendering_attention_forward.3} parent=5 // pred_check
        _
      $region106: #{rendering_attention_forward.3} parent=5 // pred_check_branch
        %646 = sbr.rel (%p643) target = $region108
      $region107: #{rendering_attention_forward.3} parent=5 // pred_region
        %s647 = ssub.s32 %s29, 1
        // Predicated region
        $region109: #{rendering_attention_forward.3} parent=107 // pred_check
          %p648 = pneg %p510
        $region110: #{rendering_attention_forward.3} parent=107 // pred_check_branch
          %650 = sbr.rel (%p648) target = $region112
        $region111: #{rendering_attention_forward.3} parent=107 // pred_region
          %651 = dma.done [#allocation3], 16
        $region112: #{rendering_attention_forward.3} parent=107 // pred_fallthru
          _
        %s652 = smul.u32 2, %s39
        %p653 = scmp.lt.s32.totalorder %s38, 1
        %s654 = scalar_select %p653, %s38, 1
        %p655 = scmp.lt.s32.totalorder %s652, 1
        %s656 = scalar_select %p655, %s652, 1
        %s657 = smul.addr %s654, 2
        %s658 = sadd.s32 %s656, %s657
        %s659 = smul.addr %s658, 8
        %s660 = scalar_lea.vmem %s0, %s659
        %p661 = pneg %p69
        %p662 = pneg %p66
        %p663 = pneg %p90
        %p664 = pneg %p87
        %p665 = pneg %p111
        %p666 = pneg %p108
        %p667 = pneg %p132
        %p668 = pneg %p129
        %p669 = pneg %p153
        %p670 = pneg %p150
        %p671 = pneg %p174
        %p672 = pneg %p171
        %p673 = pneg %p195
        %p674 = pneg %p192
        %p675 = pneg %p216
        %p676 = pneg %p213
        %p677 = pneg %p237
        %p678 = pneg %p234
        %p679 = pneg %p258
        %p680 = pneg %p255
        %p681 = pneg %p279
        %p682 = pneg %p276
        %p683 = pneg %p300
        %p684 = pneg %p297
        %p685 = pneg %p321
        %p686 = pneg %p318
        %p687 = pneg %p342
        %p688 = pneg %p339
        %p689 = pneg %p363
        %p690 = pneg %p360
        %p691 = pneg %p384
        %p692 = pneg %p381
        %p693 = pneg %p405
        %p694 = pneg %p402
        %p695 = pneg %p426
        %p696 = pneg %p423
        %p697 = pneg %p447
        %p698 = pneg %p444
        %p699 = pneg %p468
        %p700 = pneg %p465
        %p701 = pneg %p489
        %p702 = pneg %p486
        %p703 = pneg %p510
        %p704 = pneg %p507
        %p705 = pneg %p538
        %p706 = pneg %p535
        %s707 = smul.u32 2, %s39
        %p708 = scmp.lt.s32.totalorder %s38, 1
        %s709 = scalar_select %p708, %s38, 1
        %p710 = scmp.lt.s32.totalorder %s707, 1
        %s711 = scalar_select %p710, %s707, 1
        %s712 = smul.addr %s709, 2
        %s713 = sadd.s32 %s711, %s712
        %s714 = smul.addr %s713, 8
        %s715 = scalar_lea.vmem %s22, %s714
        %s716 = smul.u32 2, %s39
        %p717 = scmp.lt.s32.totalorder %s38, 1
        %s718 = scalar_select %p717, %s38, 1
        %p719 = scmp.lt.s32.totalorder %s716, 1
        %s720 = scalar_select %p719, %s716, 1
        %s721 = smul.addr %s718, 2
        %s722 = sadd.s32 %s720, %s721
        %s723 = smul.addr %s722, 8
        %s724 = scalar_lea.vmem %s0, %s723
        %s725 = smul.u32 2, %s39
        %s726 = smul.u32 2, %s39
        %p727 = scmp.lt.s32.totalorder %s38, 1
        %s728 = scalar_select %p727, %s38, 1
        %p729 = scmp.lt.s32.totalorder %s726, 1
        %s730 = scalar_select %p729, %s726, 1
        %s731 = smul.addr %s728, 2
        %s732 = sadd.s32 %s730, %s731
        %s733 = smul.addr %s732, 8
        %s734 = scalar_lea.vmem %s22, %s733
        %s735 = smul.u32 2, %s39
        %v737 = vld [vmem:[%s724] sm:$0xff]
        %v738 = vld [vmem:[%s724 + $0x8] sm:$0xff]
        %v739 = vld [vmem:[%s1] sm:$0xff]
        %v740 = vld [vmem:[%s1 + $0x8] sm:$0xff]
        %v741 = vld [vmem:[%s2] sm:$0x3]
        %742 = vadd.xlane.f32.xlu0 %v737
        %v743 = vpop.xlane.xlu0 %742
        %744 = vadd.xlane.f32.xlu0 %v738
        %v745 = vpop.xlane.xlu0 %744
        %v746 = vmul.f32 %v737, %v737
        %v747 = vmul.f32 %v738, %v738
        %748 = vadd.xlane.f32.xlu0 %v746
        %v749 = vpop.xlane.xlu0 %748
        %750 = vadd.xlane.f32.xlu0 %v747
        %v751 = vpop.xlane.xlu0 %750
        %v752 = vrcp.pop 41.0
        %v753 = vmul.f32 %v743, %v752
        %v754 = vmul.f32 %v745, %v752
        %v755 = vmul.f32 %v749, %v752
        %v756 = vmul.f32 %v751, %v752
        %v757 = vmul.f32 %v753, %v753
        %v758 = vmul.f32 %v754, %v754
        %v759 = vsub.f32 %v755, %v757
        %v760 = vsub.f32 %v756, %v758
        %v761 = vadd.f32 %v759, 1e-05
        %v762 = vadd.f32 %v760, 1e-05
        %v763 = vrsqrt.pop %v761
        %v764 = vrsqrt.pop %v762
        %v765 = vsub.f32 %v737, %v753
        %v766 = vsub.f32 %v738, %v754
        %v767 = vmul.f32 %v765, %v763
        %v768 = vmul.f32 %v766, %v764
        %v769 = vlaneseq
        %v770 = vshrl.u32 %v769, 7
        %v771 = vsub.s32 0, %v770
        %v772 = vrot.slane %v741, %v771
        %v773 = vmul.f32 %v767, %v772
        %v774 = vmul.f32 %v768, %v772
        %v775 = vlaneseq
        %v776 = vshrl.u32 %v775, 7
        %v777 = vsub.s32 1, %v776
        %v778 = vrot.slane %v741, %v777
        %v779 = vadd.f32 %v773, %v778
        %v780 = vadd.f32 %v774, %v778
        %v781 = vld [vmem:[%s3] sm:$0x3]
        %vm782 = vcmask 523264
        %v783 = vsel %vm782, %v739, 0.0
        %784 = vadd.xlane.f32.xlu0 %v783
        %v785 = vpop.xlane.xlu0 %784
        %v786 = vsel %vm782, %v740, 0.0
        %787 = vadd.xlane.f32.xlu0 %v786
        %v788 = vpop.xlane.xlu0 %787
        %v789 = vmul.f32 %v739, %v739
        %v790 = vmul.f32 %v740, %v740
        %v791 = vsel %vm782, %v789, 0.0
        %792 = vadd.xlane.f32.xlu0 %v791
        %v793 = vpop.xlane.xlu0 %792
        %v794 = vsel %vm782, %v790, 0.0
        %795 = vadd.xlane.f32.xlu0 %v794
        %v796 = vpop.xlane.xlu0 %795
        %v797 = vrcp.pop 64.0
        %v798 = vmul.f32 %v785, %v797
        %v799 = vmul.f32 %v788, %v797
        %v800 = vmul.f32 %v793, %v797
        %v801 = vmul.f32 %v796, %v797
        %v802 = vmul.f32 %v798, %v798
        %v803 = vmul.f32 %v799, %v799
        %v804 = vsub.f32 %v800, %v802
        %v805 = vsub.f32 %v801, %v803
        %v806 = vadd.f32 %v804, 1e-05
        %v807 = vadd.f32 %v805, 1e-05
        %v808 = vrsqrt.pop %v806
        %v809 = vrsqrt.pop %v807
        %v810 = vsub.f32 %v739, %v798
        %v811 = vsub.f32 %v740, %v799
        %v812 = vmul.f32 %v810, %v808
        %v813 = vmul.f32 %v811, %v809
        %v814 = vlaneseq
        %v815 = vshrl.u32 %v814, 7
        %v816 = vsub.s32 0, %v815
        %v817 = vrot.slane %v781, %v816
        %v818 = vmul.f32 %v812, %v817
        %v819 = vmul.f32 %v813, %v817
        %v820 = vlaneseq
        %v821 = vshrl.u32 %v820, 7
        %v822 = vsub.s32 1, %v821
        %v823 = vrot.slane %v781, %v822
        %v824 = vadd.f32 %v818, %v823
        %v825 = vadd.f32 %v819, %v823
        %v826 = vld [vmem:[%s8] sm:$0x1]
        %v827 = vpack.c.bf16 %v780, %v779
        %v828 = vpack.c.bf16 %v825, %v824
        %v829 = vld [vmem:[%s4] sm:$0xf]
        %v830 = vld [vmem:[%s4 + $0x4] sm:$0xf]
        %v831 = vld [vmem:[%s4 + $0x8] sm:$0xf]
        %v832 = vld [vmem:[%s4 + $0xc] sm:$0xf]
        %v833 = vld [vmem:[%s4 + $0x10] sm:$0xf]
        %v834 = vld [vmem:[%s4 + $0x14] sm:$0xf]
        %v835 = vld [vmem:[%s4 + $0x18] sm:$0xf]
        %v836 = vld [vmem:[%s4 + $0x1c] sm:$0xf]
        %v837 = vld [vmem:[%s4 + $0x20] sm:$0xf]
        %v838 = vld [vmem:[%s4 + $0x24] sm:$0xf]
        %v839 = vld [vmem:[%s4 + $0x28] sm:$0xf]
        %v840 = vld [vmem:[%s4 + $0x2c] sm:$0xf]
        %v841 = vld [vmem:[%s4 + $0x30] sm:$0xf]
        %v842 = vld [vmem:[%s4 + $0x34] sm:$0xf]
        %v843 = vld [vmem:[%s4 + $0x38] sm:$0xf]
        %v844 = vld [vmem:[%s4 + $0x3c] sm:$0xf]
        %v861 = vunpack.c.l.b16 %v829
        %v862 = vunpack.c.l.b16 %v830
        %v863 = vunpack.c.l.b16 %v831
        %v864 = vunpack.c.l.b16 %v832
        %v865 = vunpack.c.l.b16 %v833
        %v866 = vunpack.c.l.b16 %v834
        %v867 = vunpack.c.l.b16 %v835
        %v868 = vunpack.c.l.b16 %v836
        %v869 = vunpack.c.l.b16 %v837
        %v870 = vunpack.c.l.b16 %v838
        %v871 = vunpack.c.l.b16 %v839
        %v872 = vunpack.c.l.b16 %v840
        %v873 = vunpack.c.l.b16 %v841
        %v874 = vunpack.c.l.b16 %v842
        %v875 = vunpack.c.l.b16 %v843
        %v876 = vunpack.c.l.b16 %v844
        %v877 = vpack.c.b16 %v862, %v861
        %v878 = vpack.c.b16 %v864, %v863
        %v879 = vpack.c.b16 %v866, %v865
        %v880 = vpack.c.b16 %v868, %v867
        %v881 = vpack.c.b16 %v870, %v869
        %v882 = vpack.c.b16 %v872, %v871
        %v883 = vpack.c.b16 %v874, %v873
        %v884 = vpack.c.b16 %v876, %v875
        %893 = vmatprep.subr.bf16.mxu0 0
        %894 = vmatpush1.bf16.msra.mxu0 %v884
        %895 = vmatprep.subr.bf16.mxu0 0
        %896 = vmatpush1.bf16.msra.mxu0 %v883
        %897 = vmatprep.subr.bf16.mxu0 0
        %898 = vmatpush1.bf16.msra.mxu0 %v882
        %899 = vmatprep.subr.bf16.mxu0 0
        %900 = vmatpush1.bf16.msra.mxu0 %v881
        %901 = vmatprep.subr.bf16.mxu0 0
        %902 = vmatpush1.bf16.msra.mxu0 %v880
        %903 = vmatprep.subr.bf16.mxu0 0
        %904 = vmatpush1.bf16.msra.mxu0 %v879
        %905 = vmatprep.subr.bf16.mxu0 0
        %906 = vmatpush1.bf16.msra.mxu0 %v878
        %907 = vmatprep.subr.bf16.mxu0 0
        %908 = vmatpush1.bf16.msra.mxu0 %v877
        %909 = vmatprep.subr.bf16.mxu0 0
        %910 = vmatpush2.bf16.msra.mxu0 0
        %911 = vmatprep.subr.bf16.mxu0 0
        %912 = vmatpush2.bf16.msra.mxu0 0
        %913 = vmatprep.subr.bf16.mxu0 0
        %914 = vmatpush2.bf16.msra.mxu0 0
        %915 = vmatprep.subr.bf16.mxu0 0
        %916 = vmatpush2.bf16.msra.mxu0 0
        %917 = vmatprep.subr.bf16.mxu0 0
        %918 = vmatpush2.bf16.msra.mxu0 0
        %919 = vmatprep.subr.bf16.mxu0 0
        %920 = vmatpush2.bf16.msra.mxu0 0
        %921 = vmatprep.subr.bf16.mxu0 0
        %922 = vmatpush2.bf16.msra.mxu0 0
        %923 = vmatprep.subr.bf16.mxu0 0
        %924 = vmatpush2.bf16.msra.mxu0 0
        %925 = vmatprep.mubr.bf16.mxu0 0
        %926 = vmatmul.mubr.bf16.gmra.mxu0 %v827
        %v927 = vpop.f32.mrf.mxu0
        %v928 = vadd.f32 0.0, %v927
        %v929 = vpop.f32.mrf.mxu0
        %v930 = vpop.f32.mrf.mxu0
        %v931 = vadd.f32 0.0, %v930
        %v932 = vpop.f32.mrf.mxu0
        %933 = vdwg.mxu0
        %v934 = vld [vmem:[%s5] sm:$0xf]
        %v935 = vld [vmem:[%s5 + $0x4] sm:$0xf]
        %v936 = vld [vmem:[%s5 + $0x8] sm:$0xf]
        %v937 = vld [vmem:[%s5 + $0xc] sm:$0xf]
        %v938 = vld [vmem:[%s5 + $0x10] sm:$0xf]
        %v939 = vld [vmem:[%s5 + $0x14] sm:$0xf]
        %v940 = vld [vmem:[%s5 + $0x18] sm:$0xf]
        %v941 = vld [vmem:[%s5 + $0x1c] sm:$0xf]
        %v950 = vunpack.c.l.b16 %v934
        %v951 = vunpack.c.l.b16 %v935
        %v952 = vunpack.c.l.b16 %v936
        %v953 = vunpack.c.l.b16 %v937
        %v954 = vunpack.c.l.b16 %v938
        %v955 = vunpack.c.l.b16 %v939
        %v956 = vunpack.c.l.b16 %v940
        %v957 = vunpack.c.l.b16 %v941
        %v958 = vpack.c.b16 %v951, %v950
        %v959 = vpack.c.b16 %v953, %v952
        %v960 = vpack.c.b16 %v955, %v954
        %v961 = vpack.c.b16 %v957, %v956
        %v967 = vsel %vm782, %v828, 0
        %969 = vmatprep.subr.bf16.mxu0 0
        %970 = vmatpush1.bf16.msra.mxu0 0
        %971 = vmatprep.subr.bf16.mxu0 0
        %972 = vmatpush1.bf16.msra.mxu0 0
        %973 = vmatprep.subr.bf16.mxu0 0
        %974 = vmatpush1.bf16.msra.mxu0 0
        %975 = vmatprep.subr.bf16.mxu0 0
        %976 = vmatpush1.bf16.msra.mxu0 0
        %977 = vmatprep.subr.bf16.mxu0 0
        %978 = vmatpush1.bf16.msra.mxu0 %v961
        %979 = vmatprep.subr.bf16.mxu0 0
        %980 = vmatpush1.bf16.msra.mxu0 %v960
        %981 = vmatprep.subr.bf16.mxu0 0
        %982 = vmatpush1.bf16.msra.mxu0 %v959
        %983 = vmatprep.subr.bf16.mxu0 0
        %984 = vmatpush1.bf16.msra.mxu0 %v958
        %985 = vmatprep.subr.bf16.mxu0 0
        %986 = vmatpush2.bf16.msra.mxu0 0
        %987 = vmatprep.subr.bf16.mxu0 0
        %988 = vmatpush2.bf16.msra.mxu0 0
        %989 = vmatprep.subr.bf16.mxu0 0
        %990 = vmatpush2.bf16.msra.mxu0 0
        %991 = vmatprep.subr.bf16.mxu0 0
        %992 = vmatpush2.bf16.msra.mxu0 0
        %993 = vmatprep.subr.bf16.mxu0 0
        %994 = vmatpush2.bf16.msra.mxu0 0
        %995 = vmatprep.subr.bf16.mxu0 0
        %996 = vmatpush2.bf16.msra.mxu0 0
        %997 = vmatprep.subr.bf16.mxu0 0
        %998 = vmatpush2.bf16.msra.mxu0 0
        %999 = vmatprep.subr.bf16.mxu0 0
        %1000 = vmatpush2.bf16.msra.mxu0 0
        %1001 = vmatprep.mubr.bf16.mxu0 0
        %1002 = vmatmul.mubr.bf16.gmra.mxu0 %v967
        %v1003 = vpop.f32.mrf.mxu0
        %v1004 = vadd.f32 0.0, %v1003
        %v1005 = vpop.f32.mrf.mxu0
        %v1006 = vpop.f32.mrf.mxu0
        %v1007 = vadd.f32 0.0, %v1006
        %v1008 = vpop.f32.mrf.mxu0
        %1009 = vdwg.mxu0
        %v1010 = vld [vmem:[%s6] sm:$0xf]
        %v1011 = vld [vmem:[%s6 + $0x4] sm:$0xf]
        %v1012 = vld [vmem:[%s6 + $0x8] sm:$0xf]
        %v1013 = vld [vmem:[%s6 + $0xc] sm:$0xf]
        %v1014 = vld [vmem:[%s6 + $0x10] sm:$0xf]
        %v1015 = vld [vmem:[%s6 + $0x14] sm:$0xf]
        %v1016 = vld [vmem:[%s6 + $0x18] sm:$0xf]
        %v1017 = vld [vmem:[%s6 + $0x1c] sm:$0xf]
        %v1026 = vunpack.c.l.b16 %v1010
        %v1027 = vunpack.c.l.b16 %v1011
        %v1028 = vunpack.c.l.b16 %v1012
        %v1029 = vunpack.c.l.b16 %v1013
        %v1030 = vunpack.c.l.b16 %v1014
        %v1031 = vunpack.c.l.b16 %v1015
        %v1032 = vunpack.c.l.b16 %v1016
        %v1033 = vunpack.c.l.b16 %v1017
        %v1034 = vpack.c.b16 %v1027, %v1026
        %v1035 = vpack.c.b16 %v1029, %v1028
        %v1036 = vpack.c.b16 %v1031, %v1030
        %v1037 = vpack.c.b16 %v1033, %v1032
        %1042 = vmatprep.subr.bf16.mxu0 0
        %1043 = vmatpush1.bf16.msra.mxu0 0
        %1044 = vmatprep.subr.bf16.mxu0 0
        %1045 = vmatpush1.bf16.msra.mxu0 0
        %1046 = vmatprep.subr.bf16.mxu0 0
        %1047 = vmatpush1.bf16.msra.mxu0 0
        %1048 = vmatprep.subr.bf16.mxu0 0
        %1049 = vmatpush1.bf16.msra.mxu0 0
        %1050 = vmatprep.subr.bf16.mxu0 0
        %1051 = vmatpush1.bf16.msra.mxu0 %v1037
        %1052 = vmatprep.subr.bf16.mxu0 0
        %1053 = vmatpush1.bf16.msra.mxu0 %v1036
        %1054 = vmatprep.subr.bf16.mxu0 0
        %1055 = vmatpush1.bf16.msra.mxu0 %v1035
        %1056 = vmatprep.subr.bf16.mxu0 0
        %1057 = vmatpush1.bf16.msra.mxu0 %v1034
        %1058 = vmatprep.subr.bf16.mxu0 0
        %1059 = vmatpush2.bf16.msra.mxu0 0
        %1060 = vmatprep.subr.bf16.mxu0 0
        %1061 = vmatpush2.bf16.msra.mxu0 0
        %1062 = vmatprep.subr.bf16.mxu0 0
        %1063 = vmatpush2.bf16.msra.mxu0 0
        %1064 = vmatprep.subr.bf16.mxu0 0
        %1065 = vmatpush2.bf16.msra.mxu0 0
        %1066 = vmatprep.subr.bf16.mxu0 0
        %1067 = vmatpush2.bf16.msra.mxu0 0
        %1068 = vmatprep.subr.bf16.mxu0 0
        %1069 = vmatpush2.bf16.msra.mxu0 0
        %1070 = vmatprep.subr.bf16.mxu0 0
        %1071 = vmatpush2.bf16.msra.mxu0 0
        %1072 = vmatprep.subr.bf16.mxu0 0
        %1073 = vmatpush2.bf16.msra.mxu0 0
        %1074 = vmatprep.mubr.bf16.mxu0 0
        %1075 = vmatmul.mubr.bf16.gmra.mxu0 %v967
        %v1076 = vpop.f32.mrf.mxu0
        %v1077 = vadd.f32 0.0, %v1076
        %v1078 = vpop.f32.mrf.mxu0
        %v1079 = vpop.f32.mrf.mxu0
        %v1080 = vadd.f32 0.0, %v1079
        %v1081 = vpop.f32.mrf.mxu0
        %1082 = vdwg.mxu0
        %v1083 = vpack.c.bf16 %v931, %v928
        %v1084 = vpack.c.bf16 %v1007, %v1004
        %vm1085 = vcmask 130048
        %v1087 = vsel %vm1085, %v1083, 0
        %v1090 = vsel %vm1085, %v1084, 0
        %1092 = vmatprep.subr.bf16.mxu0 0
        %1093 = vmatpush1.bf16.xpose.msra.mxu0 0
        %1094 = vmatprep.subr.bf16.mxu0 0
        %1095 = vmatpush1.bf16.xpose.msra.mxu0 0
        %1096 = vmatprep.subr.bf16.mxu0 0
        %1097 = vmatpush1.bf16.xpose.msra.mxu0 0
        %1098 = vmatprep.subr.bf16.mxu0 0
        %1099 = vmatpush1.bf16.xpose.msra.mxu0 0
        %1100 = vmatprep.subr.bf16.mxu0 0
        %1101 = vmatpush1.bf16.xpose.msra.mxu0 0
        %1102 = vmatprep.subr.bf16.mxu0 0
        %1103 = vmatpush1.bf16.xpose.msra.mxu0 0
        %1104 = vmatprep.subr.bf16.mxu0 0
        %1105 = vmatpush1.bf16.xpose.msra.mxu0 0
        %1106 = vmatprep.subr.bf16.mxu0 0
        %1107 = vmatpush1.bf16.xpose.msra.mxu0 %v1090
        %1108 = vmatprep.subr.bf16.mxu0 0
        %1109 = vmatpush2.bf16.xpose.msra.mxu0 0
        %1110 = vmatprep.subr.bf16.mxu0 0
        %1111 = vmatpush2.bf16.xpose.msra.mxu0 0
        %1112 = vmatprep.subr.bf16.mxu0 0
        %1113 = vmatpush2.bf16.xpose.msra.mxu0 0
        %1114 = vmatprep.subr.bf16.mxu0 0
        %1115 = vmatpush2.bf16.xpose.msra.mxu0 0
        %1116 = vmatprep.subr.bf16.mxu0 0
        %1117 = vmatpush2.bf16.xpose.msra.mxu0 0
        %1118 = vmatprep.subr.bf16.mxu0 0
        %1119 = vmatpush2.bf16.xpose.msra.mxu0 0
        %1120 = vmatprep.subr.bf16.mxu0 0
        %1121 = vmatpush2.bf16.xpose.msra.mxu0 0
        %1122 = vmatprep.subr.bf16.mxu0 0
        %1123 = vmatpush2.bf16.xpose.msra.mxu0 0
        %1124 = vmatprep.mubr.bf16.mxu0 0
        %1125 = vmatmul.mubr.bf16.gmra.mxu0 %v1087
        %v1126 = vpop.f32.mrf.mxu0
        %v1127 = vadd.f32 0.0, %v1126
        %v1128 = vpop.f32.mrf.mxu0
        %v1129 = vpop.f32.mrf.mxu0
        %v1130 = vadd.f32 0.0, %v1129
        %v1131 = vpop.f32.mrf.mxu0
        %1132 = vdwg.mxu0
        %v1133 = vmul.f32 %v1127, 0.25
        %v1134 = vmul.f32 %v1130, 0.25
        %v1135 = vsel %vm1085, %v1133, -inf
        %1136 = vmax.xlane.f32.xlu0 %v1135
        %v1137 = vpop.xlane.xlu0 %1136
        %v1138 = vsel %vm1085, %v1134, -inf
        %1139 = vmax.xlane.f32.xlu0 %v1138
        %v1140 = vpop.xlane.xlu0 %1139
        %v1141 = vsub.f32 %v1133, %v1137
        %v1142 = vsub.f32 %v1134, %v1140
        %v1143 = vmul.f32 %v1141, 1.442695
        %v1144 = vpow.pop %v1143
        %v1145 = vmul.f32 %v1142, 1.442695
        %v1146 = vpow.pop %v1145
        %v1147 = vsel %vm1085, %v1144, 0.0
        %1148 = vadd.xlane.f32.xlu0 %v1147
        %v1149 = vpop.xlane.xlu0 %1148
        %v1150 = vsel %vm1085, %v1146, 0.0
        %1151 = vadd.xlane.f32.xlu0 %v1150
        %v1152 = vpop.xlane.xlu0 %1151
        %v1153 = vrcp.pop %v1149
        %v1154 = vrcp.pop %v1152
        %v1155 = vmul.f32 %v1144, %v1153
        %v1156 = vmul.f32 %v1146, %v1154
        %v1157 = vpack.c.bf16 %v1156, %v1155
        %v1158 = vpack.c.bf16 %v1080, %v1077
        %v1160 = vsel %vm1085, %v1157, 0
        %1162 = vmatprep.subr.bf16.mxu0 0
        %1163 = vmatpush1.bf16.msra.mxu0 0
        %1164 = vmatprep.subr.bf16.mxu0 0
        %1165 = vmatpush1.bf16.msra.mxu0 0
        %1166 = vmatprep.subr.bf16.mxu0 0
        %1167 = vmatpush1.bf16.msra.mxu0 0
        %1168 = vmatprep.subr.bf16.mxu0 0
        %1169 = vmatpush1.bf16.msra.mxu0 0
        %1170 = vmatprep.subr.bf16.mxu0 0
        %1171 = vmatpush1.bf16.msra.mxu0 0
        %1172 = vmatprep.subr.bf16.mxu0 0
        %1173 = vmatpush1.bf16.msra.mxu0 0
        %1174 = vmatprep.subr.bf16.mxu0 0
        %1175 = vmatpush1.bf16.msra.mxu0 0
        %1176 = vmatprep.subr.bf16.mxu0 0
        %1177 = vmatpush1.bf16.msra.mxu0 %v1158
        %1178 = vmatprep.subr.bf16.mxu0 0
        %1179 = vmatpush2.bf16.msra.mxu0 0
        %1180 = vmatprep.subr.bf16.mxu0 0
        %1181 = vmatpush2.bf16.msra.mxu0 0
        %1182 = vmatprep.subr.bf16.mxu0 0
        %1183 = vmatpush2.bf16.msra.mxu0 0
        %1184 = vmatprep.subr.bf16.mxu0 0
        %1185 = vmatpush2.bf16.msra.mxu0 0
        %1186 = vmatprep.subr.bf16.mxu0 0
        %1187 = vmatpush2.bf16.msra.mxu0 0
        %1188 = vmatprep.subr.bf16.mxu0 0
        %1189 = vmatpush2.bf16.msra.mxu0 0
        %1190 = vmatprep.subr.bf16.mxu0 0
        %1191 = vmatpush2.bf16.msra.mxu0 0
        %1192 = vmatprep.subr.bf16.mxu0 0
        %1193 = vmatpush2.bf16.msra.mxu0 0
        %1194 = vmatprep.mubr.bf16.mxu0 0
        %1195 = vmatmul.mubr.bf16.gmra.mxu0 %v1160
        %v1196 = vpop.f32.mrf.mxu0
        %v1197 = vadd.f32 0.0, %v1196
        %v1198 = vpop.f32.mrf.mxu0
        %v1199 = vpop.f32.mrf.mxu0
        %v1200 = vadd.f32 0.0, %v1199
        %v1201 = vpop.f32.mrf.mxu0
        %1202 = vdwg.mxu0
        %v1203 = vpack.c.bf16 %v1200, %v1197
        %v1204 = vld [vmem:[%s7] sm:$0xf]
        %v1205 = vld [vmem:[%s7 + $0x4] sm:$0xf]
        %v1208 = vunpack.c.l.b16 %v1204
        %v1209 = vunpack.c.l.b16 %v1205
        %v1210 = vpack.c.b16 %v1209, %v1208
        %v1213 = vsel %vm1085, %v1203, 0
        %1215 = vmatprep.subr.bf16.mxu0 0
        %1216 = vmatpush1.bf16.msra.mxu0 0
        %1217 = vmatprep.subr.bf16.mxu0 0
        %1218 = vmatpush1.bf16.msra.mxu0 0
        %1219 = vmatprep.subr.bf16.mxu0 0
        %1220 = vmatpush1.bf16.msra.mxu0 0
        %1221 = vmatprep.subr.bf16.mxu0 0
        %1222 = vmatpush1.bf16.msra.mxu0 0
        %1223 = vmatprep.subr.bf16.mxu0 0
        %1224 = vmatpush1.bf16.msra.mxu0 0
        %1225 = vmatprep.subr.bf16.mxu0 0
        %1226 = vmatpush1.bf16.msra.mxu0 0
        %1227 = vmatprep.subr.bf16.mxu0 0
        %1228 = vmatpush1.bf16.msra.mxu0 0
        %1229 = vmatprep.subr.bf16.mxu0 0
        %1230 = vmatpush1.bf16.msra.mxu0 %v1210
        %1231 = vmatprep.subr.bf16.mxu0 0
        %1232 = vmatpush2.bf16.msra.mxu0 0
        %1233 = vmatprep.subr.bf16.mxu0 0
        %1234 = vmatpush2.bf16.msra.mxu0 0
        %1235 = vmatprep.subr.bf16.mxu0 0
        %1236 = vmatpush2.bf16.msra.mxu0 0
        %1237 = vmatprep.subr.bf16.mxu0 0
        %1238 = vmatpush2.bf16.msra.mxu0 0
        %1239 = vmatprep.subr.bf16.mxu0 0
        %1240 = vmatpush2.bf16.msra.mxu0 0
        %1241 = vmatprep.subr.bf16.mxu0 0
        %1242 = vmatpush2.bf16.msra.mxu0 0
        %1243 = vmatprep.subr.bf16.mxu0 0
        %1244 = vmatpush2.bf16.msra.mxu0 0
        %1245 = vmatprep.subr.bf16.mxu0 0
        %1246 = vmatpush2.bf16.msra.mxu0 0
        %1247 = vmatprep.mubr.bf16.mxu0 0
        %1248 = vmatmul.mubr.bf16.gmra.mxu0 %v1213
        %v1249 = vpop.f32.mrf.mxu0
        %v1250 = vadd.f32 0.0, %v1249
        %v1251 = vpop.f32.mrf.mxu0
        %v1252 = vpop.f32.mrf.mxu0
        %v1253 = vadd.f32 0.0, %v1252
        %v1254 = vpop.f32.mrf.mxu0
        %1255 = vdwg.mxu0
        %v1256 = vadd.f32 %v737, %v1250
        %v1257 = vadd.f32 %v738, %v1253
        %v1259 = vlaneseq
        %v1260 = vshrl.u32 %v1259, 7
        %v1261 = vsub.s32 0, %v1260
        %v1262 = vrot.slane %v826, %v1261
        %v1264 = vadd.f32 %v1256, %v1262
        %v1265 = vadd.f32 %v1257, %v1262
        %v1266 = vld [vmem:[%s9] sm:$0x3]
        %1267 = vadd.xlane.f32.xlu0 %v1264
        %v1268 = vpop.xlane.xlu0 %1267
        %1269 = vadd.xlane.f32.xlu0 %v1265
        %v1270 = vpop.xlane.xlu0 %1269
        %v1271 = vmul.f32 %v1264, %v1264
        %v1272 = vmul.f32 %v1265, %v1265
        %1273 = vadd.xlane.f32.xlu0 %v1271
        %v1274 = vpop.xlane.xlu0 %1273
        %1275 = vadd.xlane.f32.xlu0 %v1272
        %v1276 = vpop.xlane.xlu0 %1275
        %v1277 = vmul.f32 %v1268, %v752
        %v1278 = vmul.f32 %v1270, %v752
        %v1279 = vmul.f32 %v1274, %v752
        %v1280 = vmul.f32 %v1276, %v752
        %v1281 = vmul.f32 %v1277, %v1277
        %v1282 = vmul.f32 %v1278, %v1278
        %v1283 = vsub.f32 %v1279, %v1281
        %v1284 = vsub.f32 %v1280, %v1282
        %v1285 = vadd.f32 %v1283, 1e-05
        %v1286 = vadd.f32 %v1284, 1e-05
        %v1287 = vrsqrt.pop %v1285
        %v1288 = vrsqrt.pop %v1286
        %v1289 = vsub.f32 %v1264, %v1277
        %v1290 = vsub.f32 %v1265, %v1278
        %v1291 = vmul.f32 %v1289, %v1287
        %v1292 = vmul.f32 %v1290, %v1288
        %v1293 = vlaneseq
        %v1294 = vshrl.u32 %v1293, 7
        %v1295 = vsub.s32 0, %v1294
        %v1296 = vrot.slane %v1266, %v1295
        %v1297 = vmul.f32 %v1291, %v1296
        %v1298 = vmul.f32 %v1292, %v1296
        %v1299 = vlaneseq
        %v1300 = vshrl.u32 %v1299, 7
        %v1301 = vsub.s32 1, %v1300
        %v1302 = vrot.slane %v1266, %v1301
        %v1303 = vadd.f32 %v1297, %v1302
        %v1304 = vadd.f32 %v1298, %v1302
        %v1305 = vpack.c.bf16 %v1304, %v1303
        %v1306 = vld [vmem:[%s10] sm:$0xf]
        %v1307 = vld [vmem:[%s10 + $0x4] sm:$0xf]
        %v1308 = vld [vmem:[%s10 + $0x8] sm:$0xf]
        %v1309 = vld [vmem:[%s10 + $0xc] sm:$0xf]
        %v1310 = vld [vmem:[%s10 + $0x10] sm:$0xf]
        %v1311 = vld [vmem:[%s10 + $0x14] sm:$0xf]
        %v1312 = vld [vmem:[%s10 + $0x18] sm:$0xf]
        %v1313 = vld [vmem:[%s10 + $0x1c] sm:$0xf]
        %v1314 = vld [vmem:[%s10 + $0x20] sm:$0xf]
        %v1315 = vld [vmem:[%s10 + $0x24] sm:$0xf]
        %v1316 = vld [vmem:[%s10 + $0x28] sm:$0xf]
        %v1317 = vld [vmem:[%s10 + $0x2c] sm:$0xf]
        %v1318 = vld [vmem:[%s10 + $0x30] sm:$0xf]
        %v1319 = vld [vmem:[%s10 + $0x34] sm:$0xf]
        %v1320 = vld [vmem:[%s10 + $0x38] sm:$0xf]
        %v1321 = vld [vmem:[%s10 + $0x3c] sm:$0xf]
        %v1322 = vld [vmem:[%s11] sm:$0x1]
        %v1324 = vlaneseq
        %v1325 = vshrl.u32 %v1324, 7
        %v1326 = vsub.s32 0, %v1325
        %v1327 = vrot.slane %v1322, %v1326
        %v1345 = vunpack.c.l.b16 %v1306
        %v1346 = vunpack.c.l.b16 %v1307
        %v1347 = vunpack.c.l.b16 %v1308
        %v1348 = vunpack.c.l.b16 %v1309
        %v1349 = vunpack.c.l.b16 %v1310
        %v1350 = vunpack.c.l.b16 %v1311
        %v1351 = vunpack.c.l.b16 %v1312
        %v1352 = vunpack.c.l.b16 %v1313
        %v1353 = vunpack.c.l.b16 %v1314
        %v1354 = vunpack.c.l.b16 %v1315
        %v1355 = vunpack.c.l.b16 %v1316
        %v1356 = vunpack.c.l.b16 %v1317
        %v1357 = vunpack.c.l.b16 %v1318
        %v1358 = vunpack.c.l.b16 %v1319
        %v1359 = vunpack.c.l.b16 %v1320
        %v1360 = vunpack.c.l.b16 %v1321
        %v1361 = vpack.c.b16 %v1346, %v1345
        %v1362 = vpack.c.b16 %v1348, %v1347
        %v1363 = vpack.c.b16 %v1350, %v1349
        %v1364 = vpack.c.b16 %v1352, %v1351
        %v1365 = vpack.c.b16 %v1354, %v1353
        %v1366 = vpack.c.b16 %v1356, %v1355
        %v1367 = vpack.c.b16 %v1358, %v1357
        %v1368 = vpack.c.b16 %v1360, %v1359
        %1377 = vmatprep.subr.bf16.mxu0 0
        %1378 = vmatpush1.bf16.msra.mxu0 %v1368
        %1379 = vmatprep.subr.bf16.mxu0 0
        %1380 = vmatpush1.bf16.msra.mxu0 %v1367
        %1381 = vmatprep.subr.bf16.mxu0 0
        %1382 = vmatpush1.bf16.msra.mxu0 %v1366
        %1383 = vmatprep.subr.bf16.mxu0 0
        %1384 = vmatpush1.bf16.msra.mxu0 %v1365
        %1385 = vmatprep.subr.bf16.mxu0 0
        %1386 = vmatpush1.bf16.msra.mxu0 %v1364
        %1387 = vmatprep.subr.bf16.mxu0 0
        %1388 = vmatpush1.bf16.msra.mxu0 %v1363
        %1389 = vmatprep.subr.bf16.mxu0 0
        %1390 = vmatpush1.bf16.msra.mxu0 %v1362
        %1391 = vmatprep.subr.bf16.mxu0 0
        %1392 = vmatpush1.bf16.msra.mxu0 %v1361
        %1393 = vmatprep.subr.bf16.mxu0 0
        %1394 = vmatpush2.bf16.msra.mxu0 0
        %1395 = vmatprep.subr.bf16.mxu0 0
        %1396 = vmatpush2.bf16.msra.mxu0 0
        %1397 = vmatprep.subr.bf16.mxu0 0
        %1398 = vmatpush2.bf16.msra.mxu0 0
        %1399 = vmatprep.subr.bf16.mxu0 0
        %1400 = vmatpush2.bf16.msra.mxu0 0
        %1401 = vmatprep.subr.bf16.mxu0 0
        %1402 = vmatpush2.bf16.msra.mxu0 0
        %1403 = vmatprep.subr.bf16.mxu0 0
        %1404 = vmatpush2.bf16.msra.mxu0 0
        %1405 = vmatprep.subr.bf16.mxu0 0
        %1406 = vmatpush2.bf16.msra.mxu0 0
        %1407 = vmatprep.subr.bf16.mxu0 0
        %1408 = vmatpush2.bf16.msra.mxu0 0
        %1409 = vmatprep.mubr.bf16.mxu0 0
        %1410 = vmatmul.mubr.bf16.gmra.mxu0 %v1305
        %v1411 = vpop.f32.mrf.mxu0
        %v1412 = vadd.f32 %v1327, %v1411
        %v1413 = vpop.f32.mrf.mxu0
        %v1414 = vpop.f32.mrf.mxu0
        %v1415 = vadd.f32 %v1327, %v1414
        %v1416 = vpop.f32.mrf.mxu0
        %1417 = vdwg.mxu0
        %v1418 = vmul.f32 %v1412, %v1412
        %v1419 = vmul.f32 %v1415, %v1415
        %v1420 = vmul.f32 %v1412, %v1418
        %v1421 = vmul.f32 %v1415, %v1419
        %v1422 = vmul.f32 %v1420, 0.044715
        %v1423 = vmul.f32 %v1421, 0.044715
        %v1424 = vadd.f32 %v1412, %v1422
        %v1425 = vadd.f32 %v1415, %v1423
        %v1426 = vmul.f32 %v1424, 0.7978846
        %v1427 = vmul.f32 %v1425, 0.7978846
        %v1428 = vtanh.pop %v1426
        %v1429 = vtanh.pop %v1427
        %v1430 = vadd.f32 %v1428, 1.0
        %v1431 = vadd.f32 %v1429, 1.0
        %v1432 = vmul.f32 %v1430, 0.5
        %v1433 = vmul.f32 %v1431, 0.5
        %v1434 = vmul.f32 %v1412, %v1432
        %v1435 = vmul.f32 %v1415, %v1433
        %v1436 = vpack.c.bf16 %v1435, %v1434
        %v1437 = vld [vmem:[%s12] sm:$0xf]
        %v1438 = vld [vmem:[%s12 + $0x4] sm:$0xf]
        %v1439 = vld [vmem:[%s12 + $0x8] sm:$0xf]
        %v1440 = vld [vmem:[%s12 + $0xc] sm:$0xf]
        %v1441 = vld [vmem:[%s12 + $0x10] sm:$0xf]
        %v1442 = vld [vmem:[%s12 + $0x14] sm:$0xf]
        %v1443 = vld [vmem:[%s12 + $0x18] sm:$0xf]
        %v1444 = vld [vmem:[%s12 + $0x1c] sm:$0xf]
        %v1445 = vld [vmem:[%s12 + $0x20] sm:$0xf]
        %v1446 = vld [vmem:[%s12 + $0x24] sm:$0xf]
        %v1447 = vld [vmem:[%s12 + $0x28] sm:$0xf]
        %v1448 = vld [vmem:[%s12 + $0x2c] sm:$0xf]
        %v1449 = vld [vmem:[%s12 + $0x30] sm:$0xf]
        %v1450 = vld [vmem:[%s12 + $0x34] sm:$0xf]
        %v1451 = vld [vmem:[%s12 + $0x38] sm:$0xf]
        %v1452 = vld [vmem:[%s12 + $0x3c] sm:$0xf]
        %v1453 = vld [vmem:[%s13] sm:$0x1]
        %v1455 = vlaneseq
        %v1456 = vshrl.u32 %v1455, 7
        %v1457 = vsub.s32 0, %v1456
        %v1458 = vrot.slane %v1453, %v1457
        %v1476 = vunpack.c.l.b16 %v1437
        %v1477 = vunpack.c.l.b16 %v1438
        %v1478 = vunpack.c.l.b16 %v1439
        %v1479 = vunpack.c.l.b16 %v1440
        %v1480 = vunpack.c.l.b16 %v1441
        %v1481 = vunpack.c.l.b16 %v1442
        %v1482 = vunpack.c.l.b16 %v1443
        %v1483 = vunpack.c.l.b16 %v1444
        %v1484 = vunpack.c.l.b16 %v1445
        %v1485 = vunpack.c.l.b16 %v1446
        %v1486 = vunpack.c.l.b16 %v1447
        %v1487 = vunpack.c.l.b16 %v1448
        %v1488 = vunpack.c.l.b16 %v1449
        %v1489 = vunpack.c.l.b16 %v1450
        %v1490 = vunpack.c.l.b16 %v1451
        %v1491 = vunpack.c.l.b16 %v1452
        %v1492 = vpack.c.b16 %v1477, %v1476
        %v1493 = vpack.c.b16 %v1479, %v1478
        %v1494 = vpack.c.b16 %v1481, %v1480
        %v1495 = vpack.c.b16 %v1483, %v1482
        %v1496 = vpack.c.b16 %v1485, %v1484
        %v1497 = vpack.c.b16 %v1487, %v1486
        %v1498 = vpack.c.b16 %v1489, %v1488
        %v1499 = vpack.c.b16 %v1491, %v1490
        %1508 = vmatprep.subr.bf16.mxu0 0
        %1509 = vmatpush1.bf16.msra.mxu0 %v1499
        %1510 = vmatprep.subr.bf16.mxu0 0
        %1511 = vmatpush1.bf16.msra.mxu0 %v1498
        %1512 = vmatprep.subr.bf16.mxu0 0
        %1513 = vmatpush1.bf16.msra.mxu0 %v1497
        %1514 = vmatprep.subr.bf16.mxu0 0
        %1515 = vmatpush1.bf16.msra.mxu0 %v1496
        %1516 = vmatprep.subr.bf16.mxu0 0
        %1517 = vmatpush1.bf16.msra.mxu0 %v1495
        %1518 = vmatprep.subr.bf16.mxu0 0
        %1519 = vmatpush1.bf16.msra.mxu0 %v1494
        %1520 = vmatprep.subr.bf16.mxu0 0
        %1521 = vmatpush1.bf16.msra.mxu0 %v1493
        %1522 = vmatprep.subr.bf16.mxu0 0
        %1523 = vmatpush1.bf16.msra.mxu0 %v1492
        %1524 = vmatprep.subr.bf16.mxu0 0
        %1525 = vmatpush2.bf16.msra.mxu0 0
        %1526 = vmatprep.subr.bf16.mxu0 0
        %1527 = vmatpush2.bf16.msra.mxu0 0
        %1528 = vmatprep.subr.bf16.mxu0 0
        %1529 = vmatpush2.bf16.msra.mxu0 0
        %1530 = vmatprep.subr.bf16.mxu0 0
        %1531 = vmatpush2.bf16.msra.mxu0 0
        %1532 = vmatprep.subr.bf16.mxu0 0
        %1533 = vmatpush2.bf16.msra.mxu0 0
        %1534 = vmatprep.subr.bf16.mxu0 0
        %1535 = vmatpush2.bf16.msra.mxu0 0
        %1536 = vmatprep.subr.bf16.mxu0 0
        %1537 = vmatpush2.bf16.msra.mxu0 0
        %1538 = vmatprep.subr.bf16.mxu0 0
        %1539 = vmatpush2.bf16.msra.mxu0 0
        %1540 = vmatprep.mubr.bf16.mxu0 0
        %1541 = vmatmul.mubr.bf16.gmra.mxu0 %v1436
        %v1542 = vpop.f32.mrf.mxu0
        %v1543 = vadd.f32 %v1458, %v1542
        %v1544 = vpop.f32.mrf.mxu0
        %v1545 = vpop.f32.mrf.mxu0
        %v1546 = vadd.f32 %v1458, %v1545
        %v1547 = vpop.f32.mrf.mxu0
        %1548 = vdwg.mxu0
        %v1549 = vadd.f32 %v1264, %v1543
        %v1550 = vadd.f32 %v1265, %v1546
        %v1551 = vpack.c.bf16 %v1550, %v1549
        %v1552 = vld [vmem:[%s14] sm:$0xf]
        %v1553 = vld [vmem:[%s14 + $0x4] sm:$0xf]
        %v1554 = vld [vmem:[%s14 + $0x8] sm:$0xf]
        %v1555 = vld [vmem:[%s14 + $0xc] sm:$0xf]
        %v1556 = vld [vmem:[%s14 + $0x10] sm:$0xf]
        %v1557 = vld [vmem:[%s14 + $0x14] sm:$0xf]
        %v1558 = vld [vmem:[%s14 + $0x18] sm:$0xf]
        %v1559 = vld [vmem:[%s14 + $0x1c] sm:$0xf]
        %v1560 = vld [vmem:[%s14 + $0x20] sm:$0xf]
        %v1561 = vld [vmem:[%s14 + $0x24] sm:$0xf]
        %v1562 = vld [vmem:[%s14 + $0x28] sm:$0xf]
        %v1563 = vld [vmem:[%s14 + $0x2c] sm:$0xf]
        %v1564 = vld [vmem:[%s14 + $0x30] sm:$0xf]
        %v1565 = vld [vmem:[%s14 + $0x34] sm:$0xf]
        %v1566 = vld [vmem:[%s14 + $0x38] sm:$0xf]
        %v1567 = vld [vmem:[%s14 + $0x3c] sm:$0xf]
        %v1568 = vld [vmem:[%s15] sm:$0x1]
        %v1570 = vlaneseq
        %v1571 = vshrl.u32 %v1570, 7
        %v1572 = vsub.s32 0, %v1571
        %v1573 = vrot.slane %v1568, %v1572
        %v1591 = vunpack.c.l.b16 %v1552
        %v1592 = vunpack.c.l.b16 %v1553
        %v1593 = vunpack.c.l.b16 %v1554
        %v1594 = vunpack.c.l.b16 %v1555
        %v1595 = vunpack.c.l.b16 %v1556
        %v1596 = vunpack.c.l.b16 %v1557
        %v1597 = vunpack.c.l.b16 %v1558
        %v1598 = vunpack.c.l.b16 %v1559
        %v1599 = vunpack.c.l.b16 %v1560
        %v1600 = vunpack.c.l.b16 %v1561
        %v1601 = vunpack.c.l.b16 %v1562
        %v1602 = vunpack.c.l.b16 %v1563
        %v1603 = vunpack.c.l.b16 %v1564
        %v1604 = vunpack.c.l.b16 %v1565
        %v1605 = vunpack.c.l.b16 %v1566
        %v1606 = vunpack.c.l.b16 %v1567
        %v1607 = vpack.c.b16 %v1592, %v1591
        %v1608 = vpack.c.b16 %v1594, %v1593
        %v1609 = vpack.c.b16 %v1596, %v1595
        %v1610 = vpack.c.b16 %v1598, %v1597
        %v1611 = vpack.c.b16 %v1600, %v1599
        %v1612 = vpack.c.b16 %v1602, %v1601
        %v1613 = vpack.c.b16 %v1604, %v1603
        %v1614 = vpack.c.b16 %v1606, %v1605
        %1623 = vmatprep.subr.bf16.mxu0 0
        %1624 = vmatpush1.bf16.msra.mxu0 %v1614
        %1625 = vmatprep.subr.bf16.mxu0 0
        %1626 = vmatpush1.bf16.msra.mxu0 %v1613
        %1627 = vmatprep.subr.bf16.mxu0 0
        %1628 = vmatpush1.bf16.msra.mxu0 %v1612
        %1629 = vmatprep.subr.bf16.mxu0 0
        %1630 = vmatpush1.bf16.msra.mxu0 %v1611
        %1631 = vmatprep.subr.bf16.mxu0 0
        %1632 = vmatpush1.bf16.msra.mxu0 %v1610
        %1633 = vmatprep.subr.bf16.mxu0 0
        %1634 = vmatpush1.bf16.msra.mxu0 %v1609
        %1635 = vmatprep.subr.bf16.mxu0 0
        %1636 = vmatpush1.bf16.msra.mxu0 %v1608
        %1637 = vmatprep.subr.bf16.mxu0 0
        %1638 = vmatpush1.bf16.msra.mxu0 %v1607
        %1639 = vmatprep.subr.bf16.mxu0 0
        %1640 = vmatpush2.bf16.msra.mxu0 0
        %1641 = vmatprep.subr.bf16.mxu0 0
        %1642 = vmatpush2.bf16.msra.mxu0 0
        %1643 = vmatprep.subr.bf16.mxu0 0
        %1644 = vmatpush2.bf16.msra.mxu0 0
        %1645 = vmatprep.subr.bf16.mxu0 0
        %1646 = vmatpush2.bf16.msra.mxu0 0
        %1647 = vmatprep.subr.bf16.mxu0 0
        %1648 = vmatpush2.bf16.msra.mxu0 0
        %1649 = vmatprep.subr.bf16.mxu0 0
        %1650 = vmatpush2.bf16.msra.mxu0 0
        %1651 = vmatprep.subr.bf16.mxu0 0
        %1652 = vmatpush2.bf16.msra.mxu0 0
        %1653 = vmatprep.subr.bf16.mxu0 0
        %1654 = vmatpush2.bf16.msra.mxu0 0
        %1655 = vmatprep.mubr.bf16.mxu0 0
        %1656 = vmatmul.mubr.bf16.gmra.mxu0 %v1551
        %v1657 = vpop.f32.mrf.mxu0
        %v1658 = vadd.f32 %v1573, %v1657
        %v1659 = vpop.f32.mrf.mxu0
        %v1660 = vpop.f32.mrf.mxu0
        %v1661 = vadd.f32 %v1573, %v1660
        %v1662 = vpop.f32.mrf.mxu0
        %1663 = vdwg.mxu0
        %v1664 = vmax.f32 %v1658, 0.0
        %v1665 = vmax.f32 %v1661, 0.0
        %v1666 = vpack.c.bf16 %v1665, %v1664
        %v1667 = vld [vmem:[%s16] sm:$0xf]
        %v1668 = vld [vmem:[%s16 + $0x4] sm:$0xf]
        %v1669 = vld [vmem:[%s16 + $0x8] sm:$0xf]
        %v1670 = vld [vmem:[%s16 + $0xc] sm:$0xf]
        %v1671 = vld [vmem:[%s17] sm:$0x1]
        %v1673 = vlaneseq
        %v1674 = vshrl.u32 %v1673, 7
        %v1675 = vsub.s32 0, %v1674
        %v1676 = vrot.slane %v1671, %v1675
        %v1682 = vunpack.c.l.b16 %v1667
        %v1683 = vunpack.c.l.b16 %v1668
        %v1684 = vunpack.c.l.b16 %v1669
        %v1685 = vunpack.c.l.b16 %v1670
        %v1686 = vpack.c.b16 %v1683, %v1682
        %v1687 = vpack.c.b16 %v1685, %v1684
        %vm1690 = vcmask 261120
        %v1692 = vsel %vm1690, %v1666, 0
        %1694 = vmatprep.subr.bf16.mxu0 0
        %1695 = vmatpush1.bf16.msra.mxu0 0
        %1696 = vmatprep.subr.bf16.mxu0 0
        %1697 = vmatpush1.bf16.msra.mxu0 0
        %1698 = vmatprep.subr.bf16.mxu0 0
        %1699 = vmatpush1.bf16.msra.mxu0 0
        %1700 = vmatprep.subr.bf16.mxu0 0
        %1701 = vmatpush1.bf16.msra.mxu0 0
        %1702 = vmatprep.subr.bf16.mxu0 0
        %1703 = vmatpush1.bf16.msra.mxu0 0
        %1704 = vmatprep.subr.bf16.mxu0 0
        %1705 = vmatpush1.bf16.msra.mxu0 0
        %1706 = vmatprep.subr.bf16.mxu0 0
        %1707 = vmatpush1.bf16.msra.mxu0 %v1687
        %1708 = vmatprep.subr.bf16.mxu0 0
        %1709 = vmatpush1.bf16.msra.mxu0 %v1686
        %1710 = vmatprep.subr.bf16.mxu0 0
        %1711 = vmatpush2.bf16.msra.mxu0 0
        %1712 = vmatprep.subr.bf16.mxu0 0
        %1713 = vmatpush2.bf16.msra.mxu0 0
        %1714 = vmatprep.subr.bf16.mxu0 0
        %1715 = vmatpush2.bf16.msra.mxu0 0
        %1716 = vmatprep.subr.bf16.mxu0 0
        %1717 = vmatpush2.bf16.msra.mxu0 0
        %1718 = vmatprep.subr.bf16.mxu0 0
        %1719 = vmatpush2.bf16.msra.mxu0 0
        %1720 = vmatprep.subr.bf16.mxu0 0
        %1721 = vmatpush2.bf16.msra.mxu0 0
        %1722 = vmatprep.subr.bf16.mxu0 0
        %1723 = vmatpush2.bf16.msra.mxu0 0
        %1724 = vmatprep.subr.bf16.mxu0 0
        %1725 = vmatpush2.bf16.msra.mxu0 0
        %1726 = vmatprep.mubr.bf16.mxu0 0
        %1727 = vmatmul.mubr.bf16.gmra.mxu0 %v1692
        %v1728 = vpop.f32.mrf.mxu0
        %v1729 = vadd.f32 %v1676, %v1728
        %v1730 = vpop.f32.mrf.mxu0
        %v1731 = vpop.f32.mrf.mxu0
        %v1732 = vadd.f32 %v1676, %v1731
        %v1733 = vpop.f32.mrf.mxu0
        %1734 = vdwg.mxu0
        %v1735 = vmax.f32 %v1729, 0.0
        %v1736 = vmax.f32 %v1732, 0.0
        %v1737 = vpack.c.bf16 %v1736, %v1735
        %v1738 = vld [vmem:[%s18] sm:$0xf]
        %v1739 = vld [vmem:[%s18 + $0x4] sm:$0xf]
        %v1740 = vld [vmem:[%s18 + $0x8] sm:$0xf]
        %v1741 = vld [vmem:[%s18 + $0xc] sm:$0xf]
        %v1742 = vld [vmem:[%s19] sm:$0x1]
        %v1744 = vlaneseq
        %v1745 = vshrl.u32 %v1744, 7
        %v1746 = vsub.s32 0, %v1745
        %v1747 = vrot.slane %v1742, %v1746
        %v1753 = vunpack.c.l.b16 %v1738
        %v1754 = vunpack.c.l.b16 %v1739
        %v1755 = vunpack.c.l.b16 %v1740
        %v1756 = vunpack.c.l.b16 %v1741
        %v1757 = vpack.c.b16 %v1754, %v1753
        %v1758 = vpack.c.b16 %v1756, %v1755
        %v1762 = vsel %vm1690, %v1737, 0
        %1764 = vmatprep.subr.bf16.mxu0 0
        %1765 = vmatpush1.bf16.msra.mxu0 0
        %1766 = vmatprep.subr.bf16.mxu0 0
        %1767 = vmatpush1.bf16.msra.mxu0 0
        %1768 = vmatprep.subr.bf16.mxu0 0
        %1769 = vmatpush1.bf16.msra.mxu0 0
        %1770 = vmatprep.subr.bf16.mxu0 0
        %1771 = vmatpush1.bf16.msra.mxu0 0
        %1772 = vmatprep.subr.bf16.mxu0 0
        %1773 = vmatpush1.bf16.msra.mxu0 0
        %1774 = vmatprep.subr.bf16.mxu0 0
        %1775 = vmatpush1.bf16.msra.mxu0 0
        %1776 = vmatprep.subr.bf16.mxu0 0
        %1777 = vmatpush1.bf16.msra.mxu0 %v1758
        %1778 = vmatprep.subr.bf16.mxu0 0
        %1779 = vmatpush1.bf16.msra.mxu0 %v1757
        %1780 = vmatprep.subr.bf16.mxu0 0
        %1781 = vmatpush2.bf16.msra.mxu0 0
        %1782 = vmatprep.subr.bf16.mxu0 0
        %1783 = vmatpush2.bf16.msra.mxu0 0
        %1784 = vmatprep.subr.bf16.mxu0 0
        %1785 = vmatpush2.bf16.msra.mxu0 0
        %1786 = vmatprep.subr.bf16.mxu0 0
        %1787 = vmatpush2.bf16.msra.mxu0 0
        %1788 = vmatprep.subr.bf16.mxu0 0
        %1789 = vmatpush2.bf16.msra.mxu0 0
        %1790 = vmatprep.subr.bf16.mxu0 0
        %1791 = vmatpush2.bf16.msra.mxu0 0
        %1792 = vmatprep.subr.bf16.mxu0 0
        %1793 = vmatpush2.bf16.msra.mxu0 0
        %1794 = vmatprep.subr.bf16.mxu0 0
        %1795 = vmatpush2.bf16.msra.mxu0 0
        %1796 = vmatprep.mubr.bf16.mxu0 0
        %1797 = vmatmul.mubr.bf16.gmra.mxu0 %v1762
        %v1798 = vpop.f32.mrf.mxu0
        %v1799 = vadd.f32 %v1747, %v1798
        %v1800 = vpop.f32.mrf.mxu0
        %v1801 = vpop.f32.mrf.mxu0
        %v1802 = vadd.f32 %v1747, %v1801
        %v1803 = vpop.f32.mrf.mxu0
        %1804 = vdwg.mxu0
        %v1805 = vmax.f32 %v1799, 0.0
        %v1806 = vmax.f32 %v1802, 0.0
        %v1807 = vpack.c.bf16 %v1806, %v1805
        %v1808 = vld [vmem:[%s20] sm:$0xf]
        %v1809 = vld [vmem:[%s20 + $0x4] sm:$0xf]
        %v1810 = vld [vmem:[%s20 + $0x8] sm:$0xf]
        %v1811 = vld [vmem:[%s20 + $0xc] sm:$0xf]
        %v1812 = vld [vmem:[#allocation2] sm:$0x1]
        %v1814 = vlaneseq
        %v1815 = vshrl.u32 %v1814, 7
        %v1816 = vsub.s32 0, %v1815
        %v1817 = vrot.slane %v1812, %v1816
        %v1823 = vunpack.c.l.b16 %v1808
        %v1824 = vunpack.c.l.b16 %v1809
        %v1825 = vunpack.c.l.b16 %v1810
        %v1826 = vunpack.c.l.b16 %v1811
        %v1827 = vpack.c.b16 %v1824, %v1823
        %v1828 = vpack.c.b16 %v1826, %v1825
        %v1832 = vsel %vm1690, %v1807, 0
        %1834 = vmatprep.subr.bf16.mxu0 0
        %1835 = vmatpush1.bf16.msra.mxu0 0
        %1836 = vmatprep.subr.bf16.mxu0 0
        %1837 = vmatpush1.bf16.msra.mxu0 0
        %1838 = vmatprep.subr.bf16.mxu0 0
        %1839 = vmatpush1.bf16.msra.mxu0 0
        %1840 = vmatprep.subr.bf16.mxu0 0
        %1841 = vmatpush1.bf16.msra.mxu0 0
        %1842 = vmatprep.subr.bf16.mxu0 0
        %1843 = vmatpush1.bf16.msra.mxu0 0
        %1844 = vmatprep.subr.bf16.mxu0 0
        %1845 = vmatpush1.bf16.msra.mxu0 0
        %1846 = vmatprep.subr.bf16.mxu0 0
        %1847 = vmatpush1.bf16.msra.mxu0 %v1828
        %1848 = vmatprep.subr.bf16.mxu0 0
        %1849 = vmatpush1.bf16.msra.mxu0 %v1827
        %1850 = vmatprep.subr.bf16.mxu0 0
        %1851 = vmatpush2.bf16.msra.mxu0 0
        %1852 = vmatprep.subr.bf16.mxu0 0
        %1853 = vmatpush2.bf16.msra.mxu0 0
        %1854 = vmatprep.subr.bf16.mxu0 0
        %1855 = vmatpush2.bf16.msra.mxu0 0
        %1856 = vmatprep.subr.bf16.mxu0 0
        %1857 = vmatpush2.bf16.msra.mxu0 0
        %1858 = vmatprep.subr.bf16.mxu0 0
        %1859 = vmatpush2.bf16.msra.mxu0 0
        %1860 = vmatprep.subr.bf16.mxu0 0
        %1861 = vmatpush2.bf16.msra.mxu0 0
        %1862 = vmatprep.subr.bf16.mxu0 0
        %1863 = vmatpush2.bf16.msra.mxu0 0
        %1864 = vmatprep.subr.bf16.mxu0 0
        %1865 = vmatpush2.bf16.msra.mxu0 0
        %1866 = vmatprep.mubr.bf16.mxu0 0
        %1867 = vmatmul.mubr.bf16.gmra.mxu0 %v1832
        %v1868 = vpop.f32.mrf.mxu0
        %v1869 = vadd.f32 %v1817, %v1868
        %v1870 = vpop.f32.mrf.mxu0
        %v1871 = vpop.f32.mrf.mxu0
        %v1872 = vadd.f32 %v1817, %v1871
        %v1873 = vpop.f32.mrf.mxu0
        %1874 = vdwg.mxu0
        %v1875 = vxor.u32 %v1869, 2147483648
        %v1876 = vxor.u32 %v1872, 2147483648
        %v1877 = vmul.f32 %v1875, 1.442695
        %v1878 = vpow.pop %v1877
        %v1879 = vmul.f32 %v1876, 1.442695
        %v1880 = vpow.pop %v1879
        %v1881 = vadd.f32 %v1878, 1.0
        %v1882 = vadd.f32 %v1880, 1.0
        %v1883 = vrcp.pop %v1881
        %v1884 = vmul.f32 1.0, %v1883
        %v1885 = vrcp.pop %v1882
        %v1886 = vmul.f32 1.0, %v1885
        %1887 = vst [vmem:[%s734] sm:$0xff] %v1884
        %1888 = vst [vmem:[%s734 + $0x8] sm:$0xff] %v1886
        %s1889 = smul.u32 2, %s39
        %p1890 = scmp.lt.s32.totalorder %s38, 1
        %s1891 = scalar_select %p1890, %s38, 1
        %p1892 = scmp.lt.s32.totalorder %s1889, 1
        %s1893 = scalar_select %p1892, %s1889, 1
        %s1894 = smul.addr %s1891, 2
        %s1895 = sadd.s32 %s1893, %s1894
        %s1896 = smul.addr %s1895, 8
        %s1897 = scalar_lea.vmem %s22, %s1896
        // Predicated region
        $region113: #{rendering_attention_forward.3} parent=107 // pred_check
          %p1898 = pneg %p535
        $region114: #{rendering_attention_forward.3} parent=107 // pred_check_branch
          %1900 = sbr.rel (%p1898) target = $region116
        $region115: #{rendering_attention_forward.3} parent=107 // pred_region
          %s1901 = smul.u32 2, %s39
        $region116: #{rendering_attention_forward.3} parent=107 // pred_fallthru
          _
      $region108: #{rendering_attention_forward.3} parent=5 // pred_fallthru
        _
      %p1902 = scmp.le.s32.totalorder 2, %s29
      // Predicated region
      $region117: #{rendering_attention_forward.3} parent=5 // pred_check
        %p1903 = pneg %p1902
      $region118: #{rendering_attention_forward.3} parent=5 // pred_check_branch
        %1905 = sbr.rel (%p1903) target = $region120
      $region119: #{rendering_attention_forward.3} parent=5 // pred_region
        %s1906 = ssub.s32 %s29, 2
        // Predicated region
        $region121: #{rendering_attention_forward.3} parent=119 // pred_check
          %p1907 = pneg %p541
        $region122: #{rendering_attention_forward.3} parent=119 // pred_check_branch
          %1909 = sbr.rel (%p1907) target = $region124
        $region123: #{rendering_attention_forward.3} parent=119 // pred_region
          %s1910 = smul.u32 2, %s41
          %p1911 = scmp.lt.s32.totalorder %s40, 1
          %s1912 = scalar_select %p1911, %s40, 1
          %p1913 = scmp.lt.s32.totalorder %s1910, 1
          %s1914 = scalar_select %p1913, %s1910, 1
          %s1915 = smul.addr %s1912, 2
          %s1916 = sadd.s32 %s1914, %s1915
          %s1917 = smul.addr %s1916, 8
          %s1918 = scalar_lea.vmem %s22, %s1917
        $region124: #{rendering_attention_forward.3} parent=119 // pred_fallthru
          _
      $region120: #{rendering_attention_forward.3} parent=5 // pred_fallthru
        _
    $region6: #{rendering_attention_forward.3} parent=1 // loop_footer
      %s33 = sadd.s32 1, %s29
    $region7: #{rendering_attention_forward.3} parent=1 // loop_footer_branch
      %28 = sbr.rel target = $region3
    $region8: #{rendering_attention_forward.3} parent=1 // loop_exit
      _
    %1919 = vsyncpa [#allocation3], 1
    %s1920 = scalar_lea.sflag [#allocation3], 1
    %1921 = vsyncpa %s1920, 1

// kernel: rendering_attention_forward.2
$region0: #{rendering_attention_forward.2}
  #allocation0 [shape = 'u32[]', space=smem, size = 0x4, offset = 0x4, fixed_abs, tag = 'smem constant byte address 0x4 - core index']
  #allocation1 [shape = 'u32[144,128]{1,0:T(1,128)}', space=vmem, size = 0x12000, scoped, tag = 'internal scratch']
  %s0 = inlined_call_operand.smem [shape: u32[30], index: -1, kind: input, shape index: {}]
  %s1 = sld [smem:[%s0]]
  %s2 = scalar_lea.smem %s0, 1
  %s3 = sld [smem:[%s2]]
  %s4 = scalar_lea.smem %s0, 2
  %s5 = sld [smem:[%s4]]
  %s6 = scalar_lea.smem %s0, 3
  %s7 = sld [smem:[%s6]]
  %s8 = scalar_lea.smem %s0, 4
  %s9 = sld [smem:[%s8]]
  %s10 = scalar_lea.smem %s0, 5
  %s11 = sld [smem:[%s10]]
  %s12 = scalar_lea.smem %s0, 6
  %s13 = sld [smem:[%s12]]
  %s14 = scalar_lea.smem %s0, 7
  %s15 = sld [smem:[%s14]]
  %s16 = scalar_lea.smem %s0, 8
  %s17 = sld [smem:[%s16]]
  %s18 = scalar_lea.smem %s0, 9
  %s19 = sld [smem:[%s18]]
  %s20 = scalar_lea.smem %s0, 10
  %s21 = sld [smem:[%s20]]
  %s22 = scalar_lea.smem %s0, 11
  %s23 = sld [smem:[%s22]]
  %s24 = scalar_lea.smem %s0, 12
  %s25 = sld [smem:[%s24]]
  %s26 = scalar_lea.smem %s0, 13
  %s27 = sld [smem:[%s26]]
  %s28 = scalar_lea.smem %s0, 14
  %s29 = sld [smem:[%s28]]
  %s30 = scalar_lea.smem %s0, 15
  %s31 = sld [smem:[%s30]]
  %s32 = scalar_lea.smem %s0, 16
  %s33 = sld [smem:[%s32]]
  %s34 = scalar_lea.smem %s0, 17
  %s35 = sld [smem:[%s34]]
  %s36 = scalar_lea.smem %s0, 18
  %s37 = sld [smem:[%s36]]
  %s38 = scalar_lea.smem %s0, 19
  %s39 = sld [smem:[%s38]]
  %s40 = scalar_lea.smem %s0, 20
  %s41 = sld [smem:[%s40]]
  %s42 = scalar_lea.smem %s0, 21
  %s43 = sld [smem:[%s42]]
  %s44 = scalar_lea.smem %s0, 22
  %s45 = sld [smem:[%s44]]
  %s46 = scalar_lea.smem %s0, 23
  %s47 = sld [smem:[%s46]]
  %s48 = scalar_lea.smem %s0, 24
  %s49 = sld [smem:[%s48]]
  %s50 = scalar_lea.smem %s0, 25
  %s51 = sld [smem:[%s50]]
  %s52 = scalar_lea.smem %s0, 26
  %s53 = sld [smem:[%s52]]
  %s54 = scalar_lea.smem %s0, 27
  %s55 = sld [smem:[%s54]]
  %s56 = scalar_lea.smem %s0, 28
  %s57 = sld [smem:[%s56]]
  %s58 = scalar_lea.smem %s0, 29
  %s59 = sld [smem:[%s58]]
  %s60 = sld [smem:[#allocation0]]
  $region126: #{rendering_attention_forward.2} parent=0
    _
  %s62 = ssub.s32 1, %s60
  %s63 = scalar_select 0, %s62, %s60
  // Predicated region
  $region2: #{rendering_attention_forward.2} parent=0 // pred_check
    _
  $region3: #{rendering_attention_forward.2} parent=0 // pred_check_branch
    %65 = sbr.rel (0) target = $region5
  $region4: #{rendering_attention_forward.2} parent=0 // pred_region
    _
  $region5: #{rendering_attention_forward.2} parent=0 // pred_fallthru
    _
  // Predicated region
  $region6: #{rendering_attention_forward.2} parent=0 // pred_check
    _
  $region7: #{rendering_attention_forward.2} parent=0 // pred_check_branch
    %67 = sbr.rel (0) target = $region9
  $region8: #{rendering_attention_forward.2} parent=0 // pred_region
    _
  $region9: #{rendering_attention_forward.2} parent=0 // pred_fallthru
    _
  // Predicated region
  $region10: #{rendering_attention_forward.2} parent=0 // pred_check
    _
  $region11: #{rendering_attention_forward.2} parent=0 // pred_check_branch
    %69 = sbr.rel (0) target = $region13
  $region12: #{rendering_attention_forward.2} parent=0 // pred_region
    _
  $region13: #{rendering_attention_forward.2} parent=0 // pred_fallthru
    _
  // Predicated region
  $region14: #{rendering_attention_forward.2} parent=0 // pred_check
    _
  $region15: #{rendering_attention_forward.2} parent=0 // pred_check_branch
    %71 = sbr.rel (0) target = $region17
  $region16: #{rendering_attention_forward.2} parent=0 // pred_region
    _
  $region17: #{rendering_attention_forward.2} parent=0 // pred_fallthru
    _
  // Predicated region
  $region18: #{rendering_attention_forward.2} parent=0 // pred_check
    _
  $region19: #{rendering_attention_forward.2} parent=0 // pred_check_branch
    %73 = sbr.rel (0) target = $region21
  $region20: #{rendering_attention_forward.2} parent=0 // pred_region
    _
  $region21: #{rendering_attention_forward.2} parent=0 // pred_fallthru
    _
  // Predicated region
  $region22: #{rendering_attention_forward.2} parent=0 // pred_check
    _
  $region23: #{rendering_attention_forward.2} parent=0 // pred_check_branch
    %75 = sbr.rel (0) target = $region25
  $region24: #{rendering_attention_forward.2} parent=0 // pred_region
    _
  $region25: #{rendering_attention_forward.2} parent=0 // pred_fallthru
    _
  // Predicated region
  $region26: #{rendering_attention_forward.2} parent=0 // pred_check
    _
  $region27: #{rendering_attention_forward.2} parent=0 // pred_check_branch
    %77 = sbr.rel (0) target = $region29
  $region28: #{rendering_attention_forward.2} parent=0 // pred_region
    _
  $region29: #{rendering_attention_forward.2} parent=0 // pred_fallthru
    _
  // Predicated region
  $region30: #{rendering_attention_forward.2} parent=0 // pred_check
    _
  $region31: #{rendering_attention_forward.2} parent=0 // pred_check_branch
    %79 = sbr.rel (0) target = $region33
  $region32: #{rendering_attention_forward.2} parent=0 // pred_region
    _
  $region33: #{rendering_attention_forward.2} parent=0 // pred_fallthru
    _
  // Predicated region
  $region34: #{rendering_attention_forward.2} parent=0 // pred_check
    _
  $region35: #{rendering_attention_forward.2} parent=0 // pred_check_branch
    %81 = sbr.rel (0) target = $region37
  $region36: #{rendering_attention_forward.2} parent=0 // pred_region
    _
  $region37: #{rendering_attention_forward.2} parent=0 // pred_fallthru
    _
  // Predicated region
  $region38: #{rendering_attention_forward.2} parent=0 // pred_check
    _
  $region39: #{rendering_attention_forward.2} parent=0 // pred_check_branch
    %83 = sbr.rel (0) target = $region41
  $region40: #{rendering_attention_forward.2} parent=0 // pred_region
    _
  $region41: #{rendering_attention_forward.2} parent=0 // pred_fallthru
    _
  // Predicated region
  $region42: #{rendering_attention_forward.2} parent=0 // pred_check
    _
  $region43: #{rendering_attention_forward.2} parent=0 // pred_check_branch
    %85 = sbr.rel (0) target = $region45
  $region44: #{rendering_attention_forward.2} parent=0 // pred_region
    _
  $region45: #{rendering_attention_forward.2} parent=0 // pred_fallthru
    _
  // Predicated region
  $region46: #{rendering_attention_forward.2} parent=0 // pred_check
    _
  $region47: #{rendering_attention_forward.2} parent=0 // pred_check_branch
    %87 = sbr.rel (0) target = $region49
  $region48: #{rendering_attention_forward.2} parent=0 // pred_region
    _
  $region49: #{rendering_attention_forward.2} parent=0 // pred_fallthru
    _
  // Predicated region
  $region50: #{rendering_attention_forward.2} parent=0 // pred_check
    _
  $region51: #{rendering_attention_forward.2} parent=0 // pred_check_branch
    %89 = sbr.rel (0) target = $region53
  $region52: #{rendering_attention_forward.2} parent=0 // pred_region
    _
  $region53: #{rendering_attention_forward.2} parent=0 // pred_fallthru
    _
  // Predicated region
  $region54: #{rendering_attention_forward.2} parent=0 // pred_check
    _
  $region55: #{rendering_attention_forward.2} parent=0 // pred_check_branch
    %91 = sbr.rel (0) target = $region57
  $region56: #{rendering_attention_forward.2} parent=0 // pred_region
    _
  $region57: #{rendering_attention_forward.2} parent=0 // pred_fallthru
    _
  // Predicated region
  $region58: #{rendering_attention_forward.2} parent=0 // pred_check
    _
  $region59: #{rendering_attention_forward.2} parent=0 // pred_check_branch
    %93 = sbr.rel (0) target = $region61
  $region60: #{rendering_attention_forward.2} parent=0 // pred_region
    _
  $region61: #{rendering_attention_forward.2} parent=0 // pred_fallthru
    _
  // Predicated region
  $region62: #{rendering_attention_forward.2} parent=0 // pred_check
    _
  $region63: #{rendering_attention_forward.2} parent=0 // pred_check_branch
    %95 = sbr.rel (0) target = $region65
  $region64: #{rendering_attention_forward.2} parent=0 // pred_region
    _
  $region65: #{rendering_attention_forward.2} parent=0 // pred_fallthru
    _
  // Predicated region
  $region66: #{rendering_attention_forward.2} parent=0 // pred_check
    _
  $region67: #{rendering_attention_forward.2} parent=0 // pred_check_branch
    %97 = sbr.rel (0) target = $region69
  $region68: #{rendering_attention_forward.2} parent=0 // pred_region
    _
  $region69: #{rendering_attention_forward.2} parent=0 // pred_fallthru
    _
  // Predicated region
  $region70: #{rendering_attention_forward.2} parent=0 // pred_check
    _
  $region71: #{rendering_attention_forward.2} parent=0 // pred_check_branch
    %99 = sbr.rel (0) target = $region73
  $region72: #{rendering_attention_forward.2} parent=0 // pred_region
    _
  $region73: #{rendering_attention_forward.2} parent=0 // pred_fallthru
    _
  // Predicated region
  $region74: #{rendering_attention_forward.2} parent=0 // pred_check
    _
  $region75: #{rendering_attention_forward.2} parent=0 // pred_check_branch
    %101 = sbr.rel (0) target = $region77
  $region76: #{rendering_attention_forward.2} parent=0 // pred_region
    _
  $region77: #{rendering_attention_forward.2} parent=0 // pred_fallthru
    _
  // Predicated region
  $region78: #{rendering_attention_forward.2} parent=0 // pred_check
    _
  $region79: #{rendering_attention_forward.2} parent=0 // pred_check_branch
    %103 = sbr.rel (0) target = $region81
  $region80: #{rendering_attention_forward.2} parent=0 // pred_region
    _
  $region81: #{rendering_attention_forward.2} parent=0 // pred_fallthru
    _
  // Predicated region
  $region82: #{rendering_attention_forward.2} parent=0 // pred_check
    _
  $region83: #{rendering_attention_forward.2} parent=0 // pred_check_branch
    %105 = sbr.rel (0) target = $region85
  $region84: #{rendering_attention_forward.2} parent=0 // pred_region
    _
  $region85: #{rendering_attention_forward.2} parent=0 // pred_fallthru
    _
  // Predicated region
  $region86: #{rendering_attention_forward.2} parent=0 // pred_check
    _
  $region87: #{rendering_attention_forward.2} parent=0 // pred_check_branch
    %107 = sbr.rel (0) target = $region89
  $region88: #{rendering_attention_forward.2} parent=0 // pred_region
    _
  $region89: #{rendering_attention_forward.2} parent=0 // pred_fallthru
    _
  // Predicated region
  $region90: #{rendering_attention_forward.2} parent=0 // pred_check
    _
  $region91: #{rendering_attention_forward.2} parent=0 // pred_check_branch
    %109 = sbr.rel (0) target = $region93
  $region92: #{rendering_attention_forward.2} parent=0 // pred_region
    _
  $region93: #{rendering_attention_forward.2} parent=0 // pred_fallthru
    _
  // Predicated region
  $region94: #{rendering_attention_forward.2} parent=0 // pred_check
    _
  $region95: #{rendering_attention_forward.2} parent=0 // pred_check_branch
    %111 = sbr.rel (0) target = $region97
  $region96: #{rendering_attention_forward.2} parent=0 // pred_region
    _
  $region97: #{rendering_attention_forward.2} parent=0 // pred_fallthru
    _
  // Predicated region
  $region98: #{rendering_attention_forward.2} parent=0 // pred_check
    _
  $region99: #{rendering_attention_forward.2} parent=0 // pred_check_branch
    %113 = sbr.rel (0) target = $region101
  $region100: #{rendering_attention_forward.2} parent=0 // pred_region
    _
  $region101: #{rendering_attention_forward.2} parent=0 // pred_fallthru
    _
  // Predicated region
  $region102: #{rendering_attention_forward.2} parent=0 // pred_check
    _
  $region103: #{rendering_attention_forward.2} parent=0 // pred_check_branch
    %115 = sbr.rel (0) target = $region105
  $region104: #{rendering_attention_forward.2} parent=0 // pred_region
    _
  $region105: #{rendering_attention_forward.2} parent=0 // pred_fallthru
    _
  // Predicated region
  $region106: #{rendering_attention_forward.2} parent=0 // pred_check
    _
  $region107: #{rendering_attention_forward.2} parent=0 // pred_check_branch
    %117 = sbr.rel (0) target = $region109
  $region108: #{rendering_attention_forward.2} parent=0 // pred_region
    _
  $region109: #{rendering_attention_forward.2} parent=0 // pred_fallthru
    _
  // Predicated region
  $region110: #{rendering_attention_forward.2} parent=0 // pred_check
    _
  $region111: #{rendering_attention_forward.2} parent=0 // pred_check_branch
    %119 = sbr.rel (0) target = $region113
  $region112: #{rendering_attention_forward.2} parent=0 // pred_region
    _
  $region113: #{rendering_attention_forward.2} parent=0 // pred_fallthru
    _
  // Predicated region
  $region114: #{rendering_attention_forward.2} parent=0 // pred_check
    _
  $region115: #{rendering_attention_forward.2} parent=0 // pred_check_branch
    %121 = sbr.rel (0) target = $region117
  $region116: #{rendering_attention_forward.2} parent=0 // pred_region
    _
  $region117: #{rendering_attention_forward.2} parent=0 // pred_fallthru
    _
  %v123 = vld [vmem:[%s1] sm:$0xff]
  %v124 = vld [vmem:[%s1 + $0x8] sm:$0xff]
  %v125 = vld [vmem:[%s3] sm:$0xff]
  %v126 = vld [vmem:[%s3 + $0x8] sm:$0xff]
  %v127 = vld [vmem:[%s3 + $0x10] sm:$0xff]
  %v128 = vld [vmem:[%s5] sm:$0x3]
  %vm129 = vcmask 523264
  %v130 = vsel %vm129, %v123, 0.0
  %131 = vadd.xlane.f32.xlu0 %v130
  %v132 = vpop.xlane.xlu0 %131
  %v133 = vsel %vm129, %v124, 0.0
  %134 = vadd.xlane.f32.xlu0 %v133
  %v135 = vpop.xlane.xlu0 %134
  %v136 = vmul.f32 %v123, %v123
  %v137 = vmul.f32 %v124, %v124
  %v138 = vsel %vm129, %v136, 0.0
  %139 = vadd.xlane.f32.xlu0 %v138
  %v140 = vpop.xlane.xlu0 %139
  %v141 = vsel %vm129, %v137, 0.0
  %142 = vadd.xlane.f32.xlu0 %v141
  %v143 = vpop.xlane.xlu0 %142
  %v144 = vrcp.pop 64.0
  %v145 = vmul.f32 %v132, %v144
  %v146 = vmul.f32 %v135, %v144
  %v147 = vmul.f32 %v140, %v144
  %v148 = vmul.f32 %v143, %v144
  %v149 = vmul.f32 %v145, %v145
  %v150 = vmul.f32 %v146, %v146
  %v151 = vsub.f32 %v147, %v149
  %v152 = vsub.f32 %v148, %v150
  %v153 = vadd.f32 %v151, 1e-05
  %v154 = vadd.f32 %v152, 1e-05
  %v155 = vrsqrt.pop %v153
  %v156 = vrsqrt.pop %v154
  %v157 = vsub.f32 %v123, %v145
  %v158 = vsub.f32 %v124, %v146
  %v159 = vmul.f32 %v157, %v155
  %v160 = vmul.f32 %v158, %v156
  %v161 = vlaneseq
  %v162 = vshrl.u32 %v161, 7
  %v163 = vsub.s32 0, %v162
  %v164 = vrot.slane %v128, %v163
  %v165 = vmul.f32 %v159, %v164
  %v166 = vmul.f32 %v160, %v164
  %v167 = vlaneseq
  %v168 = vshrl.u32 %v167, 7
  %v169 = vsub.s32 1, %v168
  %v170 = vrot.slane %v128, %v169
  %v171 = vadd.f32 %v165, %v170
  %v172 = vadd.f32 %v166, %v170
  %v173 = vld [vmem:[%s7] sm:$0x3]
  %vm174 = vcmask 261120
  %v175 = vsel %vm174, %v125, 0.0
  %176 = vadd.xlane.f32.xlu0 %v175
  %v177 = vpop.xlane.xlu0 %176
  %v178 = vsel %vm174, %v126, 0.0
  %179 = vadd.xlane.f32.xlu0 %v178
  %v180 = vpop.xlane.xlu0 %179
  %v181 = vsel %vm174, %v127, 0.0
  %182 = vadd.xlane.f32.xlu0 %v181
  %v183 = vpop.xlane.xlu0 %182
  %v184 = vmul.f32 %v125, %v125
  %v185 = vmul.f32 %v126, %v126
  %v186 = vmul.f32 %v127, %v127
  %v187 = vsel %vm174, %v184, 0.0
  %188 = vadd.xlane.f32.xlu0 %v187
  %v189 = vpop.xlane.xlu0 %188
  %v190 = vsel %vm174, %v185, 0.0
  %191 = vadd.xlane.f32.xlu0 %v190
  %v192 = vpop.xlane.xlu0 %191
  %v193 = vsel %vm174, %v186, 0.0
  %194 = vadd.xlane.f32.xlu0 %v193
  %v195 = vpop.xlane.xlu0 %194
  %v196 = vrcp.pop 32.0
  %v197 = vmul.f32 %v177, %v196
  %v198 = vmul.f32 %v180, %v196
  %v199 = vmul.f32 %v183, %v196
  %v200 = vmul.f32 %v189, %v196
  %v201 = vmul.f32 %v192, %v196
  %v202 = vmul.f32 %v195, %v196
  %v203 = vmul.f32 %v197, %v197
  %v204 = vmul.f32 %v198, %v198
  %v205 = vmul.f32 %v199, %v199
  %v206 = vsub.f32 %v200, %v203
  %v207 = vsub.f32 %v201, %v204
  %v208 = vsub.f32 %v202, %v205
  %v209 = vadd.f32 %v206, 1e-05
  %v210 = vadd.f32 %v207, 1e-05
  %v211 = vadd.f32 %v208, 1e-05
  %v212 = vrsqrt.pop %v209
  %v213 = vrsqrt.pop %v210
  %v214 = vrsqrt.pop %v211
  %v215 = vsub.f32 %v125, %v197
  %v216 = vsub.f32 %v126, %v198
  %v217 = vsub.f32 %v127, %v199
  %v218 = vmul.f32 %v215, %v212
  %v219 = vmul.f32 %v216, %v213
  %v220 = vmul.f32 %v217, %v214
  %v221 = vlaneseq
  %v222 = vshrl.u32 %v221, 7
  %v223 = vsub.s32 0, %v222
  %v224 = vrot.slane %v173, %v223
  %v225 = vmul.f32 %v218, %v224
  %v226 = vmul.f32 %v219, %v224
  %v227 = vmul.f32 %v220, %v224
  %v228 = vlaneseq
  %v229 = vshrl.u32 %v228, 7
  %v230 = vsub.s32 1, %v229
  %v231 = vrot.slane %v173, %v230
  %v232 = vadd.f32 %v225, %v231
  %v233 = vadd.f32 %v226, %v231
  %v234 = vadd.f32 %v227, %v231
  %v235 = vld [vmem:[%s17] sm:$0x1]
  %v236 = vpack.c.bf16 %v172, %v171
  %v237 = vpack.c.bf16 %v233, %v232
  %v238 = vpack.c.bf16 %v234, %v234
  %v239 = vld [vmem:[%s9] sm:$0xf]
  %v240 = vld [vmem:[%s9 + $0x4] sm:$0xf]
  %v241 = vld [vmem:[%s9 + $0x8] sm:$0xf]
  %v242 = vld [vmem:[%s9 + $0xc] sm:$0xf]
  %v243 = vld [vmem:[%s9 + $0x10] sm:$0xf]
  %v244 = vld [vmem:[%s9 + $0x14] sm:$0xf]
  %v245 = vld [vmem:[%s9 + $0x18] sm:$0xf]
  %v246 = vld [vmem:[%s9 + $0x1c] sm:$0xf]
  %v255 = vunpack.c.l.b16 %v239
  %v256 = vunpack.c.l.b16 %v240
  %v257 = vunpack.c.l.b16 %v241
  %v258 = vunpack.c.l.b16 %v242
  %v259 = vunpack.c.l.b16 %v243
  %v260 = vunpack.c.l.b16 %v244
  %v261 = vunpack.c.l.b16 %v245
  %v262 = vunpack.c.l.b16 %v246
  %v263 = vpack.c.b16 %v256, %v255
  %v264 = vpack.c.b16 %v258, %v257
  %v265 = vpack.c.b16 %v260, %v259
  %v266 = vpack.c.b16 %v262, %v261
  %v272 = vsel %vm129, %v236, 0
  %274 = vmatprep.subr.bf16.mxu0 0
  %275 = vmatpush1.bf16.msra.mxu0 0
  %276 = vmatprep.subr.bf16.mxu0 0
  %277 = vmatpush1.bf16.msra.mxu0 0
  %278 = vmatprep.subr.bf16.mxu0 0
  %279 = vmatpush1.bf16.msra.mxu0 0
  %280 = vmatprep.subr.bf16.mxu0 0
  %281 = vmatpush1.bf16.msra.mxu0 0
  %282 = vmatprep.subr.bf16.mxu0 0
  %283 = vmatpush1.bf16.msra.mxu0 %v266
  %284 = vmatprep.subr.bf16.mxu0 0
  %285 = vmatpush1.bf16.msra.mxu0 %v265
  %286 = vmatprep.subr.bf16.mxu0 0
  %287 = vmatpush1.bf16.msra.mxu0 %v264
  %288 = vmatprep.subr.bf16.mxu0 0
  %289 = vmatpush1.bf16.msra.mxu0 %v263
  %290 = vmatprep.subr.bf16.mxu0 0
  %291 = vmatpush2.bf16.msra.mxu0 0
  %292 = vmatprep.subr.bf16.mxu0 0
  %293 = vmatpush2.bf16.msra.mxu0 0
  %294 = vmatprep.subr.bf16.mxu0 0
  %295 = vmatpush2.bf16.msra.mxu0 0
  %296 = vmatprep.subr.bf16.mxu0 0
  %297 = vmatpush2.bf16.msra.mxu0 0
  %298 = vmatprep.subr.bf16.mxu0 0
  %299 = vmatpush2.bf16.msra.mxu0 0
  %300 = vmatprep.subr.bf16.mxu0 0
  %301 = vmatpush2.bf16.msra.mxu0 0
  %302 = vmatprep.subr.bf16.mxu0 0
  %303 = vmatpush2.bf16.msra.mxu0 0
  %304 = vmatprep.subr.bf16.mxu0 0
  %305 = vmatpush2.bf16.msra.mxu0 0
  %306 = vmatprep.mubr.bf16.mxu0 0
  %307 = vmatmul.mubr.bf16.gmra.mxu0 %v272
  %v308 = vpop.f32.mrf.mxu0
  %v309 = vadd.f32 0.0, %v308
  %v310 = vpop.f32.mrf.mxu0
  %v311 = vpop.f32.mrf.mxu0
  %v312 = vadd.f32 0.0, %v311
  %v313 = vpop.f32.mrf.mxu0
  %314 = vdwg.mxu0
  %v315 = vld [vmem:[%s11] sm:$0xf]
  %v316 = vld [vmem:[%s11 + $0x4] sm:$0xf]
  %v317 = vld [vmem:[%s11 + $0x8] sm:$0xf]
  %v318 = vld [vmem:[%s11 + $0xc] sm:$0xf]
  %v323 = vunpack.c.l.b16 %v315
  %v324 = vunpack.c.l.b16 %v316
  %v325 = vunpack.c.l.b16 %v317
  %v326 = vunpack.c.l.b16 %v318
  %v327 = vpack.c.b16 %v324, %v323
  %v328 = vpack.c.b16 %v326, %v325
  %v332 = vsel %vm174, %v237, 0
  %v335 = vsel %vm174, %v238, 0
  %337 = vmatprep.subr.bf16.mxu0 0
  %338 = vmatpush1.bf16.msra.mxu0 0
  %339 = vmatprep.subr.bf16.mxu0 0
  %340 = vmatpush1.bf16.msra.mxu0 0
  %341 = vmatprep.subr.bf16.mxu0 0
  %342 = vmatpush1.bf16.msra.mxu0 0
  %343 = vmatprep.subr.bf16.mxu0 0
  %344 = vmatpush1.bf16.msra.mxu0 0
  %345 = vmatprep.subr.bf16.mxu0 0
  %346 = vmatpush1.bf16.msra.mxu0 0
  %347 = vmatprep.subr.bf16.mxu0 0
  %348 = vmatpush1.bf16.msra.mxu0 0
  %349 = vmatprep.subr.bf16.mxu0 0
  %350 = vmatpush1.bf16.msra.mxu0 %v328
  %351 = vmatprep.subr.bf16.mxu0 0
  %352 = vmatpush1.bf16.msra.mxu0 %v327
  %353 = vmatprep.subr.bf16.mxu0 0
  %354 = vmatpush2.bf16.msra.mxu0 0
  %355 = vmatprep.subr.bf16.mxu0 0
  %356 = vmatpush2.bf16.msra.mxu0 0
  %357 = vmatprep.subr.bf16.mxu0 0
  %358 = vmatpush2.bf16.msra.mxu0 0
  %359 = vmatprep.subr.bf16.mxu0 0
  %360 = vmatpush2.bf16.msra.mxu0 0
  %361 = vmatprep.subr.bf16.mxu0 0
  %362 = vmatpush2.bf16.msra.mxu0 0
  %363 = vmatprep.subr.bf16.mxu0 0
  %364 = vmatpush2.bf16.msra.mxu0 0
  %365 = vmatprep.subr.bf16.mxu0 0
  %366 = vmatpush2.bf16.msra.mxu0 0
  %367 = vmatprep.subr.bf16.mxu0 0
  %368 = vmatpush2.bf16.msra.mxu0 0
  %369 = vmatprep.mubr.bf16.mxu0 0
  %370 = vmatmul.mubr.bf16.gmra.mxu0 %v332
  %v371 = vpop.f32.mrf.mxu0
  %v372 = vadd.f32 0.0, %v371
  %v373 = vpop.f32.mrf.mxu0
  %v374 = vpop.f32.mrf.mxu0
  %v375 = vadd.f32 0.0, %v374
  %v376 = vpop.f32.mrf.mxu0
  %377 = vmatprep.mubr.bf16.mxu0 0
  %378 = vmatmul.mubr.bf16.gmra.mxu0 %v335
  %v379 = vpop.f32.mrf.mxu0
  %v380 = vadd.f32 0.0, %v379
  %v381 = vpop.f32.mrf.mxu0
  %v382 = vpop.f32.mrf.mxu0
  %v383 = vpop.f32.mrf.mxu0
  %384 = vdwg.mxu0
  %v385 = vld [vmem:[%s13] sm:$0xf]
  %v386 = vld [vmem:[%s13 + $0x4] sm:$0xf]
  %v387 = vld [vmem:[%s13 + $0x8] sm:$0xf]
  %v388 = vld [vmem:[%s13 + $0xc] sm:$0xf]
  %v393 = vunpack.c.l.b16 %v385
  %v394 = vunpack.c.l.b16 %v386
  %v395 = vunpack.c.l.b16 %v387
  %v396 = vunpack.c.l.b16 %v388
  %v397 = vpack.c.b16 %v394, %v393
  %v398 = vpack.c.b16 %v396, %v395
  %401 = vmatprep.subr.bf16.mxu0 0
  %402 = vmatpush1.bf16.msra.mxu0 0
  %403 = vmatprep.subr.bf16.mxu0 0
  %404 = vmatpush1.bf16.msra.mxu0 0
  %405 = vmatprep.subr.bf16.mxu0 0
  %406 = vmatpush1.bf16.msra.mxu0 0
  %407 = vmatprep.subr.bf16.mxu0 0
  %408 = vmatpush1.bf16.msra.mxu0 0
  %409 = vmatprep.subr.bf16.mxu0 0
  %410 = vmatpush1.bf16.msra.mxu0 0
  %411 = vmatprep.subr.bf16.mxu0 0
  %412 = vmatpush1.bf16.msra.mxu0 0
  %413 = vmatprep.subr.bf16.mxu0 0
  %414 = vmatpush1.bf16.msra.mxu0 %v398
  %415 = vmatprep.subr.bf16.mxu0 0
  %416 = vmatpush1.bf16.msra.mxu0 %v397
  %417 = vmatprep.subr.bf16.mxu0 0
  %418 = vmatpush2.bf16.msra.mxu0 0
  %419 = vmatprep.subr.bf16.mxu0 0
  %420 = vmatpush2.bf16.msra.mxu0 0
  %421 = vmatprep.subr.bf16.mxu0 0
  %422 = vmatpush2.bf16.msra.mxu0 0
  %423 = vmatprep.subr.bf16.mxu0 0
  %424 = vmatpush2.bf16.msra.mxu0 0
  %425 = vmatprep.subr.bf16.mxu0 0
  %426 = vmatpush2.bf16.msra.mxu0 0
  %427 = vmatprep.subr.bf16.mxu0 0
  %428 = vmatpush2.bf16.msra.mxu0 0
  %429 = vmatprep.subr.bf16.mxu0 0
  %430 = vmatpush2.bf16.msra.mxu0 0
  %431 = vmatprep.subr.bf16.mxu0 0
  %432 = vmatpush2.bf16.msra.mxu0 0
  %433 = vmatprep.mubr.bf16.mxu0 0
  %434 = vmatmul.mubr.bf16.gmra.mxu0 %v332
  %v435 = vpop.f32.mrf.mxu0
  %v436 = vadd.f32 0.0, %v435
  %v437 = vpop.f32.mrf.mxu0
  %v438 = vpop.f32.mrf.mxu0
  %v439 = vadd.f32 0.0, %v438
  %v440 = vpop.f32.mrf.mxu0
  %441 = vmatprep.mubr.bf16.mxu0 0
  %442 = vmatmul.mubr.bf16.gmra.mxu0 %v335
  %v443 = vpop.f32.mrf.mxu0
  %v444 = vadd.f32 0.0, %v443
  %v445 = vpop.f32.mrf.mxu0
  %v446 = vpop.f32.mrf.mxu0
  %v447 = vpop.f32.mrf.mxu0
  %448 = vdwg.mxu0
  %v449 = vpack.c.bf16 %v312, %v309
  %v450 = vpack.c.bf16 %v375, %v372
  %v451 = vpack.c.bf16 %v380, %v380
  %vm452 = vcmask 130048
  %v454 = vsel %vm452, %v449, 0
  %v457 = vsel %vm452, %v450, 0
  %v460 = vsel %vm452, %v451, 0
  %462 = vmatprep.subr.bf16.mxu0 0
  %463 = vmatpush1.bf16.xpose.msra.mxu0 0
  %464 = vmatprep.subr.bf16.mxu0 0
  %465 = vmatpush1.bf16.xpose.msra.mxu0 0
  %466 = vmatprep.subr.bf16.mxu0 0
  %467 = vmatpush1.bf16.xpose.msra.mxu0 0
  %468 = vmatprep.subr.bf16.mxu0 0
  %469 = vmatpush1.bf16.xpose.msra.mxu0 0
  %470 = vmatprep.subr.bf16.mxu0 0
  %471 = vmatpush1.bf16.xpose.msra.mxu0 0
  %472 = vmatprep.subr.bf16.mxu0 0
  %473 = vmatpush1.bf16.xpose.msra.mxu0 0
  %474 = vmatprep.subr.bf16.mxu0 0
  %475 = vmatpush1.bf16.xpose.msra.mxu0 %v460
  %476 = vmatprep.subr.bf16.mxu0 0
  %477 = vmatpush1.bf16.xpose.msra.mxu0 %v457
  %478 = vmatprep.subr.bf16.mxu0 0
  %479 = vmatpush2.bf16.xpose.msra.mxu0 0
  %480 = vmatprep.subr.bf16.mxu0 0
  %481 = vmatpush2.bf16.xpose.msra.mxu0 0
  %482 = vmatprep.subr.bf16.mxu0 0
  %483 = vmatpush2.bf16.xpose.msra.mxu0 0
  %484 = vmatprep.subr.bf16.mxu0 0
  %485 = vmatpush2.bf16.xpose.msra.mxu0 0
  %486 = vmatprep.subr.bf16.mxu0 0
  %487 = vmatpush2.bf16.xpose.msra.mxu0 0
  %488 = vmatprep.subr.bf16.mxu0 0
  %489 = vmatpush2.bf16.xpose.msra.mxu0 0
  %490 = vmatprep.subr.bf16.mxu0 0
  %491 = vmatpush2.bf16.xpose.msra.mxu0 0
  %492 = vmatprep.subr.bf16.mxu0 0
  %493 = vmatpush2.bf16.xpose.msra.mxu0 0
  %494 = vmatprep.mubr.bf16.mxu0 0
  %495 = vmatmul.mubr.bf16.gmra.mxu0 %v454
  %v496 = vpop.f32.mrf.mxu0
  %v497 = vadd.f32 0.0, %v496
  %v498 = vpop.f32.mrf.mxu0
  %v499 = vpop.f32.mrf.mxu0
  %v500 = vadd.f32 0.0, %v499
  %v501 = vpop.f32.mrf.mxu0
  %502 = vdwg.mxu0
  %v503 = vmul.f32 %v497, 0.25
  %v504 = vmul.f32 %v500, 0.25
  %vm505 = vcmask 195584
  %v506 = vsel %vm505, %v503, -inf
  %507 = vmax.xlane.f32.xlu0 %v506
  %v508 = vpop.xlane.xlu0 %507
  %v509 = vsel %vm505, %v504, -inf
  %510 = vmax.xlane.f32.xlu0 %v509
  %v511 = vpop.xlane.xlu0 %510
  %v512 = vsub.f32 %v503, %v508
  %v513 = vsub.f32 %v504, %v511
  %v514 = vmul.f32 %v512, 1.442695
  %v515 = vpow.pop %v514
  %v516 = vmul.f32 %v513, 1.442695
  %v517 = vpow.pop %v516
  %v518 = vsel %vm505, %v515, 0.0
  %519 = vadd.xlane.f32.xlu0 %v518
  %v520 = vpop.xlane.xlu0 %519
  %v521 = vsel %vm505, %v517, 0.0
  %522 = vadd.xlane.f32.xlu0 %v521
  %v523 = vpop.xlane.xlu0 %522
  %v524 = vrcp.pop %v520
  %v525 = vrcp.pop %v523
  %v526 = vmul.f32 %v515, %v524
  %v527 = vmul.f32 %v517, %v525
  %v528 = vpack.c.bf16 %v527, %v526
  %v529 = vpack.c.bf16 %v439, %v436
  %v530 = vpack.c.bf16 %v444, %v444
  %v532 = vsel %vm505, %v528, 0
  %vm534 = vcmask 1043456
  %v536 = vsel %vm534, %v530, 0
  %538 = vmatprep.subr.bf16.mxu0 0
  %539 = vmatpush1.bf16.msra.mxu0 0
  %540 = vmatprep.subr.bf16.mxu0 0
  %541 = vmatpush1.bf16.msra.mxu0 0
  %542 = vmatprep.subr.bf16.mxu0 0
  %543 = vmatpush1.bf16.msra.mxu0 0
  %544 = vmatprep.subr.bf16.mxu0 0
  %545 = vmatpush1.bf16.msra.mxu0 0
  %546 = vmatprep.subr.bf16.mxu0 0
  %547 = vmatpush1.bf16.msra.mxu0 0
  %548 = vmatprep.subr.bf16.mxu0 0
  %549 = vmatpush1.bf16.msra.mxu0 0
  %550 = vmatprep.subr.bf16.mxu0 0
  %551 = vmatpush1.bf16.msra.mxu0 %v536
  %552 = vmatprep.subr.bf16.mxu0 0
  %553 = vmatpush1.bf16.msra.mxu0 %v529
  %554 = vmatprep.subr.bf16.mxu0 0
  %555 = vmatpush2.bf16.msra.mxu0 0
  %556 = vmatprep.subr.bf16.mxu0 0
  %557 = vmatpush2.bf16.msra.mxu0 0
  %558 = vmatprep.subr.bf16.mxu0 0
  %559 = vmatpush2.bf16.msra.mxu0 0
  %560 = vmatprep.subr.bf16.mxu0 0
  %561 = vmatpush2.bf16.msra.mxu0 0
  %562 = vmatprep.subr.bf16.mxu0 0
  %563 = vmatpush2.bf16.msra.mxu0 0
  %564 = vmatprep.subr.bf16.mxu0 0
  %565 = vmatpush2.bf16.msra.mxu0 0
  %566 = vmatprep.subr.bf16.mxu0 0
  %567 = vmatpush2.bf16.msra.mxu0 0
  %568 = vmatprep.subr.bf16.mxu0 0
  %569 = vmatpush2.bf16.msra.mxu0 0
  %570 = vmatprep.mubr.bf16.mxu0 0
  %571 = vmatmul.mubr.bf16.gmra.mxu0 %v532
  %v572 = vpop.f32.mrf.mxu0
  %v573 = vadd.f32 0.0, %v572
  %v574 = vpop.f32.mrf.mxu0
  %v575 = vpop.f32.mrf.mxu0
  %v576 = vadd.f32 0.0, %v575
  %v577 = vpop.f32.mrf.mxu0
  %578 = vdwg.mxu0
  %v579 = vpack.c.bf16 %v576, %v573
  %v580 = vld [vmem:[%s15] sm:$0xf]
  %v581 = vld [vmem:[%s15 + $0x4] sm:$0xf]
  %v584 = vunpack.c.l.b16 %v580
  %v585 = vunpack.c.l.b16 %v581
  %v586 = vpack.c.b16 %v585, %v584
  %v589 = vsel %vm452, %v579, 0
  %591 = vmatprep.subr.bf16.mxu0 0
  %592 = vmatpush1.bf16.msra.mxu0 0
  %593 = vmatprep.subr.bf16.mxu0 0
  %594 = vmatpush1.bf16.msra.mxu0 0
  %595 = vmatprep.subr.bf16.mxu0 0
  %596 = vmatpush1.bf16.msra.mxu0 0
  %597 = vmatprep.subr.bf16.mxu0 0
  %598 = vmatpush1.bf16.msra.mxu0 0
  %599 = vmatprep.subr.bf16.mxu0 0
  %600 = vmatpush1.bf16.msra.mxu0 0
  %601 = vmatprep.subr.bf16.mxu0 0
  %602 = vmatpush1.bf16.msra.mxu0 0
  %603 = vmatprep.subr.bf16.mxu0 0
  %604 = vmatpush1.bf16.msra.mxu0 0
  %605 = vmatprep.subr.bf16.mxu0 0
  %606 = vmatpush1.bf16.msra.mxu0 %v586
  %607 = vmatprep.subr.bf16.mxu0 0
  %608 = vmatpush2.bf16.msra.mxu0 0
  %609 = vmatprep.subr.bf16.mxu0 0
  %610 = vmatpush2.bf16.msra.mxu0 0
  %611 = vmatprep.subr.bf16.mxu0 0
  %612 = vmatpush2.bf16.msra.mxu0 0
  %613 = vmatprep.subr.bf16.mxu0 0
  %614 = vmatpush2.bf16.msra.mxu0 0
  %615 = vmatprep.subr.bf16.mxu0 0
  %616 = vmatpush2.bf16.msra.mxu0 0
  %617 = vmatprep.subr.bf16.mxu0 0
  %618 = vmatpush2.bf16.msra.mxu0 0
  %619 = vmatprep.subr.bf16.mxu0 0
  %620 = vmatpush2.bf16.msra.mxu0 0
  %621 = vmatprep.subr.bf16.mxu0 0
  %622 = vmatpush2.bf16.msra.mxu0 0
  %623 = vmatprep.mubr.bf16.mxu0 0
  %624 = vmatmul.mubr.bf16.gmra.mxu0 %v589
  %v625 = vpop.f32.mrf.mxu0
  %v626 = vadd.f32 0.0, %v625
  %v627 = vpop.f32.mrf.mxu0
  %v628 = vpop.f32.mrf.mxu0
  %v629 = vadd.f32 0.0, %v628
  %v630 = vpop.f32.mrf.mxu0
  %631 = vdwg.mxu0
  %v632 = vadd.f32 %v123, %v626
  %v633 = vadd.f32 %v124, %v629
  %v635 = vlaneseq
  %v636 = vshrl.u32 %v635, 7
  %v637 = vsub.s32 0, %v636
  %v638 = vrot.slane %v235, %v637
  %v640 = vadd.f32 %v632, %v638
  %v641 = vadd.f32 %v633, %v638
  %v642 = vld [vmem:[%s19] sm:$0x3]
  %v643 = vsel %vm129, %v640, 0.0
  %644 = vadd.xlane.f32.xlu0 %v643
  %v645 = vpop.xlane.xlu0 %644
  %v646 = vsel %vm129, %v641, 0.0
  %647 = vadd.xlane.f32.xlu0 %v646
  %v648 = vpop.xlane.xlu0 %647
  %v649 = vmul.f32 %v640, %v640
  %v650 = vmul.f32 %v641, %v641
  %v651 = vsel %vm129, %v649, 0.0
  %652 = vadd.xlane.f32.xlu0 %v651
  %v653 = vpop.xlane.xlu0 %652
  %v654 = vsel %vm129, %v650, 0.0
  %655 = vadd.xlane.f32.xlu0 %v654
  %v656 = vpop.xlane.xlu0 %655
  %v657 = vmul.f32 %v645, %v144
  %v658 = vmul.f32 %v648, %v144
  %v659 = vmul.f32 %v653, %v144
  %v660 = vmul.f32 %v656, %v144
  %v661 = vmul.f32 %v657, %v657
  %v662 = vmul.f32 %v658, %v658
  %v663 = vsub.f32 %v659, %v661
  %v664 = vsub.f32 %v660, %v662
  %v665 = vadd.f32 %v663, 1e-05
  %v666 = vadd.f32 %v664, 1e-05
  %v667 = vrsqrt.pop %v665
  %v668 = vrsqrt.pop %v666
  %v669 = vsub.f32 %v640, %v657
  %v670 = vsub.f32 %v641, %v658
  %v671 = vmul.f32 %v669, %v667
  %v672 = vmul.f32 %v670, %v668
  %v673 = vlaneseq
  %v674 = vshrl.u32 %v673, 7
  %v675 = vsub.s32 0, %v674
  %v676 = vrot.slane %v642, %v675
  %v677 = vmul.f32 %v671, %v676
  %v678 = vmul.f32 %v672, %v676
  %v679 = vlaneseq
  %v680 = vshrl.u32 %v679, 7
  %v681 = vsub.s32 1, %v680
  %v682 = vrot.slane %v642, %v681
  %v683 = vadd.f32 %v677, %v682
  %v684 = vadd.f32 %v678, %v682
  %v685 = vpack.c.bf16 %v684, %v683
  %v686 = vld [vmem:[%s21] sm:$0xff]
  %v687 = vld [vmem:[%s21 + $0x8] sm:$0xff]
  %v688 = vld [vmem:[%s21 + $0x10] sm:$0xff]
  %v689 = vld [vmem:[%s21 + $0x18] sm:$0xff]
  %v690 = vld [vmem:[%s21 + $0x20] sm:$0xff]
  %v691 = vld [vmem:[%s21 + $0x28] sm:$0xff]
  %v692 = vld [vmem:[%s21 + $0x30] sm:$0xff]
  %v693 = vld [vmem:[%s21 + $0x38] sm:$0xff]
  %v694 = vld [vmem:[%s23] sm:$0x3]
  %v696 = vlaneseq
  %v697 = vshrl.u32 %v696, 7
  %v698 = vsub.s32 0, %v697
  %v699 = vrot.slane %v694, %v698
  %v700 = vlaneseq
  %v701 = vshrl.u32 %v700, 7
  %v702 = vsub.s32 1, %v701
  %v703 = vrot.slane %v694, %v702
  %v714 = vunpack.c.l.b16 %v686
  %v715 = vunpack.c.h.b16 %v686
  %v716 = vunpack.c.l.b16 %v687
  %v717 = vunpack.c.h.b16 %v687
  %v718 = vunpack.c.l.b16 %v688
  %v719 = vunpack.c.h.b16 %v688
  %v720 = vunpack.c.l.b16 %v689
  %v721 = vunpack.c.h.b16 %v689
  %v722 = vunpack.c.l.b16 %v690
  %v723 = vunpack.c.h.b16 %v690
  %v724 = vunpack.c.l.b16 %v691
  %v725 = vunpack.c.h.b16 %v691
  %v726 = vunpack.c.l.b16 %v692
  %v727 = vunpack.c.h.b16 %v692
  %v728 = vunpack.c.l.b16 %v693
  %v729 = vunpack.c.h.b16 %v693
  %v730 = vpack.c.b16 %v716, %v714
  %v731 = vpack.c.b16 %v717, %v715
  %v732 = vpack.c.b16 %v720, %v718
  %v733 = vpack.c.b16 %v721, %v719
  %v734 = vpack.c.b16 %v724, %v722
  %v735 = vpack.c.b16 %v725, %v723
  %v736 = vpack.c.b16 %v728, %v726
  %v737 = vpack.c.b16 %v729, %v727
  %v747 = vsel %vm129, %v685, 0
  %749 = vmatprep.subr.bf16.mxu0 0
  %750 = vmatpush1.bf16.msra.mxu0 0
  %751 = vmatprep.subr.bf16.mxu0 0
  %752 = vmatpush1.bf16.msra.mxu0 0
  %753 = vmatprep.subr.bf16.mxu0 0
  %754 = vmatpush1.bf16.msra.mxu0 0
  %755 = vmatprep.subr.bf16.mxu0 0
  %756 = vmatpush1.bf16.msra.mxu0 0
  %757 = vmatprep.subr.bf16.mxu0 %v737
  %758 = vmatpush1.bf16.msra.mxu0 %v736
  %759 = vmatprep.subr.bf16.mxu0 %v735
  %760 = vmatpush1.bf16.msra.mxu0 %v734
  %761 = vmatprep.subr.bf16.mxu0 %v733
  %762 = vmatpush1.bf16.msra.mxu0 %v732
  %763 = vmatprep.subr.bf16.mxu0 %v731
  %764 = vmatpush1.bf16.msra.mxu0 %v730
  %765 = vmatprep.subr.bf16.mxu0 0
  %766 = vmatpush2.bf16.msra.mxu0 0
  %767 = vmatprep.subr.bf16.mxu0 0
  %768 = vmatpush2.bf16.msra.mxu0 0
  %769 = vmatprep.subr.bf16.mxu0 0
  %770 = vmatpush2.bf16.msra.mxu0 0
  %771 = vmatprep.subr.bf16.mxu0 0
  %772 = vmatpush2.bf16.msra.mxu0 0
  %773 = vmatprep.subr.bf16.mxu0 0
  %774 = vmatpush2.bf16.msra.mxu0 0
  %775 = vmatprep.subr.bf16.mxu0 0
  %776 = vmatpush2.bf16.msra.mxu0 0
  %777 = vmatprep.subr.bf16.mxu0 0
  %778 = vmatpush2.bf16.msra.mxu0 0
  %779 = vmatprep.subr.bf16.mxu0 0
  %780 = vmatpush2.bf16.msra.mxu0 0
  %781 = vmatprep.mubr.bf16.mxu0 0
  %782 = vmatmul.mubr.bf16.gmra.mxu0 %v747
  %v783 = vpop.f32.mrf.mxu0
  %v784 = vadd.f32 %v699, %v783
  %v785 = vpop.f32.mrf.mxu0
  %v786 = vadd.f32 %v703, %v785
  %v787 = vpop.f32.mrf.mxu0
  %v788 = vadd.f32 %v699, %v787
  %v789 = vpop.f32.mrf.mxu0
  %v790 = vadd.f32 %v703, %v789
  %791 = vdwg.mxu0
  %v792 = vld [vmem:[%s25] sm:$0xff]
  %v793 = vld [vmem:[%s25 + $0x8] sm:$0xff]
  %v794 = vld [vmem:[%s25 + $0x10] sm:$0xff]
  %v795 = vld [vmem:[%s25 + $0x18] sm:$0xff]
  %v796 = vld [vmem:[%s25 + $0x20] sm:$0xff]
  %v797 = vld [vmem:[%s25 + $0x28] sm:$0xff]
  %v798 = vld [vmem:[%s25 + $0x30] sm:$0xff]
  %v799 = vld [vmem:[%s25 + $0x38] sm:$0xff]
  %v800 = vld [vmem:[%s27] sm:$0x3]
  %v802 = vlaneseq
  %v803 = vshrl.u32 %v802, 7
  %v804 = vsub.s32 0, %v803
  %v805 = vrot.slane %v800, %v804
  %v806 = vlaneseq
  %v807 = vshrl.u32 %v806, 7
  %v808 = vsub.s32 1, %v807
  %v809 = vrot.slane %v800, %v808
  %v820 = vunpack.c.l.b16 %v792
  %v821 = vunpack.c.h.b16 %v792
  %v822 = vunpack.c.l.b16 %v793
  %v823 = vunpack.c.h.b16 %v793
  %v824 = vunpack.c.l.b16 %v794
  %v825 = vunpack.c.h.b16 %v794
  %v826 = vunpack.c.l.b16 %v795
  %v827 = vunpack.c.h.b16 %v795
  %v828 = vunpack.c.l.b16 %v796
  %v829 = vunpack.c.h.b16 %v796
  %v830 = vunpack.c.l.b16 %v797
  %v831 = vunpack.c.h.b16 %v797
  %v832 = vunpack.c.l.b16 %v798
  %v833 = vunpack.c.h.b16 %v798
  %v834 = vunpack.c.l.b16 %v799
  %v835 = vunpack.c.h.b16 %v799
  %v836 = vpack.c.b16 %v822, %v820
  %v837 = vpack.c.b16 %v823, %v821
  %v838 = vpack.c.b16 %v826, %v824
  %v839 = vpack.c.b16 %v827, %v825
  %v840 = vpack.c.b16 %v830, %v828
  %v841 = vpack.c.b16 %v831, %v829
  %v842 = vpack.c.b16 %v834, %v832
  %v843 = vpack.c.b16 %v835, %v833
  %852 = vmatprep.subr.bf16.mxu0 0
  %853 = vmatpush1.bf16.msra.mxu0 0
  %854 = vmatprep.subr.bf16.mxu0 0
  %855 = vmatpush1.bf16.msra.mxu0 0
  %856 = vmatprep.subr.bf16.mxu0 0
  %857 = vmatpush1.bf16.msra.mxu0 0
  %858 = vmatprep.subr.bf16.mxu0 0
  %859 = vmatpush1.bf16.msra.mxu0 0
  %860 = vmatprep.subr.bf16.mxu0 %v843
  %861 = vmatpush1.bf16.msra.mxu0 %v842
  %862 = vmatprep.subr.bf16.mxu0 %v841
  %863 = vmatpush1.bf16.msra.mxu0 %v840
  %864 = vmatprep.subr.bf16.mxu0 %v839
  %865 = vmatpush1.bf16.msra.mxu0 %v838
  %866 = vmatprep.subr.bf16.mxu0 %v837
  %867 = vmatpush1.bf16.msra.mxu0 %v836
  %868 = vmatprep.subr.bf16.mxu0 0
  %869 = vmatpush2.bf16.msra.mxu0 0
  %870 = vmatprep.subr.bf16.mxu0 0
  %871 = vmatpush2.bf16.msra.mxu0 0
  %872 = vmatprep.subr.bf16.mxu0 0
  %873 = vmatpush2.bf16.msra.mxu0 0
  %874 = vmatprep.subr.bf16.mxu0 0
  %875 = vmatpush2.bf16.msra.mxu0 0
  %876 = vmatprep.subr.bf16.mxu0 0
  %877 = vmatpush2.bf16.msra.mxu0 0
  %878 = vmatprep.subr.bf16.mxu0 0
  %879 = vmatpush2.bf16.msra.mxu0 0
  %880 = vmatprep.subr.bf16.mxu0 0
  %881 = vmatpush2.bf16.msra.mxu0 0
  %882 = vmatprep.subr.bf16.mxu0 0
  %883 = vmatpush2.bf16.msra.mxu0 0
  %884 = vmatprep.mubr.bf16.mxu0 0
  %885 = vmatmul.mubr.bf16.gmra.mxu0 %v747
  %v886 = vpop.f32.mrf.mxu0
  %v887 = vadd.f32 %v805, %v886
  %v888 = vpop.f32.mrf.mxu0
  %v889 = vadd.f32 %v809, %v888
  %v890 = vpop.f32.mrf.mxu0
  %v891 = vadd.f32 %v805, %v890
  %v892 = vpop.f32.mrf.mxu0
  %v893 = vadd.f32 %v809, %v892
  %894 = vdwg.mxu0
  %v895 = vmul.f32 %v887, %v887
  %v896 = vmul.f32 %v889, %v889
  %v897 = vmul.f32 %v891, %v891
  %v898 = vmul.f32 %v893, %v893
  %v899 = vmul.f32 %v887, %v895
  %v900 = vmul.f32 %v889, %v896
  %v901 = vmul.f32 %v891, %v897
  %v902 = vmul.f32 %v893, %v898
  %v903 = vmul.f32 %v899, 0.044715
  %v904 = vmul.f32 %v900, 0.044715
  %v905 = vmul.f32 %v901, 0.044715
  %v906 = vmul.f32 %v902, 0.044715
  %v907 = vadd.f32 %v887, %v903
  %v908 = vadd.f32 %v889, %v904
  %v909 = vadd.f32 %v891, %v905
  %v910 = vadd.f32 %v893, %v906
  %v911 = vmul.f32 %v907, 0.7978846
  %v912 = vmul.f32 %v908, 0.7978846
  %v913 = vmul.f32 %v909, 0.7978846
  %v914 = vmul.f32 %v910, 0.7978846
  %v915 = vtanh.pop %v911
  %v916 = vtanh.pop %v912
  %v917 = vtanh.pop %v913
  %v918 = vtanh.pop %v914
  %v919 = vadd.f32 %v915, 1.0
  %v920 = vadd.f32 %v916, 1.0
  %v921 = vadd.f32 %v917, 1.0
  %v922 = vadd.f32 %v918, 1.0
  %v923 = vmul.f32 %v919, 0.5
  %v924 = vmul.f32 %v920, 0.5
  %v925 = vmul.f32 %v921, 0.5
  %v926 = vmul.f32 %v922, 0.5
  %v927 = vmul.f32 %v887, %v923
  %v928 = vmul.f32 %v889, %v924
  %v929 = vmul.f32 %v891, %v925
  %v930 = vmul.f32 %v893, %v926
  %v931 = vmul.f32 %v784, %v927
  %v932 = vmul.f32 %v786, %v928
  %v933 = vmul.f32 %v788, %v929
  %v934 = vmul.f32 %v790, %v930
  %v935 = vpack.c.bf16 %v933, %v931
  %v936 = vpack.c.bf16 %v934, %v932
  %v937 = vld [vmem:[%s29] sm:$0xf]
  %v938 = vld [vmem:[%s29 + $0x4] sm:$0xf]
  %v939 = vld [vmem:[%s29 + $0x8] sm:$0xf]
  %v940 = vld [vmem:[%s29 + $0xc] sm:$0xf]
  %v941 = vld [vmem:[%s29 + $0x10] sm:$0xf]
  %v942 = vld [vmem:[%s29 + $0x14] sm:$0xf]
  %v943 = vld [vmem:[%s29 + $0x18] sm:$0xf]
  %v944 = vld [vmem:[%s29 + $0x1c] sm:$0xf]
  %v945 = vld [vmem:[%s29 + $0x20] sm:$0xf]
  %v946 = vld [vmem:[%s29 + $0x24] sm:$0xf]
  %v947 = vld [vmem:[%s29 + $0x28] sm:$0xf]
  %v948 = vld [vmem:[%s29 + $0x2c] sm:$0xf]
  %v949 = vld [vmem:[%s29 + $0x30] sm:$0xf]
  %v950 = vld [vmem:[%s29 + $0x34] sm:$0xf]
  %v951 = vld [vmem:[%s29 + $0x38] sm:$0xf]
  %v952 = vld [vmem:[%s29 + $0x3c] sm:$0xf]
  %v953 = vld [vmem:[%s29 + $0x40] sm:$0xf]
  %v954 = vld [vmem:[%s29 + $0x44] sm:$0xf]
  %v955 = vld [vmem:[%s29 + $0x48] sm:$0xf]
  %v956 = vld [vmem:[%s29 + $0x4c] sm:$0xf]
  %v957 = vld [vmem:[%s29 + $0x50] sm:$0xf]
  %v958 = vld [vmem:[%s29 + $0x54] sm:$0xf]
  %v959 = vld [vmem:[%s29 + $0x58] sm:$0xf]
  %v960 = vld [vmem:[%s29 + $0x5c] sm:$0xf]
  %v961 = vld [vmem:[%s29 + $0x60] sm:$0xf]
  %v962 = vld [vmem:[%s29 + $0x64] sm:$0xf]
  %v963 = vld [vmem:[%s29 + $0x68] sm:$0xf]
  %v964 = vld [vmem:[%s29 + $0x6c] sm:$0xf]
  %v965 = vld [vmem:[%s29 + $0x70] sm:$0xf]
  %v966 = vld [vmem:[%s29 + $0x74] sm:$0xf]
  %v967 = vld [vmem:[%s29 + $0x78] sm:$0xf]
  %v968 = vld [vmem:[%s29 + $0x7c] sm:$0xf]
  %v969 = vld [vmem:[%s31] sm:$0x1]
  %v971 = vlaneseq
  %v972 = vshrl.u32 %v971, 7
  %v973 = vsub.s32 0, %v972
  %v974 = vrot.slane %v969, %v973
  %v1008 = vunpack.c.l.b16 %v937
  %v1009 = vunpack.c.l.b16 %v938
  %v1010 = vunpack.c.l.b16 %v939
  %v1011 = vunpack.c.l.b16 %v940
  %v1012 = vunpack.c.l.b16 %v941
  %v1013 = vunpack.c.l.b16 %v942
  %v1014 = vunpack.c.l.b16 %v943
  %v1015 = vunpack.c.l.b16 %v944
  %v1016 = vunpack.c.l.b16 %v945
  %v1017 = vunpack.c.l.b16 %v946
  %v1018 = vunpack.c.l.b16 %v947
  %v1019 = vunpack.c.l.b16 %v948
  %v1020 = vunpack.c.l.b16 %v949
  %v1021 = vunpack.c.l.b16 %v950
  %v1022 = vunpack.c.l.b16 %v951
  %v1023 = vunpack.c.l.b16 %v952
  %v1024 = vunpack.c.l.b16 %v953
  %v1025 = vunpack.c.l.b16 %v954
  %v1026 = vunpack.c.l.b16 %v955
  %v1027 = vunpack.c.l.b16 %v956
  %v1028 = vunpack.c.l.b16 %v957
  %v1029 = vunpack.c.l.b16 %v958
  %v1030 = vunpack.c.l.b16 %v959
  %v1031 = vunpack.c.l.b16 %v960
  %v1032 = vunpack.c.l.b16 %v961
  %v1033 = vunpack.c.l.b16 %v962
  %v1034 = vunpack.c.l.b16 %v963
  %v1035 = vunpack.c.l.b16 %v964
  %v1036 = vunpack.c.l.b16 %v965
  %v1037 = vunpack.c.l.b16 %v966
  %v1038 = vunpack.c.l.b16 %v967
  %v1039 = vunpack.c.l.b16 %v968
  %v1040 = vpack.c.b16 %v1009, %v1008
  %v1041 = vpack.c.b16 %v1011, %v1010
  %v1042 = vpack.c.b16 %v1013, %v1012
  %v1043 = vpack.c.b16 %v1015, %v1014
  %v1044 = vpack.c.b16 %v1017, %v1016
  %v1045 = vpack.c.b16 %v1019, %v1018
  %v1046 = vpack.c.b16 %v1021, %v1020
  %v1047 = vpack.c.b16 %v1023, %v1022
  %v1048 = vpack.c.b16 %v1025, %v1024
  %v1049 = vpack.c.b16 %v1027, %v1026
  %v1050 = vpack.c.b16 %v1029, %v1028
  %v1051 = vpack.c.b16 %v1031, %v1030
  %v1052 = vpack.c.b16 %v1033, %v1032
  %v1053 = vpack.c.b16 %v1035, %v1034
  %v1054 = vpack.c.b16 %v1037, %v1036
  %v1055 = vpack.c.b16 %v1039, %v1038
  %1072 = vmatprep.subr.bf16.mxu0 0
  %1073 = vmatpush1.bf16.msra.mxu0 %v1047
  %1074 = vmatprep.subr.bf16.mxu0 0
  %1075 = vmatpush1.bf16.msra.mxu0 %v1046
  %1076 = vmatprep.subr.bf16.mxu0 0
  %1077 = vmatpush1.bf16.msra.mxu0 %v1045
  %1078 = vmatprep.subr.bf16.mxu0 0
  %1079 = vmatpush1.bf16.msra.mxu0 %v1044
  %1080 = vmatprep.subr.bf16.mxu0 0
  %1081 = vmatpush1.bf16.msra.mxu0 %v1043
  %1082 = vmatprep.subr.bf16.mxu0 0
  %1083 = vmatpush1.bf16.msra.mxu0 %v1042
  %1084 = vmatprep.subr.bf16.mxu0 0
  %1085 = vmatpush1.bf16.msra.mxu0 %v1041
  %1086 = vmatprep.subr.bf16.mxu0 0
  %1087 = vmatpush1.bf16.msra.mxu0 %v1040
  %1088 = vmatprep.subr.bf16.mxu0 0
  %1089 = vmatpush2.bf16.msra.mxu0 %v1055
  %1090 = vmatprep.subr.bf16.mxu0 0
  %1091 = vmatpush2.bf16.msra.mxu0 %v1054
  %1092 = vmatprep.subr.bf16.mxu0 0
  %1093 = vmatpush2.bf16.msra.mxu0 %v1053
  %1094 = vmatprep.subr.bf16.mxu0 0
  %1095 = vmatpush2.bf16.msra.mxu0 %v1052
  %1096 = vmatprep.subr.bf16.mxu0 0
  %1097 = vmatpush2.bf16.msra.mxu0 %v1051
  %1098 = vmatprep.subr.bf16.mxu0 0
  %1099 = vmatpush2.bf16.msra.mxu0 %v1050
  %1100 = vmatprep.subr.bf16.mxu0 0
  %1101 = vmatpush2.bf16.msra.mxu0 %v1049
  %1102 = vmatprep.subr.bf16.mxu0 0
  %1103 = vmatpush2.bf16.msra.mxu0 %v1048
  %1104 = vmatprep.mubr.bf16.mxu0 %v936
  %1105 = vmatmul.mubr.bf16.gmra.mxu0 %v935
  %v1106 = vpop.f32.mrf.mxu0
  %v1107 = vadd.f32 %v974, %v1106
  %v1108 = vpop.f32.mrf.mxu0
  %v1109 = vpop.f32.mrf.mxu0
  %v1110 = vadd.f32 %v974, %v1109
  %v1111 = vpop.f32.mrf.mxu0
  %1112 = vdwg.mxu0
  %v1113 = vadd.f32 %v640, %v1107
  %v1114 = vadd.f32 %v641, %v1110
  %v1115 = vld [vmem:[%s33] sm:$0x3]
  %v1116 = vsel %vm129, %v1113, 0.0
  %1117 = vadd.xlane.f32.xlu0 %v1116
  %v1118 = vpop.xlane.xlu0 %1117
  %v1119 = vsel %vm129, %v1114, 0.0
  %1120 = vadd.xlane.f32.xlu0 %v1119
  %v1121 = vpop.xlane.xlu0 %1120
  %v1122 = vmul.f32 %v1113, %v1113
  %v1123 = vmul.f32 %v1114, %v1114
  %v1124 = vsel %vm129, %v1122, 0.0
  %1125 = vadd.xlane.f32.xlu0 %v1124
  %v1126 = vpop.xlane.xlu0 %1125
  %v1127 = vsel %vm129, %v1123, 0.0
  %1128 = vadd.xlane.f32.xlu0 %v1127
  %v1129 = vpop.xlane.xlu0 %1128
  %v1130 = vmul.f32 %v1118, %v144
  %v1131 = vmul.f32 %v1121, %v144
  %v1132 = vmul.f32 %v1126, %v144
  %v1133 = vmul.f32 %v1129, %v144
  %v1134 = vmul.f32 %v1130, %v1130
  %v1135 = vmul.f32 %v1131, %v1131
  %v1136 = vsub.f32 %v1132, %v1134
  %v1137 = vsub.f32 %v1133, %v1135
  %v1138 = vadd.f32 %v1136, 1e-05
  %v1139 = vadd.f32 %v1137, 1e-05
  %v1140 = vrsqrt.pop %v1138
  %v1141 = vrsqrt.pop %v1139
  %v1142 = vsub.f32 %v1113, %v1130
  %v1143 = vsub.f32 %v1114, %v1131
  %v1144 = vmul.f32 %v1142, %v1140
  %v1145 = vmul.f32 %v1143, %v1141
  %v1146 = vlaneseq
  %v1147 = vshrl.u32 %v1146, 7
  %v1148 = vsub.s32 0, %v1147
  %v1149 = vrot.slane %v1115, %v1148
  %v1150 = vmul.f32 %v1144, %v1149
  %v1151 = vmul.f32 %v1145, %v1149
  %v1152 = vlaneseq
  %v1153 = vshrl.u32 %v1152, 7
  %v1154 = vsub.s32 1, %v1153
  %v1155 = vrot.slane %v1115, %v1154
  %v1156 = vadd.f32 %v1150, %v1155
  %v1157 = vadd.f32 %v1151, %v1155
  %v1158 = vld [vmem:[%s43] sm:$0x1]
  %v1159 = vpack.c.bf16 %v1157, %v1156
  %v1160 = vld [vmem:[%s35] sm:$0xf]
  %v1161 = vld [vmem:[%s35 + $0x4] sm:$0xf]
  %v1162 = vld [vmem:[%s35 + $0x8] sm:$0xf]
  %v1163 = vld [vmem:[%s35 + $0xc] sm:$0xf]
  %v1164 = vld [vmem:[%s35 + $0x10] sm:$0xf]
  %v1165 = vld [vmem:[%s35 + $0x14] sm:$0xf]
  %v1166 = vld [vmem:[%s35 + $0x18] sm:$0xf]
  %v1167 = vld [vmem:[%s35 + $0x1c] sm:$0xf]
  %v1176 = vunpack.c.l.b16 %v1160
  %v1177 = vunpack.c.l.b16 %v1161
  %v1178 = vunpack.c.l.b16 %v1162
  %v1179 = vunpack.c.l.b16 %v1163
  %v1180 = vunpack.c.l.b16 %v1164
  %v1181 = vunpack.c.l.b16 %v1165
  %v1182 = vunpack.c.l.b16 %v1166
  %v1183 = vunpack.c.l.b16 %v1167
  %v1184 = vpack.c.b16 %v1177, %v1176
  %v1185 = vpack.c.b16 %v1179, %v1178
  %v1186 = vpack.c.b16 %v1181, %v1180
  %v1187 = vpack.c.b16 %v1183, %v1182
  %v1193 = vsel %vm129, %v1159, 0
  %1195 = vmatprep.subr.bf16.mxu0 0
  %1196 = vmatpush1.bf16.msra.mxu0 0
  %1197 = vmatprep.subr.bf16.mxu0 0
  %1198 = vmatpush1.bf16.msra.mxu0 0
  %1199 = vmatprep.subr.bf16.mxu0 0
  %1200 = vmatpush1.bf16.msra.mxu0 0
  %1201 = vmatprep.subr.bf16.mxu0 0
  %1202 = vmatpush1.bf16.msra.mxu0 0
  %1203 = vmatprep.subr.bf16.mxu0 0
  %1204 = vmatpush1.bf16.msra.mxu0 %v1187
  %1205 = vmatprep.subr.bf16.mxu0 0
  %1206 = vmatpush1.bf16.msra.mxu0 %v1186
  %1207 = vmatprep.subr.bf16.mxu0 0
  %1208 = vmatpush1.bf16.msra.mxu0 %v1185
  %1209 = vmatprep.subr.bf16.mxu0 0
  %1210 = vmatpush1.bf16.msra.mxu0 %v1184
  %1211 = vmatprep.subr.bf16.mxu0 0
  %1212 = vmatpush2.bf16.msra.mxu0 0
  %1213 = vmatprep.subr.bf16.mxu0 0
  %1214 = vmatpush2.bf16.msra.mxu0 0
  %1215 = vmatprep.subr.bf16.mxu0 0
  %1216 = vmatpush2.bf16.msra.mxu0 0
  %1217 = vmatprep.subr.bf16.mxu0 0
  %1218 = vmatpush2.bf16.msra.mxu0 0
  %1219 = vmatprep.subr.bf16.mxu0 0
  %1220 = vmatpush2.bf16.msra.mxu0 0
  %1221 = vmatprep.subr.bf16.mxu0 0
  %1222 = vmatpush2.bf16.msra.mxu0 0
  %1223 = vmatprep.subr.bf16.mxu0 0
  %1224 = vmatpush2.bf16.msra.mxu0 0
  %1225 = vmatprep.subr.bf16.mxu0 0
  %1226 = vmatpush2.bf16.msra.mxu0 0
  %1227 = vmatprep.mubr.bf16.mxu0 0
  %1228 = vmatmul.mubr.bf16.gmra.mxu0 %v1193
  %v1229 = vpop.f32.mrf.mxu0
  %v1230 = vadd.f32 0.0, %v1229
  %v1231 = vpop.f32.mrf.mxu0
  %v1232 = vpop.f32.mrf.mxu0
  %v1233 = vadd.f32 0.0, %v1232
  %v1234 = vpop.f32.mrf.mxu0
  %1235 = vdwg.mxu0
  %v1236 = vld [vmem:[%s37] sm:$0xf]
  %v1237 = vld [vmem:[%s37 + $0x4] sm:$0xf]
  %v1238 = vld [vmem:[%s37 + $0x8] sm:$0xf]
  %v1239 = vld [vmem:[%s37 + $0xc] sm:$0xf]
  %v1240 = vld [vmem:[%s37 + $0x10] sm:$0xf]
  %v1241 = vld [vmem:[%s37 + $0x14] sm:$0xf]
  %v1242 = vld [vmem:[%s37 + $0x18] sm:$0xf]
  %v1243 = vld [vmem:[%s37 + $0x1c] sm:$0xf]
  %v1252 = vunpack.c.l.b16 %v1236
  %v1253 = vunpack.c.l.b16 %v1237
  %v1254 = vunpack.c.l.b16 %v1238
  %v1255 = vunpack.c.l.b16 %v1239
  %v1256 = vunpack.c.l.b16 %v1240
  %v1257 = vunpack.c.l.b16 %v1241
  %v1258 = vunpack.c.l.b16 %v1242
  %v1259 = vunpack.c.l.b16 %v1243
  %v1260 = vpack.c.b16 %v1253, %v1252
  %v1261 = vpack.c.b16 %v1255, %v1254
  %v1262 = vpack.c.b16 %v1257, %v1256
  %v1263 = vpack.c.b16 %v1259, %v1258
  %1268 = vmatprep.subr.bf16.mxu0 0
  %1269 = vmatpush1.bf16.msra.mxu0 0
  %1270 = vmatprep.subr.bf16.mxu0 0
  %1271 = vmatpush1.bf16.msra.mxu0 0
  %1272 = vmatprep.subr.bf16.mxu0 0
  %1273 = vmatpush1.bf16.msra.mxu0 0
  %1274 = vmatprep.subr.bf16.mxu0 0
  %1275 = vmatpush1.bf16.msra.mxu0 0
  %1276 = vmatprep.subr.bf16.mxu0 0
  %1277 = vmatpush1.bf16.msra.mxu0 %v1263
  %1278 = vmatprep.subr.bf16.mxu0 0
  %1279 = vmatpush1.bf16.msra.mxu0 %v1262
  %1280 = vmatprep.subr.bf16.mxu0 0
  %1281 = vmatpush1.bf16.msra.mxu0 %v1261
  %1282 = vmatprep.subr.bf16.mxu0 0
  %1283 = vmatpush1.bf16.msra.mxu0 %v1260
  %1284 = vmatprep.subr.bf16.mxu0 0
  %1285 = vmatpush2.bf16.msra.mxu0 0
  %1286 = vmatprep.subr.bf16.mxu0 0
  %1287 = vmatpush2.bf16.msra.mxu0 0
  %1288 = vmatprep.subr.bf16.mxu0 0
  %1289 = vmatpush2.bf16.msra.mxu0 0
  %1290 = vmatprep.subr.bf16.mxu0 0
  %1291 = vmatpush2.bf16.msra.mxu0 0
  %1292 = vmatprep.subr.bf16.mxu0 0
  %1293 = vmatpush2.bf16.msra.mxu0 0
  %1294 = vmatprep.subr.bf16.mxu0 0
  %1295 = vmatpush2.bf16.msra.mxu0 0
  %1296 = vmatprep.subr.bf16.mxu0 0
  %1297 = vmatpush2.bf16.msra.mxu0 0
  %1298 = vmatprep.subr.bf16.mxu0 0
  %1299 = vmatpush2.bf16.msra.mxu0 0
  %1300 = vmatprep.mubr.bf16.mxu0 0
  %1301 = vmatmul.mubr.bf16.gmra.mxu0 %v1193
  %v1302 = vpop.f32.mrf.mxu0
  %v1303 = vadd.f32 0.0, %v1302
  %v1304 = vpop.f32.mrf.mxu0
  %v1305 = vpop.f32.mrf.mxu0
  %v1306 = vadd.f32 0.0, %v1305
  %v1307 = vpop.f32.mrf.mxu0
  %1308 = vdwg.mxu0
  %v1309 = vld [vmem:[%s39] sm:$0xf]
  %v1310 = vld [vmem:[%s39 + $0x4] sm:$0xf]
  %v1311 = vld [vmem:[%s39 + $0x8] sm:$0xf]
  %v1312 = vld [vmem:[%s39 + $0xc] sm:$0xf]
  %v1313 = vld [vmem:[%s39 + $0x10] sm:$0xf]
  %v1314 = vld [vmem:[%s39 + $0x14] sm:$0xf]
  %v1315 = vld [vmem:[%s39 + $0x18] sm:$0xf]
  %v1316 = vld [vmem:[%s39 + $0x1c] sm:$0xf]
  %v1325 = vunpack.c.l.b16 %v1309
  %v1326 = vunpack.c.l.b16 %v1310
  %v1327 = vunpack.c.l.b16 %v1311
  %v1328 = vunpack.c.l.b16 %v1312
  %v1329 = vunpack.c.l.b16 %v1313
  %v1330 = vunpack.c.l.b16 %v1314
  %v1331 = vunpack.c.l.b16 %v1315
  %v1332 = vunpack.c.l.b16 %v1316
  %v1333 = vpack.c.b16 %v1326, %v1325
  %v1334 = vpack.c.b16 %v1328, %v1327
  %v1335 = vpack.c.b16 %v1330, %v1329
  %v1336 = vpack.c.b16 %v1332, %v1331
  %1341 = vmatprep.subr.bf16.mxu0 0
  %1342 = vmatpush1.bf16.msra.mxu0 0
  %1343 = vmatprep.subr.bf16.mxu0 0
  %1344 = vmatpush1.bf16.msra.mxu0 0
  %1345 = vmatprep.subr.bf16.mxu0 0
  %1346 = vmatpush1.bf16.msra.mxu0 0
  %1347 = vmatprep.subr.bf16.mxu0 0
  %1348 = vmatpush1.bf16.msra.mxu0 0
  %1349 = vmatprep.subr.bf16.mxu0 0
  %1350 = vmatpush1.bf16.msra.mxu0 %v1336
  %1351 = vmatprep.subr.bf16.mxu0 0
  %1352 = vmatpush1.bf16.msra.mxu0 %v1335
  %1353 = vmatprep.subr.bf16.mxu0 0
  %1354 = vmatpush1.bf16.msra.mxu0 %v1334
  %1355 = vmatprep.subr.bf16.mxu0 0
  %1356 = vmatpush1.bf16.msra.mxu0 %v1333
  %1357 = vmatprep.subr.bf16.mxu0 0
  %1358 = vmatpush2.bf16.msra.mxu0 0
  %1359 = vmatprep.subr.bf16.mxu0 0
  %1360 = vmatpush2.bf16.msra.mxu0 0
  %1361 = vmatprep.subr.bf16.mxu0 0
  %1362 = vmatpush2.bf16.msra.mxu0 0
  %1363 = vmatprep.subr.bf16.mxu0 0
  %1364 = vmatpush2.bf16.msra.mxu0 0
  %1365 = vmatprep.subr.bf16.mxu0 0
  %1366 = vmatpush2.bf16.msra.mxu0 0
  %1367 = vmatprep.subr.bf16.mxu0 0
  %1368 = vmatpush2.bf16.msra.mxu0 0
  %1369 = vmatprep.subr.bf16.mxu0 0
  %1370 = vmatpush2.bf16.msra.mxu0 0
  %1371 = vmatprep.subr.bf16.mxu0 0
  %1372 = vmatpush2.bf16.msra.mxu0 0
  %1373 = vmatprep.mubr.bf16.mxu0 0
  %1374 = vmatmul.mubr.bf16.gmra.mxu0 %v1193
  %v1375 = vpop.f32.mrf.mxu0
  %v1376 = vadd.f32 0.0, %v1375
  %v1377 = vpop.f32.mrf.mxu0
  %v1378 = vpop.f32.mrf.mxu0
  %v1379 = vadd.f32 0.0, %v1378
  %v1380 = vpop.f32.mrf.mxu0
  %1381 = vdwg.mxu0
  %v1382 = vpack.c.bf16 %v1233, %v1230
  %v1383 = vpack.c.bf16 %v1306, %v1303
  %v1385 = vsel %vm452, %v1382, 0
  %v1388 = vsel %vm452, %v1383, 0
  %1390 = vmatprep.subr.bf16.mxu0 0
  %1391 = vmatpush1.bf16.xpose.msra.mxu0 0
  %1392 = vmatprep.subr.bf16.mxu0 0
  %1393 = vmatpush1.bf16.xpose.msra.mxu0 0
  %1394 = vmatprep.subr.bf16.mxu0 0
  %1395 = vmatpush1.bf16.xpose.msra.mxu0 0
  %1396 = vmatprep.subr.bf16.mxu0 0
  %1397 = vmatpush1.bf16.xpose.msra.mxu0 0
  %1398 = vmatprep.subr.bf16.mxu0 0
  %1399 = vmatpush1.bf16.xpose.msra.mxu0 0
  %1400 = vmatprep.subr.bf16.mxu0 0
  %1401 = vmatpush1.bf16.xpose.msra.mxu0 0
  %1402 = vmatprep.subr.bf16.mxu0 0
  %1403 = vmatpush1.bf16.xpose.msra.mxu0 0
  %1404 = vmatprep.subr.bf16.mxu0 0
  %1405 = vmatpush1.bf16.xpose.msra.mxu0 %v1388
  %1406 = vmatprep.subr.bf16.mxu0 0
  %1407 = vmatpush2.bf16.xpose.msra.mxu0 0
  %1408 = vmatprep.subr.bf16.mxu0 0
  %1409 = vmatpush2.bf16.xpose.msra.mxu0 0
  %1410 = vmatprep.subr.bf16.mxu0 0
  %1411 = vmatpush2.bf16.xpose.msra.mxu0 0
  %1412 = vmatprep.subr.bf16.mxu0 0
  %1413 = vmatpush2.bf16.xpose.msra.mxu0 0
  %1414 = vmatprep.subr.bf16.mxu0 0
  %1415 = vmatpush2.bf16.xpose.msra.mxu0 0
  %1416 = vmatprep.subr.bf16.mxu0 0
  %1417 = vmatpush2.bf16.xpose.msra.mxu0 0
  %1418 = vmatprep.subr.bf16.mxu0 0
  %1419 = vmatpush2.bf16.xpose.msra.mxu0 0
  %1420 = vmatprep.subr.bf16.mxu0 0
  %1421 = vmatpush2.bf16.xpose.msra.mxu0 0
  %1422 = vmatprep.mubr.bf16.mxu0 0
  %1423 = vmatmul.mubr.bf16.gmra.mxu0 %v1385
  %v1424 = vpop.f32.mrf.mxu0
  %v1425 = vadd.f32 0.0, %v1424
  %v1426 = vpop.f32.mrf.mxu0
  %v1427 = vpop.f32.mrf.mxu0
  %v1428 = vadd.f32 0.0, %v1427
  %v1429 = vpop.f32.mrf.mxu0
  %1430 = vdwg.mxu0
  %v1431 = vmul.f32 %v1425, 0.25
  %v1432 = vmul.f32 %v1428, 0.25
  %v1433 = vsel %vm452, %v1431, -inf
  %1434 = vmax.xlane.f32.xlu0 %v1433
  %v1435 = vpop.xlane.xlu0 %1434
  %v1436 = vsel %vm452, %v1432, -inf
  %1437 = vmax.xlane.f32.xlu0 %v1436
  %v1438 = vpop.xlane.xlu0 %1437
  %v1439 = vsub.f32 %v1431, %v1435
  %v1440 = vsub.f32 %v1432, %v1438
  %v1441 = vmul.f32 %v1439, 1.442695
  %v1442 = vpow.pop %v1441
  %v1443 = vmul.f32 %v1440, 1.442695
  %v1444 = vpow.pop %v1443
  %v1445 = vsel %vm452, %v1442, 0.0
  %1446 = vadd.xlane.f32.xlu0 %v1445
  %v1447 = vpop.xlane.xlu0 %1446
  %v1448 = vsel %vm452, %v1444, 0.0
  %1449 = vadd.xlane.f32.xlu0 %v1448
  %v1450 = vpop.xlane.xlu0 %1449
  %v1451 = vrcp.pop %v1447
  %v1452 = vrcp.pop %v1450
  %v1453 = vmul.f32 %v1442, %v1451
  %v1454 = vmul.f32 %v1444, %v1452
  %v1455 = vpack.c.bf16 %v1454, %v1453
  %v1456 = vpack.c.bf16 %v1379, %v1376
  %v1458 = vsel %vm452, %v1455, 0
  %1460 = vmatprep.subr.bf16.mxu0 0
  %1461 = vmatpush1.bf16.msra.mxu0 0
  %1462 = vmatprep.subr.bf16.mxu0 0
  %1463 = vmatpush1.bf16.msra.mxu0 0
  %1464 = vmatprep.subr.bf16.mxu0 0
  %1465 = vmatpush1.bf16.msra.mxu0 0
  %1466 = vmatprep.subr.bf16.mxu0 0
  %1467 = vmatpush1.bf16.msra.mxu0 0
  %1468 = vmatprep.subr.bf16.mxu0 0
  %1469 = vmatpush1.bf16.msra.mxu0 0
  %1470 = vmatprep.subr.bf16.mxu0 0
  %1471 = vmatpush1.bf16.msra.mxu0 0
  %1472 = vmatprep.subr.bf16.mxu0 0
  %1473 = vmatpush1.bf16.msra.mxu0 0
  %1474 = vmatprep.subr.bf16.mxu0 0
  %1475 = vmatpush1.bf16.msra.mxu0 %v1456
  %1476 = vmatprep.subr.bf16.mxu0 0
  %1477 = vmatpush2.bf16.msra.mxu0 0
  %1478 = vmatprep.subr.bf16.mxu0 0
  %1479 = vmatpush2.bf16.msra.mxu0 0
  %1480 = vmatprep.subr.bf16.mxu0 0
  %1481 = vmatpush2.bf16.msra.mxu0 0
  %1482 = vmatprep.subr.bf16.mxu0 0
  %1483 = vmatpush2.bf16.msra.mxu0 0
  %1484 = vmatprep.subr.bf16.mxu0 0
  %1485 = vmatpush2.bf16.msra.mxu0 0
  %1486 = vmatprep.subr.bf16.mxu0 0
  %1487 = vmatpush2.bf16.msra.mxu0 0
  %1488 = vmatprep.subr.bf16.mxu0 0
  %1489 = vmatpush2.bf16.msra.mxu0 0
  %1490 = vmatprep.subr.bf16.mxu0 0
  %1491 = vmatpush2.bf16.msra.mxu0 0
  %1492 = vmatprep.mubr.bf16.mxu0 0
  %1493 = vmatmul.mubr.bf16.gmra.mxu0 %v1458
  %v1494 = vpop.f32.mrf.mxu0
  %v1495 = vadd.f32 0.0, %v1494
  %v1496 = vpop.f32.mrf.mxu0
  %v1497 = vpop.f32.mrf.mxu0
  %v1498 = vadd.f32 0.0, %v1497
  %v1499 = vpop.f32.mrf.mxu0
  %1500 = vdwg.mxu0
  %v1501 = vpack.c.bf16 %v1498, %v1495
  %v1502 = vld [vmem:[%s41] sm:$0xf]
  %v1503 = vld [vmem:[%s41 + $0x4] sm:$0xf]
  %s1504 = scalar_lea.vmem %s35, 32
  %v1505 = vld [vmem:[%s1504] sm:$0xf]
  %v1506 = vld [vmem:[%s1504 + $0x4] sm:$0xf]
  %v1507 = vld [vmem:[%s1504 + $0x8] sm:$0xf]
  %v1508 = vld [vmem:[%s1504 + $0xc] sm:$0xf]
  %v1509 = vld [vmem:[%s1504 + $0x10] sm:$0xf]
  %v1510 = vld [vmem:[%s1504 + $0x14] sm:$0xf]
  %v1511 = vld [vmem:[%s1504 + $0x18] sm:$0xf]
  %v1512 = vld [vmem:[%s1504 + $0x1c] sm:$0xf]
  %v1521 = vunpack.c.l.b16 %v1505
  %v1522 = vunpack.c.l.b16 %v1506
  %v1523 = vunpack.c.l.b16 %v1507
  %v1524 = vunpack.c.l.b16 %v1508
  %v1525 = vunpack.c.l.b16 %v1509
  %v1526 = vunpack.c.l.b16 %v1510
  %v1527 = vunpack.c.l.b16 %v1511
  %v1528 = vunpack.c.l.b16 %v1512
  %v1529 = vpack.c.b16 %v1522, %v1521
  %v1530 = vpack.c.b16 %v1524, %v1523
  %v1531 = vpack.c.b16 %v1526, %v1525
  %v1532 = vpack.c.b16 %v1528, %v1527
  %1537 = vmatprep.subr.bf16.mxu0 0
  %1538 = vmatpush1.bf16.msra.mxu0 0
  %1539 = vmatprep.subr.bf16.mxu0 0
  %1540 = vmatpush1.bf16.msra.mxu0 0
  %1541 = vmatprep.subr.bf16.mxu0 0
  %1542 = vmatpush1.bf16.msra.mxu0 0
  %1543 = vmatprep.subr.bf16.mxu0 0
  %1544 = vmatpush1.bf16.msra.mxu0 0
  %1545 = vmatprep.subr.bf16.mxu0 0
  %1546 = vmatpush1.bf16.msra.mxu0 %v1532
  %1547 = vmatprep.subr.bf16.mxu0 0
  %1548 = vmatpush1.bf16.msra.mxu0 %v1531
  %1549 = vmatprep.subr.bf16.mxu0 0
  %1550 = vmatpush1.bf16.msra.mxu0 %v1530
  %1551 = vmatprep.subr.bf16.mxu0 0
  %1552 = vmatpush1.bf16.msra.mxu0 %v1529
  %1553 = vmatprep.subr.bf16.mxu0 0
  %1554 = vmatpush2.bf16.msra.mxu0 0
  %1555 = vmatprep.subr.bf16.mxu0 0
  %1556 = vmatpush2.bf16.msra.mxu0 0
  %1557 = vmatprep.subr.bf16.mxu0 0
  %1558 = vmatpush2.bf16.msra.mxu0 0
  %1559 = vmatprep.subr.bf16.mxu0 0
  %1560 = vmatpush2.bf16.msra.mxu0 0
  %1561 = vmatprep.subr.bf16.mxu0 0
  %1562 = vmatpush2.bf16.msra.mxu0 0
  %1563 = vmatprep.subr.bf16.mxu0 0
  %1564 = vmatpush2.bf16.msra.mxu0 0
  %1565 = vmatprep.subr.bf16.mxu0 0
  %1566 = vmatpush2.bf16.msra.mxu0 0
  %1567 = vmatprep.subr.bf16.mxu0 0
  %1568 = vmatpush2.bf16.msra.mxu0 0
  %1569 = vmatprep.mubr.bf16.mxu0 0
  %1570 = vmatmul.mubr.bf16.gmra.mxu0 %v1193
  %v1571 = vpop.f32.mrf.mxu0
  %v1572 = vadd.f32 0.0, %v1571
  %v1573 = vpop.f32.mrf.mxu0
  %v1574 = vpop.f32.mrf.mxu0
  %v1575 = vadd.f32 0.0, %v1574
  %v1576 = vpop.f32.mrf.mxu0
  %1577 = vdwg.mxu0
  %s1578 = scalar_lea.vmem %s37, 32
  %v1579 = vld [vmem:[%s1578] sm:$0xf]
  %v1580 = vld [vmem:[%s1578 + $0x4] sm:$0xf]
  %v1581 = vld [vmem:[%s1578 + $0x8] sm:$0xf]
  %v1582 = vld [vmem:[%s1578 + $0xc] sm:$0xf]
  %v1583 = vld [vmem:[%s1578 + $0x10] sm:$0xf]
  %v1584 = vld [vmem:[%s1578 + $0x14] sm:$0xf]
  %v1585 = vld [vmem:[%s1578 + $0x18] sm:$0xf]
  %v1586 = vld [vmem:[%s1578 + $0x1c] sm:$0xf]
  %v1595 = vunpack.c.l.b16 %v1579
  %v1596 = vunpack.c.l.b16 %v1580
  %v1597 = vunpack.c.l.b16 %v1581
  %v1598 = vunpack.c.l.b16 %v1582
  %v1599 = vunpack.c.l.b16 %v1583
  %v1600 = vunpack.c.l.b16 %v1584
  %v1601 = vunpack.c.l.b16 %v1585
  %v1602 = vunpack.c.l.b16 %v1586
  %v1603 = vpack.c.b16 %v1596, %v1595
  %v1604 = vpack.c.b16 %v1598, %v1597
  %v1605 = vpack.c.b16 %v1600, %v1599
  %v1606 = vpack.c.b16 %v1602, %v1601
  %1611 = vmatprep.subr.bf16.mxu0 0
  %1612 = vmatpush1.bf16.msra.mxu0 0
  %1613 = vmatprep.subr.bf16.mxu0 0
  %1614 = vmatpush1.bf16.msra.mxu0 0
  %1615 = vmatprep.subr.bf16.mxu0 0
  %1616 = vmatpush1.bf16.msra.mxu0 0
  %1617 = vmatprep.subr.bf16.mxu0 0
  %1618 = vmatpush1.bf16.msra.mxu0 0
  %1619 = vmatprep.subr.bf16.mxu0 0
  %1620 = vmatpush1.bf16.msra.mxu0 %v1606
  %1621 = vmatprep.subr.bf16.mxu0 0
  %1622 = vmatpush1.bf16.msra.mxu0 %v1605
  %1623 = vmatprep.subr.bf16.mxu0 0
  %1624 = vmatpush1.bf16.msra.mxu0 %v1604
  %1625 = vmatprep.subr.bf16.mxu0 0
  %1626 = vmatpush1.bf16.msra.mxu0 %v1603
  %1627 = vmatprep.subr.bf16.mxu0 0
  %1628 = vmatpush2.bf16.msra.mxu0 0
  %1629 = vmatprep.subr.bf16.mxu0 0
  %1630 = vmatpush2.bf16.msra.mxu0 0
  %1631 = vmatprep.subr.bf16.mxu0 0
  %1632 = vmatpush2.bf16.msra.mxu0 0
  %1633 = vmatprep.subr.bf16.mxu0 0
  %1634 = vmatpush2.bf16.msra.mxu0 0
  %1635 = vmatprep.subr.bf16.mxu0 0
  %1636 = vmatpush2.bf16.msra.mxu0 0
  %1637 = vmatprep.subr.bf16.mxu0 0
  %1638 = vmatpush2.bf16.msra.mxu0 0
  %1639 = vmatprep.subr.bf16.mxu0 0
  %1640 = vmatpush2.bf16.msra.mxu0 0
  %1641 = vmatprep.subr.bf16.mxu0 0
  %1642 = vmatpush2.bf16.msra.mxu0 0
  %1643 = vmatprep.mubr.bf16.mxu0 0
  %1644 = vmatmul.mubr.bf16.gmra.mxu0 %v1193
  %v1645 = vpop.f32.mrf.mxu0
  %v1646 = vadd.f32 0.0, %v1645
  %v1647 = vpop.f32.mrf.mxu0
  %v1648 = vpop.f32.mrf.mxu0
  %v1649 = vadd.f32 0.0, %v1648
  %v1650 = vpop.f32.mrf.mxu0
  %1651 = vdwg.mxu0
  %s1652 = scalar_lea.vmem %s39, 32
  %v1653 = vld [vmem:[%s1652] sm:$0xf]
  %v1654 = vld [vmem:[%s1652 + $0x4] sm:$0xf]
  %v1655 = vld [vmem:[%s1652 + $0x8] sm:$0xf]
  %v1656 = vld [vmem:[%s1652 + $0xc] sm:$0xf]
  %v1657 = vld [vmem:[%s1652 + $0x10] sm:$0xf]
  %v1658 = vld [vmem:[%s1652 + $0x14] sm:$0xf]
  %v1659 = vld [vmem:[%s1652 + $0x18] sm:$0xf]
  %v1660 = vld [vmem:[%s1652 + $0x1c] sm:$0xf]
  %v1669 = vunpack.c.l.b16 %v1653
  %v1670 = vunpack.c.l.b16 %v1654
  %v1671 = vunpack.c.l.b16 %v1655
  %v1672 = vunpack.c.l.b16 %v1656
  %v1673 = vunpack.c.l.b16 %v1657
  %v1674 = vunpack.c.l.b16 %v1658
  %v1675 = vunpack.c.l.b16 %v1659
  %v1676 = vunpack.c.l.b16 %v1660
  %v1677 = vpack.c.b16 %v1670, %v1669
  %v1678 = vpack.c.b16 %v1672, %v1671
  %v1679 = vpack.c.b16 %v1674, %v1673
  %v1680 = vpack.c.b16 %v1676, %v1675
  %1685 = vmatprep.subr.bf16.mxu0 0
  %1686 = vmatpush1.bf16.msra.mxu0 0
  %1687 = vmatprep.subr.bf16.mxu0 0
  %1688 = vmatpush1.bf16.msra.mxu0 0
  %1689 = vmatprep.subr.bf16.mxu0 0
  %1690 = vmatpush1.bf16.msra.mxu0 0
  %1691 = vmatprep.subr.bf16.mxu0 0
  %1692 = vmatpush1.bf16.msra.mxu0 0
  %1693 = vmatprep.subr.bf16.mxu0 0
  %1694 = vmatpush1.bf16.msra.mxu0 %v1680
  %1695 = vmatprep.subr.bf16.mxu0 0
  %1696 = vmatpush1.bf16.msra.mxu0 %v1679
  %1697 = vmatprep.subr.bf16.mxu0 0
  %1698 = vmatpush1.bf16.msra.mxu0 %v1678
  %1699 = vmatprep.subr.bf16.mxu0 0
  %1700 = vmatpush1.bf16.msra.mxu0 %v1677
  %1701 = vmatprep.subr.bf16.mxu0 0
  %1702 = vmatpush2.bf16.msra.mxu0 0
  %1703 = vmatprep.subr.bf16.mxu0 0
  %1704 = vmatpush2.bf16.msra.mxu0 0
  %1705 = vmatprep.subr.bf16.mxu0 0
  %1706 = vmatpush2.bf16.msra.mxu0 0
  %1707 = vmatprep.subr.bf16.mxu0 0
  %1708 = vmatpush2.bf16.msra.mxu0 0
  %1709 = vmatprep.subr.bf16.mxu0 0
  %1710 = vmatpush2.bf16.msra.mxu0 0
  %1711 = vmatprep.subr.bf16.mxu0 0
  %1712 = vmatpush2.bf16.msra.mxu0 0
  %1713 = vmatprep.subr.bf16.mxu0 0
  %1714 = vmatpush2.bf16.msra.mxu0 0
  %1715 = vmatprep.subr.bf16.mxu0 0
  %1716 = vmatpush2.bf16.msra.mxu0 0
  %1717 = vmatprep.mubr.bf16.mxu0 0
  %1718 = vmatmul.mubr.bf16.gmra.mxu0 %v1193
  %v1719 = vpop.f32.mrf.mxu0
  %v1720 = vadd.f32 0.0, %v1719
  %v1721 = vpop.f32.mrf.mxu0
  %v1722 = vpop.f32.mrf.mxu0
  %v1723 = vadd.f32 0.0, %v1722
  %v1724 = vpop.f32.mrf.mxu0
  %1725 = vdwg.mxu0
  %v1726 = vpack.c.bf16 %v1575, %v1572
  %v1727 = vpack.c.bf16 %v1649, %v1646
  %v1729 = vsel %vm452, %v1726, 0
  %v1732 = vsel %vm452, %v1727, 0
  %1734 = vmatprep.subr.bf16.mxu0 0
  %1735 = vmatpush1.bf16.xpose.msra.mxu0 0
  %1736 = vmatprep.subr.bf16.mxu0 0
  %1737 = vmatpush1.bf16.xpose.msra.mxu0 0
  %1738 = vmatprep.subr.bf16.mxu0 0
  %1739 = vmatpush1.bf16.xpose.msra.mxu0 0
  %1740 = vmatprep.subr.bf16.mxu0 0
  %1741 = vmatpush1.bf16.xpose.msra.mxu0 0
  %1742 = vmatprep.subr.bf16.mxu0 0
  %1743 = vmatpush1.bf16.xpose.msra.mxu0 0
  %1744 = vmatprep.subr.bf16.mxu0 0
  %1745 = vmatpush1.bf16.xpose.msra.mxu0 0
  %1746 = vmatprep.subr.bf16.mxu0 0
  %1747 = vmatpush1.bf16.xpose.msra.mxu0 0
  %1748 = vmatprep.subr.bf16.mxu0 0
  %1749 = vmatpush1.bf16.xpose.msra.mxu0 %v1732
  %1750 = vmatprep.subr.bf16.mxu0 0
  %1751 = vmatpush2.bf16.xpose.msra.mxu0 0
  %1752 = vmatprep.subr.bf16.mxu0 0
  %1753 = vmatpush2.bf16.xpose.msra.mxu0 0
  %1754 = vmatprep.subr.bf16.mxu0 0
  %1755 = vmatpush2.bf16.xpose.msra.mxu0 0
  %1756 = vmatprep.subr.bf16.mxu0 0
  %1757 = vmatpush2.bf16.xpose.msra.mxu0 0
  %1758 = vmatprep.subr.bf16.mxu0 0
  %1759 = vmatpush2.bf16.xpose.msra.mxu0 0
  %1760 = vmatprep.subr.bf16.mxu0 0
  %1761 = vmatpush2.bf16.xpose.msra.mxu0 0
  %1762 = vmatprep.subr.bf16.mxu0 0
  %1763 = vmatpush2.bf16.xpose.msra.mxu0 0
  %1764 = vmatprep.subr.bf16.mxu0 0
  %1765 = vmatpush2.bf16.xpose.msra.mxu0 0
  %1766 = vmatprep.mubr.bf16.mxu0 0
  %1767 = vmatmul.mubr.bf16.gmra.mxu0 %v1729
  %v1768 = vpop.f32.mrf.mxu0
  %v1769 = vadd.f32 0.0, %v1768
  %v1770 = vpop.f32.mrf.mxu0
  %v1771 = vpop.f32.mrf.mxu0
  %v1772 = vadd.f32 0.0, %v1771
  %v1773 = vpop.f32.mrf.mxu0
  %1774 = vdwg.mxu0
  %v1775 = vmul.f32 %v1769, 0.25
  %v1776 = vmul.f32 %v1772, 0.25
  %v1777 = vsel %vm452, %v1775, -inf
  %1778 = vmax.xlane.f32.xlu0 %v1777
  %v1779 = vpop.xlane.xlu0 %1778
  %v1780 = vsel %vm452, %v1776, -inf
  %1781 = vmax.xlane.f32.xlu0 %v1780
  %v1782 = vpop.xlane.xlu0 %1781
  %v1783 = vsub.f32 %v1775, %v1779
  %v1784 = vsub.f32 %v1776, %v1782
  %v1785 = vmul.f32 %v1783, 1.442695
  %v1786 = vpow.pop %v1785
  %v1787 = vmul.f32 %v1784, 1.442695
  %v1788 = vpow.pop %v1787
  %v1789 = vsel %vm452, %v1786, 0.0
  %1790 = vadd.xlane.f32.xlu0 %v1789
  %v1791 = vpop.xlane.xlu0 %1790
  %v1792 = vsel %vm452, %v1788, 0.0
  %1793 = vadd.xlane.f32.xlu0 %v1792
  %v1794 = vpop.xlane.xlu0 %1793
  %v1795 = vrcp.pop %v1791
  %v1796 = vrcp.pop %v1794
  %v1797 = vmul.f32 %v1786, %v1795
  %v1798 = vmul.f32 %v1788, %v1796
  %v1799 = vpack.c.bf16 %v1798, %v1797
  %v1800 = vpack.c.bf16 %v1723, %v1720
  %v1802 = vsel %vm452, %v1799, 0
  %1804 = vmatprep.subr.bf16.mxu0 0
  %1805 = vmatpush1.bf16.msra.mxu0 0
  %1806 = vmatprep.subr.bf16.mxu0 0
  %1807 = vmatpush1.bf16.msra.mxu0 0
  %1808 = vmatprep.subr.bf16.mxu0 0
  %1809 = vmatpush1.bf16.msra.mxu0 0
  %1810 = vmatprep.subr.bf16.mxu0 0
  %1811 = vmatpush1.bf16.msra.mxu0 0
  %1812 = vmatprep.subr.bf16.mxu0 0
  %1813 = vmatpush1.bf16.msra.mxu0 0
  %1814 = vmatprep.subr.bf16.mxu0 0
  %1815 = vmatpush1.bf16.msra.mxu0 0
  %1816 = vmatprep.subr.bf16.mxu0 0
  %1817 = vmatpush1.bf16.msra.mxu0 0
  %1818 = vmatprep.subr.bf16.mxu0 0
  %1819 = vmatpush1.bf16.msra.mxu0 %v1800
  %1820 = vmatprep.subr.bf16.mxu0 0
  %1821 = vmatpush2.bf16.msra.mxu0 0
  %1822 = vmatprep.subr.bf16.mxu0 0
  %1823 = vmatpush2.bf16.msra.mxu0 0
  %1824 = vmatprep.subr.bf16.mxu0 0
  %1825 = vmatpush2.bf16.msra.mxu0 0
  %1826 = vmatprep.subr.bf16.mxu0 0
  %1827 = vmatpush2.bf16.msra.mxu0 0
  %1828 = vmatprep.subr.bf16.mxu0 0
  %1829 = vmatpush2.bf16.msra.mxu0 0
  %1830 = vmatprep.subr.bf16.mxu0 0
  %1831 = vmatpush2.bf16.msra.mxu0 0
  %1832 = vmatprep.subr.bf16.mxu0 0
  %1833 = vmatpush2.bf16.msra.mxu0 0
  %1834 = vmatprep.subr.bf16.mxu0 0
  %1835 = vmatpush2.bf16.msra.mxu0 0
  %1836 = vmatprep.mubr.bf16.mxu0 0
  %1837 = vmatmul.mubr.bf16.gmra.mxu0 %v1802
  %v1838 = vpop.f32.mrf.mxu0
  %v1839 = vadd.f32 0.0, %v1838
  %v1840 = vpop.f32.mrf.mxu0
  %v1841 = vpop.f32.mrf.mxu0
  %v1842 = vadd.f32 0.0, %v1841
  %v1843 = vpop.f32.mrf.mxu0
  %1844 = vdwg.mxu0
  %v1845 = vpack.c.bf16 %v1842, %v1839
  %s1846 = scalar_lea.vmem %s41, 8
  %v1847 = vld [vmem:[%s1846] sm:$0xf]
  %v1848 = vld [vmem:[%s1846 + $0x4] sm:$0xf]
  %v1851 = vunpack.c.l.b16 %v1847
  %v1852 = vunpack.c.l.b16 %v1848
  %v1853 = vpack.c.b16 %v1852, %v1851
  %v1856 = vsel %vm452, %v1845, 0
  %1858 = vmatprep.subr.bf16.mxu0 0
  %1859 = vmatpush1.bf16.msra.mxu0 0
  %1860 = vmatprep.subr.bf16.mxu0 0
  %1861 = vmatpush1.bf16.msra.mxu0 0
  %1862 = vmatprep.subr.bf16.mxu0 0
  %1863 = vmatpush1.bf16.msra.mxu0 0
  %1864 = vmatprep.subr.bf16.mxu0 0
  %1865 = vmatpush1.bf16.msra.mxu0 0
  %1866 = vmatprep.subr.bf16.mxu0 0
  %1867 = vmatpush1.bf16.msra.mxu0 0
  %1868 = vmatprep.subr.bf16.mxu0 0
  %1869 = vmatpush1.bf16.msra.mxu0 0
  %1870 = vmatprep.subr.bf16.mxu0 0
  %1871 = vmatpush1.bf16.msra.mxu0 0
  %1872 = vmatprep.subr.bf16.mxu0 0
  %1873 = vmatpush1.bf16.msra.mxu0 %v1853
  %1874 = vmatprep.subr.bf16.mxu0 0
  %1875 = vmatpush2.bf16.msra.mxu0 0
  %1876 = vmatprep.subr.bf16.mxu0 0
  %1877 = vmatpush2.bf16.msra.mxu0 0
  %1878 = vmatprep.subr.bf16.mxu0 0
  %1879 = vmatpush2.bf16.msra.mxu0 0
  %1880 = vmatprep.subr.bf16.mxu0 0
  %1881 = vmatpush2.bf16.msra.mxu0 0
  %1882 = vmatprep.subr.bf16.mxu0 0
  %1883 = vmatpush2.bf16.msra.mxu0 0
  %1884 = vmatprep.subr.bf16.mxu0 0
  %1885 = vmatpush2.bf16.msra.mxu0 0
  %1886 = vmatprep.subr.bf16.mxu0 0
  %1887 = vmatpush2.bf16.msra.mxu0 0
  %1888 = vmatprep.subr.bf16.mxu0 0
  %1889 = vmatpush2.bf16.msra.mxu0 0
  %1890 = vmatprep.mubr.bf16.mxu0 0
  %1891 = vmatmul.mubr.bf16.gmra.mxu0 %v1856
  %v1892 = vpop.f32.mrf.mxu0
  %v1893 = vadd.f32 0.0, %v1892
  %v1894 = vpop.f32.mrf.mxu0
  %v1895 = vpop.f32.mrf.mxu0
  %v1896 = vadd.f32 0.0, %v1895
  %v1897 = vpop.f32.mrf.mxu0
  %1898 = vdwg.mxu0
  %v1901 = vunpack.c.l.b16 %v1502
  %v1902 = vunpack.c.l.b16 %v1503
  %v1903 = vpack.c.b16 %v1902, %v1901
  %v1906 = vsel %vm452, %v1501, 0
  %1908 = vmatprep.subr.bf16.mxu0 0
  %1909 = vmatpush1.bf16.msra.mxu0 0
  %1910 = vmatprep.subr.bf16.mxu0 0
  %1911 = vmatpush1.bf16.msra.mxu0 0
  %1912 = vmatprep.subr.bf16.mxu0 0
  %1913 = vmatpush1.bf16.msra.mxu0 0
  %1914 = vmatprep.subr.bf16.mxu0 0
  %1915 = vmatpush1.bf16.msra.mxu0 0
  %1916 = vmatprep.subr.bf16.mxu0 0
  %1917 = vmatpush1.bf16.msra.mxu0 0
  %1918 = vmatprep.subr.bf16.mxu0 0
  %1919 = vmatpush1.bf16.msra.mxu0 0
  %1920 = vmatprep.subr.bf16.mxu0 0
  %1921 = vmatpush1.bf16.msra.mxu0 0
  %1922 = vmatprep.subr.bf16.mxu0 0
  %1923 = vmatpush1.bf16.msra.mxu0 %v1903
  %1924 = vmatprep.subr.bf16.mxu0 0
  %1925 = vmatpush2.bf16.msra.mxu0 0
  %1926 = vmatprep.subr.bf16.mxu0 0
  %1927 = vmatpush2.bf16.msra.mxu0 0
  %1928 = vmatprep.subr.bf16.mxu0 0
  %1929 = vmatpush2.bf16.msra.mxu0 0
  %1930 = vmatprep.subr.bf16.mxu0 0
  %1931 = vmatpush2.bf16.msra.mxu0 0
  %1932 = vmatprep.subr.bf16.mxu0 0
  %1933 = vmatpush2.bf16.msra.mxu0 0
  %1934 = vmatprep.subr.bf16.mxu0 0
  %1935 = vmatpush2.bf16.msra.mxu0 0
  %1936 = vmatprep.subr.bf16.mxu0 0
  %1937 = vmatpush2.bf16.msra.mxu0 0
  %1938 = vmatprep.subr.bf16.mxu0 0
  %1939 = vmatpush2.bf16.msra.mxu0 0
  %1940 = vmatprep.mubr.bf16.mxu0 0
  %1941 = vmatmul.mubr.bf16.gmra.mxu0 %v1906
  %v1942 = vpop.f32.mrf.mxu0
  %v1943 = vadd.f32 %v1893, %v1942
  %v1944 = vpop.f32.mrf.mxu0
  %v1945 = vpop.f32.mrf.mxu0
  %v1946 = vadd.f32 %v1896, %v1945
  %v1947 = vpop.f32.mrf.mxu0
  %1948 = vdwg.mxu0
  %v1949 = vadd.f32 %v1113, %v1943
  %v1950 = vadd.f32 %v1114, %v1946
  %v1952 = vlaneseq
  %v1953 = vshrl.u32 %v1952, 7
  %v1954 = vsub.s32 0, %v1953
  %v1955 = vrot.slane %v1158, %v1954
  %v1957 = vadd.f32 %v1949, %v1955
  %v1958 = vadd.f32 %v1950, %v1955
  %v1959 = vld [vmem:[%s45] sm:$0x3]
  %v1960 = vsel %vm129, %v1957, 0.0
  %1961 = vadd.xlane.f32.xlu0 %v1960
  %v1962 = vpop.xlane.xlu0 %1961
  %v1963 = vsel %vm129, %v1958, 0.0
  %1964 = vadd.xlane.f32.xlu0 %v1963
  %v1965 = vpop.xlane.xlu0 %1964
  %v1966 = vmul.f32 %v1957, %v1957
  %v1967 = vmul.f32 %v1958, %v1958
  %v1968 = vsel %vm129, %v1966, 0.0
  %1969 = vadd.xlane.f32.xlu0 %v1968
  %v1970 = vpop.xlane.xlu0 %1969
  %v1971 = vsel %vm129, %v1967, 0.0
  %1972 = vadd.xlane.f32.xlu0 %v1971
  %v1973 = vpop.xlane.xlu0 %1972
  %v1974 = vmul.f32 %v1962, %v144
  %v1975 = vmul.f32 %v1965, %v144
  %v1976 = vmul.f32 %v1970, %v144
  %v1977 = vmul.f32 %v1973, %v144
  %v1978 = vmul.f32 %v1974, %v1974
  %v1979 = vmul.f32 %v1975, %v1975
  %v1980 = vsub.f32 %v1976, %v1978
  %v1981 = vsub.f32 %v1977, %v1979
  %v1982 = vadd.f32 %v1980, 1e-05
  %v1983 = vadd.f32 %v1981, 1e-05
  %v1984 = vrsqrt.pop %v1982
  %v1985 = vrsqrt.pop %v1983
  %v1986 = vsub.f32 %v1957, %v1974
  %v1987 = vsub.f32 %v1958, %v1975
  %v1988 = vmul.f32 %v1986, %v1984
  %v1989 = vmul.f32 %v1987, %v1985
  %v1990 = vlaneseq
  %v1991 = vshrl.u32 %v1990, 7
  %v1992 = vsub.s32 0, %v1991
  %v1993 = vrot.slane %v1959, %v1992
  %v1994 = vmul.f32 %v1988, %v1993
  %v1995 = vmul.f32 %v1989, %v1993
  %v1996 = vlaneseq
  %v1997 = vshrl.u32 %v1996, 7
  %v1998 = vsub.s32 1, %v1997
  %v1999 = vrot.slane %v1959, %v1998
  %v2000 = vadd.f32 %v1994, %v1999
  %v2001 = vadd.f32 %v1995, %v1999
  %v2002 = vpack.c.bf16 %v2001, %v2000
  %v2003 = vld [vmem:[%s47] sm:$0xff]
  %v2004 = vld [vmem:[%s47 + $0x8] sm:$0xff]
  %v2005 = vld [vmem:[%s47 + $0x10] sm:$0xff]
  %v2006 = vld [vmem:[%s47 + $0x18] sm:$0xff]
  %v2007 = vld [vmem:[%s47 + $0x20] sm:$0xff]
  %v2008 = vld [vmem:[%s47 + $0x28] sm:$0xff]
  %v2009 = vld [vmem:[%s47 + $0x30] sm:$0xff]
  %v2010 = vld [vmem:[%s47 + $0x38] sm:$0xff]
  %v2011 = vld [vmem:[%s49] sm:$0x3]
  %v2013 = vlaneseq
  %v2014 = vshrl.u32 %v2013, 7
  %v2015 = vsub.s32 0, %v2014
  %v2016 = vrot.slane %v2011, %v2015
  %v2017 = vlaneseq
  %v2018 = vshrl.u32 %v2017, 7
  %v2019 = vsub.s32 1, %v2018
  %v2020 = vrot.slane %v2011, %v2019
  %v2031 = vunpack.c.l.b16 %v2003
  %v2032 = vunpack.c.h.b16 %v2003
  %v2033 = vunpack.c.l.b16 %v2004
  %v2034 = vunpack.c.h.b16 %v2004
  %v2035 = vunpack.c.l.b16 %v2005
  %v2036 = vunpack.c.h.b16 %v2005
  %v2037 = vunpack.c.l.b16 %v2006
  %v2038 = vunpack.c.h.b16 %v2006
  %v2039 = vunpack.c.l.b16 %v2007
  %v2040 = vunpack.c.h.b16 %v2007
  %v2041 = vunpack.c.l.b16 %v2008
  %v2042 = vunpack.c.h.b16 %v2008
  %v2043 = vunpack.c.l.b16 %v2009
  %v2044 = vunpack.c.h.b16 %v2009
  %v2045 = vunpack.c.l.b16 %v2010
  %v2046 = vunpack.c.h.b16 %v2010
  %v2047 = vpack.c.b16 %v2033, %v2031
  %v2048 = vpack.c.b16 %v2034, %v2032
  %v2049 = vpack.c.b16 %v2037, %v2035
  %v2050 = vpack.c.b16 %v2038, %v2036
  %v2051 = vpack.c.b16 %v2041, %v2039
  %v2052 = vpack.c.b16 %v2042, %v2040
  %v2053 = vpack.c.b16 %v2045, %v2043
  %v2054 = vpack.c.b16 %v2046, %v2044
  %v2064 = vsel %vm129, %v2002, 0
  %2066 = vmatprep.subr.bf16.mxu0 0
  %2067 = vmatpush1.bf16.msra.mxu0 0
  %2068 = vmatprep.subr.bf16.mxu0 0
  %2069 = vmatpush1.bf16.msra.mxu0 0
  %2070 = vmatprep.subr.bf16.mxu0 0
  %2071 = vmatpush1.bf16.msra.mxu0 0
  %2072 = vmatprep.subr.bf16.mxu0 0
  %2073 = vmatpush1.bf16.msra.mxu0 0
  %2074 = vmatprep.subr.bf16.mxu0 %v2054
  %2075 = vmatpush1.bf16.msra.mxu0 %v2053
  %2076 = vmatprep.subr.bf16.mxu0 %v2052
  %2077 = vmatpush1.bf16.msra.mxu0 %v2051
  %2078 = vmatprep.subr.bf16.mxu0 %v2050
  %2079 = vmatpush1.bf16.msra.mxu0 %v2049
  %2080 = vmatprep.subr.bf16.mxu0 %v2048
  %2081 = vmatpush1.bf16.msra.mxu0 %v2047
  %2082 = vmatprep.subr.bf16.mxu0 0
  %2083 = vmatpush2.bf16.msra.mxu0 0
  %2084 = vmatprep.subr.bf16.mxu0 0
  %2085 = vmatpush2.bf16.msra.mxu0 0
  %2086 = vmatprep.subr.bf16.mxu0 0
  %2087 = vmatpush2.bf16.msra.mxu0 0
  %2088 = vmatprep.subr.bf16.mxu0 0
  %2089 = vmatpush2.bf16.msra.mxu0 0
  %2090 = vmatprep.subr.bf16.mxu0 0
  %2091 = vmatpush2.bf16.msra.mxu0 0
  %2092 = vmatprep.subr.bf16.mxu0 0
  %2093 = vmatpush2.bf16.msra.mxu0 0
  %2094 = vmatprep.subr.bf16.mxu0 0
  %2095 = vmatpush2.bf16.msra.mxu0 0
  %2096 = vmatprep.subr.bf16.mxu0 0
  %2097 = vmatpush2.bf16.msra.mxu0 0
  %2098 = vmatprep.mubr.bf16.mxu0 0
  %2099 = vmatmul.mubr.bf16.gmra.mxu0 %v2064
  %v2100 = vpop.f32.mrf.mxu0
  %v2101 = vadd.f32 %v2016, %v2100
  %v2102 = vpop.f32.mrf.mxu0
  %v2103 = vadd.f32 %v2020, %v2102
  %v2104 = vpop.f32.mrf.mxu0
  %v2105 = vadd.f32 %v2016, %v2104
  %v2106 = vpop.f32.mrf.mxu0
  %v2107 = vadd.f32 %v2020, %v2106
  %2108 = vdwg.mxu0
  %v2109 = vld [vmem:[%s51] sm:$0xff]
  %v2110 = vld [vmem:[%s51 + $0x8] sm:$0xff]
  %v2111 = vld [vmem:[%s51 + $0x10] sm:$0xff]
  %v2112 = vld [vmem:[%s51 + $0x18] sm:$0xff]
  %v2113 = vld [vmem:[%s51 + $0x20] sm:$0xff]
  %v2114 = vld [vmem:[%s51 + $0x28] sm:$0xff]
  %v2115 = vld [vmem:[%s51 + $0x30] sm:$0xff]
  %v2116 = vld [vmem:[%s51 + $0x38] sm:$0xff]
  %v2117 = vld [vmem:[%s53] sm:$0x3]
  %v2119 = vlaneseq
  %v2120 = vshrl.u32 %v2119, 7
  %v2121 = vsub.s32 0, %v2120
  %v2122 = vrot.slane %v2117, %v2121
  %v2123 = vlaneseq
  %v2124 = vshrl.u32 %v2123, 7
  %v2125 = vsub.s32 1, %v2124
  %v2126 = vrot.slane %v2117, %v2125
  %v2137 = vunpack.c.l.b16 %v2109
  %v2138 = vunpack.c.h.b16 %v2109
  %v2139 = vunpack.c.l.b16 %v2110
  %v2140 = vunpack.c.h.b16 %v2110
  %v2141 = vunpack.c.l.b16 %v2111
  %v2142 = vunpack.c.h.b16 %v2111
  %v2143 = vunpack.c.l.b16 %v2112
  %v2144 = vunpack.c.h.b16 %v2112
  %v2145 = vunpack.c.l.b16 %v2113
  %v2146 = vunpack.c.h.b16 %v2113
  %v2147 = vunpack.c.l.b16 %v2114
  %v2148 = vunpack.c.h.b16 %v2114
  %v2149 = vunpack.c.l.b16 %v2115
  %v2150 = vunpack.c.h.b16 %v2115
  %v2151 = vunpack.c.l.b16 %v2116
  %v2152 = vunpack.c.h.b16 %v2116
  %v2153 = vpack.c.b16 %v2139, %v2137
  %v2154 = vpack.c.b16 %v2140, %v2138
  %v2155 = vpack.c.b16 %v2143, %v2141
  %v2156 = vpack.c.b16 %v2144, %v2142
  %v2157 = vpack.c.b16 %v2147, %v2145
  %v2158 = vpack.c.b16 %v2148, %v2146
  %v2159 = vpack.c.b16 %v2151, %v2149
  %v2160 = vpack.c.b16 %v2152, %v2150
  %2169 = vmatprep.subr.bf16.mxu0 0
  %2170 = vmatpush1.bf16.msra.mxu0 0
  %2171 = vmatprep.subr.bf16.mxu0 0
  %2172 = vmatpush1.bf16.msra.mxu0 0
  %2173 = vmatprep.subr.bf16.mxu0 0
  %2174 = vmatpush1.bf16.msra.mxu0 0
  %2175 = vmatprep.subr.bf16.mxu0 0
  %2176 = vmatpush1.bf16.msra.mxu0 0
  %2177 = vmatprep.subr.bf16.mxu0 %v2160
  %2178 = vmatpush1.bf16.msra.mxu0 %v2159
  %2179 = vmatprep.subr.bf16.mxu0 %v2158
  %2180 = vmatpush1.bf16.msra.mxu0 %v2157
  %2181 = vmatprep.subr.bf16.mxu0 %v2156
  %2182 = vmatpush1.bf16.msra.mxu0 %v2155
  %2183 = vmatprep.subr.bf16.mxu0 %v2154
  %2184 = vmatpush1.bf16.msra.mxu0 %v2153
  %2185 = vmatprep.subr.bf16.mxu0 0
  %2186 = vmatpush2.bf16.msra.mxu0 0
  %2187 = vmatprep.subr.bf16.mxu0 0
  %2188 = vmatpush2.bf16.msra.mxu0 0
  %2189 = vmatprep.subr.bf16.mxu0 0
  %2190 = vmatpush2.bf16.msra.mxu0 0
  %2191 = vmatprep.subr.bf16.mxu0 0
  %2192 = vmatpush2.bf16.msra.mxu0 0
  %2193 = vmatprep.subr.bf16.mxu0 0
  %2194 = vmatpush2.bf16.msra.mxu0 0
  %2195 = vmatprep.subr.bf16.mxu0 0
  %2196 = vmatpush2.bf16.msra.mxu0 0
  %2197 = vmatprep.subr.bf16.mxu0 0
  %2198 = vmatpush2.bf16.msra.mxu0 0
  %2199 = vmatprep.subr.bf16.mxu0 0
  %2200 = vmatpush2.bf16.msra.mxu0 0
  %2201 = vmatprep.mubr.bf16.mxu0 0
  %2202 = vmatmul.mubr.bf16.gmra.mxu0 %v2064
  %v2203 = vpop.f32.mrf.mxu0
  %v2204 = vadd.f32 %v2122, %v2203
  %v2205 = vpop.f32.mrf.mxu0
  %v2206 = vadd.f32 %v2126, %v2205
  %v2207 = vpop.f32.mrf.mxu0
  %v2208 = vadd.f32 %v2122, %v2207
  %v2209 = vpop.f32.mrf.mxu0
  %v2210 = vadd.f32 %v2126, %v2209
  %2211 = vdwg.mxu0
  %v2212 = vmul.f32 %v2204, %v2204
  %v2213 = vmul.f32 %v2206, %v2206
  %v2214 = vmul.f32 %v2208, %v2208
  %v2215 = vmul.f32 %v2210, %v2210
  %v2216 = vmul.f32 %v2204, %v2212
  %v2217 = vmul.f32 %v2206, %v2213
  %v2218 = vmul.f32 %v2208, %v2214
  %v2219 = vmul.f32 %v2210, %v2215
  %v2220 = vmul.f32 %v2216, 0.044715
  %v2221 = vmul.f32 %v2217, 0.044715
  %v2222 = vmul.f32 %v2218, 0.044715
  %v2223 = vmul.f32 %v2219, 0.044715
  %v2224 = vadd.f32 %v2204, %v2220
  %v2225 = vadd.f32 %v2206, %v2221
  %v2226 = vadd.f32 %v2208, %v2222
  %v2227 = vadd.f32 %v2210, %v2223
  %v2228 = vmul.f32 %v2224, 0.7978846
  %v2229 = vmul.f32 %v2225, 0.7978846
  %v2230 = vmul.f32 %v2226, 0.7978846
  %v2231 = vmul.f32 %v2227, 0.7978846
  %v2232 = vtanh.pop %v2228
  %v2233 = vtanh.pop %v2229
  %v2234 = vtanh.pop %v2230
  %v2235 = vtanh.pop %v2231
  %v2236 = vadd.f32 %v2232, 1.0
  %v2237 = vadd.f32 %v2233, 1.0
  %v2238 = vadd.f32 %v2234, 1.0
  %v2239 = vadd.f32 %v2235, 1.0
  %v2240 = vmul.f32 %v2236, 0.5
  %v2241 = vmul.f32 %v2237, 0.5
  %v2242 = vmul.f32 %v2238, 0.5
  %v2243 = vmul.f32 %v2239, 0.5
  %v2244 = vmul.f32 %v2204, %v2240
  %v2245 = vmul.f32 %v2206, %v2241
  %v2246 = vmul.f32 %v2208, %v2242
  %v2247 = vmul.f32 %v2210, %v2243
  %v2248 = vmul.f32 %v2101, %v2244
  %v2249 = vmul.f32 %v2103, %v2245
  %v2250 = vmul.f32 %v2105, %v2246
  %v2251 = vmul.f32 %v2107, %v2247
  %v2252 = vpack.c.bf16 %v2250, %v2248
  %v2253 = vpack.c.bf16 %v2251, %v2249
  %v2254 = vld [vmem:[%s55] sm:$0xf]
  %v2255 = vld [vmem:[%s55 + $0x4] sm:$0xf]
  %v2256 = vld [vmem:[%s55 + $0x8] sm:$0xf]
  %v2257 = vld [vmem:[%s55 + $0xc] sm:$0xf]
  %v2258 = vld [vmem:[%s55 + $0x10] sm:$0xf]
  %v2259 = vld [vmem:[%s55 + $0x14] sm:$0xf]
  %v2260 = vld [vmem:[%s55 + $0x18] sm:$0xf]
  %v2261 = vld [vmem:[%s55 + $0x1c] sm:$0xf]
  %v2262 = vld [vmem:[%s55 + $0x20] sm:$0xf]
  %v2263 = vld [vmem:[%s55 + $0x24] sm:$0xf]
  %v2264 = vld [vmem:[%s55 + $0x28] sm:$0xf]
  %v2265 = vld [vmem:[%s55 + $0x2c] sm:$0xf]
  %v2266 = vld [vmem:[%s55 + $0x30] sm:$0xf]
  %v2267 = vld [vmem:[%s55 + $0x34] sm:$0xf]
  %v2268 = vld [vmem:[%s55 + $0x38] sm:$0xf]
  %v2269 = vld [vmem:[%s55 + $0x3c] sm:$0xf]
  %v2270 = vld [vmem:[%s55 + $0x40] sm:$0xf]
  %v2271 = vld [vmem:[%s55 + $0x44] sm:$0xf]
  %v2272 = vld [vmem:[%s55 + $0x48] sm:$0xf]
  %v2273 = vld [vmem:[%s55 + $0x4c] sm:$0xf]
  %v2274 = vld [vmem:[%s55 + $0x50] sm:$0xf]
  %v2275 = vld [vmem:[%s55 + $0x54] sm:$0xf]
  %v2276 = vld [vmem:[%s55 + $0x58] sm:$0xf]
  %v2277 = vld [vmem:[%s55 + $0x5c] sm:$0xf]
  %v2278 = vld [vmem:[%s55 + $0x60] sm:$0xf]
  %v2279 = vld [vmem:[%s55 + $0x64] sm:$0xf]
  %v2280 = vld [vmem:[%s55 + $0x68] sm:$0xf]
  %v2281 = vld [vmem:[%s55 + $0x6c] sm:$0xf]
  %v2282 = vld [vmem:[%s55 + $0x70] sm:$0xf]
  %v2283 = vld [vmem:[%s55 + $0x74] sm:$0xf]
  %v2284 = vld [vmem:[%s55 + $0x78] sm:$0xf]
  %v2285 = vld [vmem:[%s55 + $0x7c] sm:$0xf]
  %v2286 = vld [vmem:[%s57] sm:$0x1]
  %v2288 = vlaneseq
  %v2289 = vshrl.u32 %v2288, 7
  %v2290 = vsub.s32 0, %v2289
  %v2291 = vrot.slane %v2286, %v2290
  %v2325 = vunpack.c.l.b16 %v2254
  %v2326 = vunpack.c.l.b16 %v2255
  %v2327 = vunpack.c.l.b16 %v2256
  %v2328 = vunpack.c.l.b16 %v2257
  %v2329 = vunpack.c.l.b16 %v2258
  %v2330 = vunpack.c.l.b16 %v2259
  %v2331 = vunpack.c.l.b16 %v2260
  %v2332 = vunpack.c.l.b16 %v2261
  %v2333 = vunpack.c.l.b16 %v2262
  %v2334 = vunpack.c.l.b16 %v2263
  %v2335 = vunpack.c.l.b16 %v2264
  %v2336 = vunpack.c.l.b16 %v2265
  %v2337 = vunpack.c.l.b16 %v2266
  %v2338 = vunpack.c.l.b16 %v2267
  %v2339 = vunpack.c.l.b16 %v2268
  %v2340 = vunpack.c.l.b16 %v2269
  %v2341 = vunpack.c.l.b16 %v2270
  %v2342 = vunpack.c.l.b16 %v2271
  %v2343 = vunpack.c.l.b16 %v2272
  %v2344 = vunpack.c.l.b16 %v2273
  %v2345 = vunpack.c.l.b16 %v2274
  %v2346 = vunpack.c.l.b16 %v2275
  %v2347 = vunpack.c.l.b16 %v2276
  %v2348 = vunpack.c.l.b16 %v2277
  %v2349 = vunpack.c.l.b16 %v2278
  %v2350 = vunpack.c.l.b16 %v2279
  %v2351 = vunpack.c.l.b16 %v2280
  %v2352 = vunpack.c.l.b16 %v2281
  %v2353 = vunpack.c.l.b16 %v2282
  %v2354 = vunpack.c.l.b16 %v2283
  %v2355 = vunpack.c.l.b16 %v2284
  %v2356 = vunpack.c.l.b16 %v2285
  %v2357 = vpack.c.b16 %v2326, %v2325
  %v2358 = vpack.c.b16 %v2328, %v2327
  %v2359 = vpack.c.b16 %v2330, %v2329
  %v2360 = vpack.c.b16 %v2332, %v2331
  %v2361 = vpack.c.b16 %v2334, %v2333
  %v2362 = vpack.c.b16 %v2336, %v2335
  %v2363 = vpack.c.b16 %v2338, %v2337
  %v2364 = vpack.c.b16 %v2340, %v2339
  %v2365 = vpack.c.b16 %v2342, %v2341
  %v2366 = vpack.c.b16 %v2344, %v2343
  %v2367 = vpack.c.b16 %v2346, %v2345
  %v2368 = vpack.c.b16 %v2348, %v2347
  %v2369 = vpack.c.b16 %v2350, %v2349
  %v2370 = vpack.c.b16 %v2352, %v2351
  %v2371 = vpack.c.b16 %v2354, %v2353
  %v2372 = vpack.c.b16 %v2356, %v2355
  %2389 = vmatprep.subr.bf16.mxu0 0
  %2390 = vmatpush1.bf16.msra.mxu0 %v2364
  %2391 = vmatprep.subr.bf16.mxu0 0
  %2392 = vmatpush1.bf16.msra.mxu0 %v2363
  %2393 = vmatprep.subr.bf16.mxu0 0
  %2394 = vmatpush1.bf16.msra.mxu0 %v2362
  %2395 = vmatprep.subr.bf16.mxu0 0
  %2396 = vmatpush1.bf16.msra.mxu0 %v2361
  %2397 = vmatprep.subr.bf16.mxu0 0
  %2398 = vmatpush1.bf16.msra.mxu0 %v2360
  %2399 = vmatprep.subr.bf16.mxu0 0
  %2400 = vmatpush1.bf16.msra.mxu0 %v2359
  %2401 = vmatprep.subr.bf16.mxu0 0
  %2402 = vmatpush1.bf16.msra.mxu0 %v2358
  %2403 = vmatprep.subr.bf16.mxu0 0
  %2404 = vmatpush1.bf16.msra.mxu0 %v2357
  %2405 = vmatprep.subr.bf16.mxu0 0
  %2406 = vmatpush2.bf16.msra.mxu0 %v2372
  %2407 = vmatprep.subr.bf16.mxu0 0
  %2408 = vmatpush2.bf16.msra.mxu0 %v2371
  %2409 = vmatprep.subr.bf16.mxu0 0
  %2410 = vmatpush2.bf16.msra.mxu0 %v2370
  %2411 = vmatprep.subr.bf16.mxu0 0
  %2412 = vmatpush2.bf16.msra.mxu0 %v2369
  %2413 = vmatprep.subr.bf16.mxu0 0
  %2414 = vmatpush2.bf16.msra.mxu0 %v2368
  %2415 = vmatprep.subr.bf16.mxu0 0
  %2416 = vmatpush2.bf16.msra.mxu0 %v2367
  %2417 = vmatprep.subr.bf16.mxu0 0
  %2418 = vmatpush2.bf16.msra.mxu0 %v2366
  %2419 = vmatprep.subr.bf16.mxu0 0
  %2420 = vmatpush2.bf16.msra.mxu0 %v2365
  %2421 = vmatprep.mubr.bf16.mxu0 %v2253
  %2422 = vmatmul.mubr.bf16.gmra.mxu0 %v2252
  %v2423 = vpop.f32.mrf.mxu0
  %v2424 = vadd.f32 %v2291, %v2423
  %v2425 = vpop.f32.mrf.mxu0
  %v2426 = vpop.f32.mrf.mxu0
  %v2427 = vadd.f32 %v2291, %v2426
  %v2428 = vpop.f32.mrf.mxu0
  %2429 = vdwg.mxu0
  %v2430 = vadd.f32 %v1957, %v2424
  %v2431 = vadd.f32 %v1958, %v2427
  %2432 = vst.msk [vmem:[%s59] sm:$0xff] %vm129, %v2430
  %2433 = vst.msk [vmem:[%s59 + $0x8] sm:$0xff] %vm129, %v2431
  // Predicated region
  $region118: #{rendering_attention_forward.2} parent=0 // pred_check
    _
  $region119: #{rendering_attention_forward.2} parent=0 // pred_check_branch
    %2435 = sbr.rel (0) target = $region121
  $region120: #{rendering_attention_forward.2} parent=0 // pred_region
    _
  $region121: #{rendering_attention_forward.2} parent=0 // pred_fallthru
    _
  // Predicated region
  $region122: #{rendering_attention_forward.2} parent=0 // pred_check
    _
  $region123: #{rendering_attention_forward.2} parent=0 // pred_check_branch
    %2437 = sbr.rel (0) target = $region125
  $region124: #{rendering_attention_forward.2} parent=0 // pred_region
    _
  $region125: #{rendering_attention_forward.2} parent=0 // pred_fallthru
    _

</llo_original>
